<compile_context>
chip_gen: v5e
topology: v5e:2x2
jax: 0.10.0
libtpu: 0.0.40
codegen_flags: <defaults>
</compile_context>

<pallas_src>
from functools import partial

import numpy as np
import jax
import jax.numpy as jnp
from jax.experimental import pallas as pl
from jax.experimental.pallas import tpu as pltpu


# ------------------------------ Pallas kernels ------------------------------

def _proj_kernel(z_ref, u_ref, l_ref, mu_ref, o_ref):
    # All 4 parts in a single invocation (unrolled tiny matmuls, no grid overhead).
    for p in range(z_ref.shape[0]):
        zl = z_ref[p] * l_ref[p]                              # (B, nb)
        o_ref[p] = jnp.dot(zl, u_ref[p],
                           preferred_element_type=jnp.float32) + mu_ref[p]


def subspace_project(zT, U, L, mu):
    # zT: (4, B, nb), U: (4, nb, Dsub), L: (4, nb), mu: (4, Dsub) -> (4, B, Dsub)
    P, B, nb = zT.shape
    Dsub = U.shape[-1]
    return pl.pallas_call(
        _proj_kernel,
        out_shape=jax.ShapeDtypeStruct((P, B, Dsub), jnp.float32),
    )(zT, U, L[:, None, :], mu[:, None, :])


def _bn_lrelu(t, g, beta):
    # PyTorch train-mode BatchNorm3d (biased var, eps=1e-5) over the lane axis
    # (channel on sublanes) followed by LeakyReLU(0.2).
    n = t.shape[1]
    mean = jnp.sum(t, axis=1, keepdims=True) * (1.0 / n)
    tc = t - mean
    var = jnp.sum(tc * tc, axis=1, keepdims=True) * (1.0 / n)
    y = tc * jax.lax.rsqrt(var + 1e-5) * g + beta
    return jnp.where(y > 0, y, 0.2 * y)


def _c1x1_bn_lrelu_kernel(phi_ref, x_ref, w_ref, b_ref, g_ref, beta_ref, o_ref):
    # fused: 1x1x1 ConvTranspose (channel matmul) + residual add + BN + LReLU
    s = jnp.dot(w_ref[...], phi_ref[...],
                preferred_element_type=jnp.float32) + b_ref[...]
    o_ref[...] = _bn_lrelu(x_ref[...] + s, g_ref[...], beta_ref[...])


def c1x1_bn_lrelu(phiT, xT, w1, b1, gamma, beta):
    # phiT/xT: (Cin, N).  Single block: whole slab fits VMEM at these shapes.
    # TODO(synk): production-sized N needs a two-pass (stats + normalize) tiled BN.
    C, N = phiT.shape
    return pl.pallas_call(
        _c1x1_bn_lrelu_kernel,
        out_shape=jax.ShapeDtypeStruct((C, N), jnp.float32),
    )(phiT, xT, w1.T, b1[:, None], gamma[:, None], beta[:, None])


def _add_bn_lrelu_kernel(a_ref, b_ref, g_ref, beta_ref, o_ref):
    o_ref[...] = _bn_lrelu(a_ref[...] + b_ref[...], g_ref[...], beta_ref[...])


def add_bn_lrelu(a, b, gamma, beta):
    C, N = a.shape
    return pl.pallas_call(
        _add_bn_lrelu_kernel,
        out_shape=jax.ShapeDtypeStruct((C, N), jnp.float32),
    )(a, b, gamma[:, None], beta[:, None])


def _gemm_bias_kernel(w_ref, x_ref, b_ref, o_ref):
    o_ref[...] = (jnp.dot(w_ref[...], x_ref[...],
                          preferred_element_type=jnp.float32) + b_ref[...])


def gemm_bias_T(w, x, b, *, tile_n=2048):
    # out (M, N) = w (M, K) @ x (K, N) + b[:, None]; lane-dense output tiled over N.
    M, K = w.shape
    _, N = x.shape
    tn = min(tile_n, pl.cdiv(N, 128) * 128)
    npad = pl.cdiv(N, tn) * tn
    if npad != N:
        x = jnp.pad(x, ((0, 0), (0, npad - N)))
    out = pl.pallas_call(
        _gemm_bias_kernel,
        out_shape=jax.ShapeDtypeStruct((M, npad), jnp.float32),
        grid=(npad // tn,),
        in_specs=[
            pl.BlockSpec((M, K), lambda n: (0, 0)),    # weight resident
            pl.BlockSpec((K, tn), lambda n: (0, n)),   # activation column tile
            pl.BlockSpec((M, 1), lambda n: (0, 0)),    # bias
        ],
        out_specs=pl.BlockSpec((M, tn), lambda n: (0, n)),
        compiler_params=pltpu.CompilerParams(dimension_semantics=("parallel",)),
    )(w, x, b[:, None])
    return out[:, :N] if npad != N else out


# ------------------- transposed convolutions as single GEMMs -------------------

# (output parity, input shift) -> kernel tap selector for k=3, stride=2, pad=1, op=1:
#   parity 0 uses tap 1 at shift 0; parity 1 uses tap 2 at shift 0 and tap 0 at shift 1.
_SUBPIX_SEL = np.zeros((2, 2, 3), np.float32)
_SUBPIX_SEL[0, 0, 1] = 1.0
_SUBPIX_SEL[1, 0, 2] = 1.0
_SUBPIX_SEL[1, 1, 0] = 1.0


def conv_transpose3d_s2(xT, w, b, *, tile_n=2048):
    """ConvTranspose3d(k=3, stride=2, padding=1, output_padding=1) via sub-pixel GEMM.

    xT: (Cin, B, D, H, W).  w: PyTorch weight (Cin, Cout, 3, 3, 3).
    Returns (Cout, B, 2D, 2H, 2W).
    """
    Cin, B, D, H, W = xT.shape
    Cout = w.shape[1]
    N = B * D * H * W

    # 8 corner-shifted views of the (one-zero right-padded) input -> (8*Cin, N) slab,
    # written and read exactly once (no zero-dilated 27-tap im2col).
    xp = jnp.pad(xT, ((0, 0), (0, 0), (0, 1), (0, 1), (0, 1)))
    views = [xp[:, :, sd:sd + D, sh:sh + H, sw:sw + W].reshape(Cin, N)
             for sd in (0, 1) for sh in (0, 1) for sw in (0, 1)]
    patches = jnp.concatenate(views, axis=0)

    # sub-pixel weight: rows (parity, cout), cols (shift, cin)
    S = jnp.asarray(_SUBPIX_SEL)
    w_sp = jnp.einsum('iojkl,adj,bek,cfl->abcodefi', w, S, S, S)
    w_sp = w_sp.reshape(8 * Cout, 8 * Cin)
    b_sp = jnp.tile(b, 8)

    out_sp = gemm_bias_T(w_sp, patches, b_sp, tile_n=tile_n)       # (8*Cout, N)

    # depth-to-space: (pd,ph,pw,co,b,d,h,w) -> (co, b, 2D, 2H, 2W)
    out_sp = out_sp.reshape(2, 2, 2, Cout, B, D, H, W)
    out = out_sp.transpose(3, 4, 5, 0, 6, 1, 7, 2).reshape(Cout, B, 2 * D, 2 * H, 2 * W)
    return out


def conv_transpose3d_s1(xT, w, b, *, tile_n=2048):
    """ConvTranspose3d(k=3, stride=1, padding=1) == conv with flipped kernel; im2col GEMM."""
    Cin, B, D, H, W = xT.shape
    Cout = w.shape[1]
    N = B * D * H * W
    xp = jnp.pad(xT, ((0, 0), (0, 0), (1, 1), (1, 1), (1, 1)))
    views, wblocks = [], []
    for td in range(3):
        for th in range(3):
            for tw in range(3):
                views.append(xp[:, :, td:td + D, th:th + H, tw:tw + W].reshape(Cin, N))
                wblocks.append(w[:, :, 2 - td, 2 - th, 2 - tw].T)   # (Cout, Cin)
    patches = jnp.concatenate(views, axis=0)                        # (27*Cin, N)
    w_full = jnp.concatenate(wblocks, axis=1)                       # (Cout, 27*Cin)
    out = gemm_bias_T(w_full, patches, b, tile_n=tile_n)
    return out.reshape(Cout, B, D, H, W)


# ------------------------- module structure / params -------------------------

def build_parts(r, in_channels):
    core = r // 2
    peri = (r - core) // 2
    parts = []

    # CorePartLayer: core^3 cube placed at [peri, peri+core)^3
    parts.append(dict(
        view=(in_channels, core, core, core),
        dim=core * core * core * in_channels,
        boxes=[((slice(0, core),) * 3, (slice(peri, peri + core),) * 3)],
    ))

    # SquarePartLayers (type_x, type_y, type_z): two peri-thick slabs along one axis
    for a in range(3):
        shape = [core, core, core]
        shape[a] = 2 * peri

        def mk(loc_a, glo_a, a=a):
            loc = [slice(0, core)] * 3
            glo = [slice(peri, peri + core)] * 3
            loc[a], glo[a] = loc_a, glo_a
            return tuple(loc), tuple(glo)

        parts.append(dict(
            view=(in_channels,) + tuple(shape),
            dim=peri * core * core * 2 * in_channels,
            boxes=[mk(slice(0, peri), slice(0, peri)),
                   mk(slice(peri, 2 * peri), slice(peri + core, r))],
        ))
    return parts


def init_params(key, r, cin, cout, n_basis, parts):
    Dsub = parts[0]["dim"]
    ks = jax.random.split(key, 12)

    # SubspaceLayer params (orthogonal rows for U, like nn.init.orthogonal_)
    Us = []
    for p in range(4):
        A = jax.random.normal(ks[p], (Dsub, n_basis), jnp.float32)
        Q, _ = jnp.linalg.qr(A)
        Us.append(Q.T)                                            # (nb, Dsub)
    L = jnp.tile(3.0 * jnp.arange(n_basis, 0, -1, dtype=jnp.float32)[None], (4, 1))

    def unif(k, shape, fan):
        bnd = 1.0 / np.sqrt(fan)
        return jax.random.uniform(k, shape, jnp.float32, -bnd, bnd)

    return dict(
        U=jnp.stack(Us), L=L, mu=jnp.zeros((4, Dsub), jnp.float32),
        # subspace_conv1: ConvTranspose3d(cin, cin, k=1) -> (Cin_in, Cin_out) matrix
        w1=unif(ks[4], (cin, cin), cin), b1=unif(ks[5], (cin,), cin),
        # subspace_conv2: ConvTranspose3d(cin, cout, 3, s=2, p=1, op=1)
        w_sc2=unif(ks[6], (cin, cout, 3, 3, 3), cin * 27), b_sc2=unif(ks[7], (cout,), cin * 27),
        # feature_conv1: BN(cin) + LReLU + ConvTranspose3d(cin, cout, 3, s=2, p=1, op=1)
        gamma1=jnp.ones((cin,), jnp.float32), beta1=jnp.zeros((cin,), jnp.float32),
        w_fc1=unif(ks[8], (cin, cout, 3, 3, 3), cin * 27), b_fc1=unif(ks[9], (cout,), cin * 27),
        # feature_conv2: BN(cout) + LReLU + ConvTranspose3d(cout, cout, 3, s=1, p=1, op=0)
        gamma2=jnp.ones((cout,), jnp.float32), beta2=jnp.zeros((cout,), jnp.float32),
        w_fc2=unif(ks[10], (cout, cout, 3, 3, 3), cout * 27), b_fc2=unif(ks[11], (cout,), cout * 27),
    )


# ------------------------------- forward pass -------------------------------

def jigsaw_block_forward(params, x, z, parts, r, cin, cout, n_basis):
    B = x.shape[0]

    # --- ConstructionLayer: one Pallas projection call + static box placement ---
    zT = z.reshape(B, 4, n_basis).transpose(1, 0, 2)                      # (4, B, nb)
    proj = subspace_project(zT, params["U"], params["L"], params["mu"])   # (4, B, Dsub)

    phi = jnp.zeros((cin, B, r, r, r), jnp.float32)
    for p, info in enumerate(parts):
        ci, i, j, k = info["view"]
        part = proj[p].reshape(B, ci, i, j, k).transpose(1, 0, 2, 3, 4)   # (Cin, B, i, j, k)
        for lsl, gsl in info["boxes"]:
            phi = phi.at[(slice(None), slice(None)) + gsl].add(
                part[(slice(None), slice(None)) + lsl])

    N1 = B * r * r * r
    phi_flat = phi.reshape(cin, N1)
    xT = x.transpose(1, 0, 2, 3, 4).reshape(cin, N1)

    # subspace_conv1 (1x1x1 convT) fused with residual add + BN(train) + LeakyReLU
    h1 = c1x1_bn_lrelu(phi_flat, xT, params["w1"], params["b1"],
                       params["gamma1"], params["beta1"]).reshape(cin, B, r, r, r)

    # feature_conv1 / subspace_conv2: k=3, stride=2, p=1, op=1 (sub-pixel GEMM)
    f1 = conv_transpose3d_s2(h1, params["w_fc1"], params["b_fc1"])    # (cout, B, 2r, 2r, 2r)
    sc2 = conv_transpose3d_s2(phi, params["w_sc2"], params["b_sc2"])

    R2 = 2 * r
    N2 = B * R2 ** 3
    h2 = add_bn_lrelu(f1.reshape(cout, N2), sc2.reshape(cout, N2),
                      params["gamma2"], params["beta2"]).reshape(cout, B, R2, R2, R2)

    # feature_conv2: k=3, stride=1, p=1
    out = conv_transpose3d_s1(h2, params["w_fc2"], params["b_fc2"])

    # TODO(synk): BatchNorm running-stat buffer updates (training bookkeeping) are not
    # materialized; they do not affect the forward output.
    return out.transpose(1, 0, 2, 3, 4)                                   # back to NCDHW


# ----------------------------------- main -----------------------------------

if __name__ == "__main__":
    r, cin, cout, nb, B = 8, 4, 8, 6, 2

    key = jax.random.PRNGKey(0)
    kx, kz, kp = jax.random.split(key, 3)

    parts = build_parts(r, cin)
    params = init_params(kp, r, cin, cout, nb, parts)

    x = jax.random.normal(kx, (B, cin, r, r, r), jnp.float32)             # NCDHW
    z = jax.random.normal(kz, (B, 4 * nb), jnp.float32)

    fwd = jax.jit(partial(jigsaw_block_forward, parts=parts, r=r,
                          cin=cin, cout=cout, n_basis=nb))
    out = fwd(params, x, z)
    out = jax.block_until_ready(out)

    assert out.shape == (B, cout, 2 * r, 2 * r, 2 * r), out.shape
    assert bool(jnp.all(jnp.isfinite(out)))
    print("KERNEL_OK")
</pallas_src>

<mosaic_0001>
module attributes {stable_mosaic.version = 11 : i64} {
  func.func @_proj_kernel(%arg0: memref<4x2x6xf32, #tpu.memory_space<vmem>>, %arg1: memref<4x6x256xf32, #tpu.memory_space<vmem>>, %arg2: memref<4x1x6xf32, #tpu.memory_space<vmem>>, %arg3: memref<4x1x256xf32, #tpu.memory_space<vmem>>, %arg4: memref<4x2x256xf32, #tpu.memory_space<vmem>>) attributes {dimension_semantics = [], scalar_prefetch = 0 : i64, scratch_operands = 0 : i64, tpu.core_type = #tpu.core_type<tc>} {
    %c0 = arith.constant 0 : index
    %c0_0 = arith.constant 0 : index
    %c0_1 = arith.constant 0 : index
    %0 = vector.load %arg0[%c0, %c0_0, %c0_1] : memref<4x2x6xf32, #tpu.memory_space<vmem>>, vector<1x2x6xf32>
    %1 = vector.shape_cast %0 : vector<1x2x6xf32> to vector<2x6xf32>
    %c0_2 = arith.constant 0 : index
    %c0_3 = arith.constant 0 : index
    %c0_4 = arith.constant 0 : index
    %2 = vector.load %arg2[%c0_2, %c0_3, %c0_4] : memref<4x1x6xf32, #tpu.memory_space<vmem>>, vector<1x1x6xf32>
    %3 = vector.shape_cast %2 : vector<1x1x6xf32> to vector<1x6xf32>
    %4 = vector.broadcast %3 : vector<1x6xf32> to vector<2x6xf32>
    %5 = arith.mulf %1, %4 : vector<2x6xf32>
    %c0_5 = arith.constant 0 : index
    %c0_6 = arith.constant 0 : index
    %c0_7 = arith.constant 0 : index
    %6 = vector.load %arg1[%c0_5, %c0_6, %c0_7] : memref<4x6x256xf32, #tpu.memory_space<vmem>>, vector<1x6x256xf32>
    %7 = vector.shape_cast %6 : vector<1x6x256xf32> to vector<6x256xf32>
    %cst = arith.constant dense<0.000000e+00> : vector<2x256xf32>
    %8 = tpu.matmul %5, %7, %cst {dimension_numbers = #tpu.dot_dimension_numbers<[1], [0], [0], [1], [0, 0, 1, 1], [], []>} : vector<2x6xf32>, vector<6x256xf32>, vector<2x256xf32> -> vector<2x256xf32>
    %c0_8 = arith.constant 0 : index
    %c0_9 = arith.constant 0 : index
    %c0_10 = arith.constant 0 : index
    %9 = vector.load %arg3[%c0_8, %c0_9, %c0_10] : memref<4x1x256xf32, #tpu.memory_space<vmem>>, vector<1x1x256xf32>
    %10 = vector.shape_cast %9 : vector<1x1x256xf32> to vector<1x256xf32>
    %11 = vector.broadcast %10 : vector<1x256xf32> to vector<2x256xf32>
    %12 = arith.addf %8, %11 : vector<2x256xf32>
    %c0_11 = arith.constant 0 : index
    %c0_12 = arith.constant 0 : index
    %c0_13 = arith.constant 0 : index
    %13 = vector.load %arg4[%c0_11, %c0_12, %c0_13] : memref<4x2x256xf32, #tpu.memory_space<vmem>>, vector<1x2x256xf32>
    %14 = vector.shape_cast %13 : vector<1x2x256xf32> to vector<2x256xf32>
    %15 = vector.shape_cast %12 : vector<2x256xf32> to vector<1x2x256xf32>
    tpu.vector_store %arg4[%c0_11, %c0_12, %c0_13], %15 {strides = array<i32>} : memref<4x2x256xf32, #tpu.memory_space<vmem>>, vector<1x2x256xf32>,
    %c1 = arith.constant 1 : index
    %c0_14 = arith.constant 0 : index
    %c0_15 = arith.constant 0 : index
    %16 = vector.load %arg0[%c1, %c0_14, %c0_15] : memref<4x2x6xf32, #tpu.memory_space<vmem>>, vector<1x2x6xf32>
    %17 = vector.shape_cast %16 : vector<1x2x6xf32> to vector<2x6xf32>
    %c1_16 = arith.constant 1 : index
    %c0_17 = arith.constant 0 : index
    %c0_18 = arith.constant 0 : index
    %18 = vector.load %arg2[%c1_16, %c0_17, %c0_18] : memref<4x1x6xf32, #tpu.memory_space<vmem>>, vector<1x1x6xf32>
    %19 = vector.shape_cast %18 : vector<1x1x6xf32> to vector<1x6xf32>
    %20 = vector.broadcast %19 : vector<1x6xf32> to vector<2x6xf32>
    %21 = arith.mulf %17, %20 : vector<2x6xf32>
    %c1_19 = arith.constant 1 : index
    %c0_20 = arith.constant 0 : index
    %c0_21 = arith.constant 0 : index
    %22 = vector.load %arg1[%c1_19, %c0_20, %c0_21] : memref<4x6x256xf32, #tpu.memory_space<vmem>>, vector<1x6x256xf32>
    %23 = vector.shape_cast %22 : vector<1x6x256xf32> to vector<6x256xf32>
    %cst_22 = arith.constant dense<0.000000e+00> : vector<2x256xf32>
    %24 = tpu.matmul %21, %23, %cst_22 {dimension_numbers = #tpu.dot_dimension_numbers<[1], [0], [0], [1], [0, 0, 1, 1], [], []>} : vector<2x6xf32>, vector<6x256xf32>, vector<2x256xf32> -> vector<2x256xf32>
    %c1_23 = arith.constant 1 : index
    %c0_24 = arith.constant 0 : index
    %c0_25 = arith.constant 0 : index
    %25 = vector.load %arg3[%c1_23, %c0_24, %c0_25] : memref<4x1x256xf32, #tpu.memory_space<vmem>>, vector<1x1x256xf32>
    %26 = vector.shape_cast %25 : vector<1x1x256xf32> to vector<1x256xf32>
    %27 = vector.broadcast %26 : vector<1x256xf32> to vector<2x256xf32>
    %28 = arith.addf %24, %27 : vector<2x256xf32>
    %c1_26 = arith.constant 1 : index
    %c0_27 = arith.constant 0 : index
    %c0_28 = arith.constant 0 : index
    %29 = vector.load %arg4[%c1_26, %c0_27, %c0_28] : memref<4x2x256xf32, #tpu.memory_space<vmem>>, vector<1x2x256xf32>
    %30 = vector.shape_cast %29 : vector<1x2x256xf32> to vector<2x256xf32>
    %31 = vector.shape_cast %28 : vector<2x256xf32> to vector<1x2x256xf32>
    tpu.vector_store %arg4[%c1_26, %c0_27, %c0_28], %31 {strides = array<i32>} : memref<4x2x256xf32, #tpu.memory_space<vmem>>, vector<1x2x256xf32>,
    %c2 = arith.constant 2 : index
    %c0_29 = arith.constant 0 : index
    %c0_30 = arith.constant 0 : index
    %32 = vector.load %arg0[%c2, %c0_29, %c0_30] : memref<4x2x6xf32, #tpu.memory_space<vmem>>, vector<1x2x6xf32>
    %33 = vector.shape_cast %32 : vector<1x2x6xf32> to vector<2x6xf32>
    %c2_31 = arith.constant 2 : index
    %c0_32 = arith.constant 0 : index
    %c0_33 = arith.constant 0 : index
    %34 = vector.load %arg2[%c2_31, %c0_32, %c0_33] : memref<4x1x6xf32, #tpu.memory_space<vmem>>, vector<1x1x6xf32>
    %35 = vector.shape_cast %34 : vector<1x1x6xf32> to vector<1x6xf32>
    %36 = vector.broadcast %35 : vector<1x6xf32> to vector<2x6xf32>
    %37 = arith.mulf %33, %36 : vector<2x6xf32>
    %c2_34 = arith.constant 2 : index
    %c0_35 = arith.constant 0 : index
    %c0_36 = arith.constant 0 : index
    %38 = vector.load %arg1[%c2_34, %c0_35, %c0_36] : memref<4x6x256xf32, #tpu.memory_space<vmem>>, vector<1x6x256xf32>
    %39 = vector.shape_cast %38 : vector<1x6x256xf32> to vector<6x256xf32>
    %cst_37 = arith.constant dense<0.000000e+00> : vector<2x256xf32>
    %40 = tpu.matmul %37, %39, %cst_37 {dimension_numbers = #tpu.dot_dimension_numbers<[1], [0], [0], [1], [0, 0, 1, 1], [], []>} : vector<2x6xf32>, vector<6x256xf32>, vector<2x256xf32> -> vector<2x256xf32>
    %c2_38 = arith.constant 2 : index
    %c0_39 = arith.constant 0 : index
    %c0_40 = arith.constant 0 : index
    %41 = vector.load %arg3[%c2_38, %c0_39, %c0_40] : memref<4x1x256xf32, #tpu.memory_space<vmem>>, vector<1x1x256xf32>
    %42 = vector.shape_cast %41 : vector<1x1x256xf32> to vector<1x256xf32>
    %43 = vector.broadcast %42 : vector<1x256xf32> to vector<2x256xf32>
    %44 = arith.addf %40, %43 : vector<2x256xf32>
    %c2_41 = arith.constant 2 : index
    %c0_42 = arith.constant 0 : index
    %c0_43 = arith.constant 0 : index
    %45 = vector.load %arg4[%c2_41, %c0_42, %c0_43] : memref<4x2x256xf32, #tpu.memory_space<vmem>>, vector<1x2x256xf32>
    %46 = vector.shape_cast %45 : vector<1x2x256xf32> to vector<2x256xf32>
    %47 = vector.shape_cast %44 : vector<2x256xf32> to vector<1x2x256xf32>
    tpu.vector_store %arg4[%c2_41, %c0_42, %c0_43], %47 {strides = array<i32>} : memref<4x2x256xf32, #tpu.memory_space<vmem>>, vector<1x2x256xf32>,
    %c3 = arith.constant 3 : index
    %c0_44 = arith.constant 0 : index
    %c0_45 = arith.constant 0 : index
    %48 = vector.load %arg0[%c3, %c0_44, %c0_45] : memref<4x2x6xf32, #tpu.memory_space<vmem>>, vector<1x2x6xf32>
    %49 = vector.shape_cast %48 : vector<1x2x6xf32> to vector<2x6xf32>
    %c3_46 = arith.constant 3 : index
    %c0_47 = arith.constant 0 : index
    %c0_48 = arith.constant 0 : index
    %50 = vector.load %arg2[%c3_46, %c0_47, %c0_48] : memref<4x1x6xf32, #tpu.memory_space<vmem>>, vector<1x1x6xf32>
    %51 = vector.shape_cast %50 : vector<1x1x6xf32> to vector<1x6xf32>
    %52 = vector.broadcast %51 : vector<1x6xf32> to vector<2x6xf32>
    %53 = arith.mulf %49, %52 : vector<2x6xf32>
    %c3_49 = arith.constant 3 : index
    %c0_50 = arith.constant 0 : index
    %c0_51 = arith.constant 0 : index
    %54 = vector.load %arg1[%c3_49, %c0_50, %c0_51] : memref<4x6x256xf32, #tpu.memory_space<vmem>>, vector<1x6x256xf32>
    %55 = vector.shape_cast %54 : vector<1x6x256xf32> to vector<6x256xf32>
    %cst_52 = arith.constant dense<0.000000e+00> : vector<2x256xf32>
    %56 = tpu.matmul %53, %55, %cst_52 {dimension_numbers = #tpu.dot_dimension_numbers<[1], [0], [0], [1], [0, 0, 1, 1], [], []>} : vector<2x6xf32>, vector<6x256xf32>, vector<2x256xf32> -> vector<2x256xf32>
    %c3_53 = arith.constant 3 : index
    %c0_54 = arith.constant 0 : index
    %c0_55 = arith.constant 0 : index
    %57 = vector.load %arg3[%c3_53, %c0_54, %c0_55] : memref<4x1x256xf32, #tpu.memory_space<vmem>>, vector<1x1x256xf32>
    %58 = vector.shape_cast %57 : vector<1x1x256xf32> to vector<1x256xf32>
    %59 = vector.broadcast %58 : vector<1x256xf32> to vector<2x256xf32>
    %60 = arith.addf %56, %59 : vector<2x256xf32>
    %c3_56 = arith.constant 3 : index
    %c0_57 = arith.constant 0 : index
    %c0_58 = arith.constant 0 : index
    %61 = vector.load %arg4[%c3_56, %c0_57, %c0_58] : memref<4x2x256xf32, #tpu.memory_space<vmem>>, vector<1x2x256xf32>
    %62 = vector.shape_cast %61 : vector<1x2x256xf32> to vector<2x256xf32>
    %63 = vector.shape_cast %60 : vector<2x256xf32> to vector<1x2x256xf32>
    tpu.vector_store %arg4[%c3_56, %c0_57, %c0_58], %63 {strides = array<i32>} : memref<4x2x256xf32, #tpu.memory_space<vmem>>, vector<1x2x256xf32>,
    return
  }
}

module attributes {stable_mosaic.version = 11 : i64} {
  func.func @_c1x1_bn_lrelu_kernel(%arg0: memref<4x1024xf32, #tpu.memory_space<vmem>>, %arg1: memref<4x1024xf32, #tpu.memory_space<vmem>>, %arg2: memref<4x4xf32, #tpu.memory_space<vmem>>, %arg3: memref<4x1xf32, #tpu.memory_space<vmem>>, %arg4: memref<4x1xf32, #tpu.memory_space<vmem>>, %arg5: memref<4x1xf32, #tpu.memory_space<vmem>>, %arg6: memref<4x1024xf32, #tpu.memory_space<vmem>>) attributes {dimension_semantics = [], scalar_prefetch = 0 : i64, scratch_operands = 0 : i64, tpu.core_type = #tpu.core_type<tc>} {
    %c0 = arith.constant 0 : index
    %c0_0 = arith.constant 0 : index
    %0 = vector.load %arg2[%c0, %c0_0] : memref<4x4xf32, #tpu.memory_space<vmem>>, vector<4x4xf32>
    %c0_1 = arith.constant 0 : index
    %c0_2 = arith.constant 0 : index
    %1 = vector.load %arg0[%c0_1, %c0_2] : memref<4x1024xf32, #tpu.memory_space<vmem>>, vector<4x1024xf32>
    %cst = arith.constant dense<0.000000e+00> : vector<4x1024xf32>
    %2 = tpu.matmul %0, %1, %cst {dimension_numbers = #tpu.dot_dimension_numbers<[1], [0], [0], [1], [0, 0, 1, 1], [], []>} : vector<4x4xf32>, vector<4x1024xf32>, vector<4x1024xf32> -> vector<4x1024xf32>
    %c0_3 = arith.constant 0 : index
    %c0_4 = arith.constant 0 : index
    %3 = vector.load %arg3[%c0_3, %c0_4] : memref<4x1xf32, #tpu.memory_space<vmem>>, vector<4x1xf32>
    %4 = vector.broadcast %3 : vector<4x1xf32> to vector<4x1024xf32>
    %5 = arith.addf %2, %4 : vector<4x1024xf32>
    %c0_5 = arith.constant 0 : index
    %c0_6 = arith.constant 0 : index
    %6 = vector.load %arg1[%c0_5, %c0_6] : memref<4x1024xf32, #tpu.memory_space<vmem>>, vector<4x1024xf32>
    %7 = arith.addf %6, %5 : vector<4x1024xf32>
    %c0_7 = arith.constant 0 : index
    %c0_8 = arith.constant 0 : index
    %8 = vector.load %arg4[%c0_7, %c0_8] : memref<4x1xf32, #tpu.memory_space<vmem>>, vector<4x1xf32>
    %c0_9 = arith.constant 0 : index
    %c0_10 = arith.constant 0 : index
    %9 = vector.load %arg5[%c0_9, %c0_10] : memref<4x1xf32, #tpu.memory_space<vmem>>, vector<4x1xf32>
    %cst_11 = arith.constant dense<0.000000e+00> : vector<4xf32>
    %10 = vector.multi_reduction <add>, %7, %cst_11 [1] : vector<4x1024xf32> to vector<4xf32>
    %11 = vector.shape_cast %10 : vector<4xf32> to vector<4x1xf32>
    %cst_12 = arith.constant 9.765625E-4 : f32
    %12 = vector.broadcast %cst_12 : f32 to vector<4x1xf32>
    %13 = arith.mulf %11, %12 : vector<4x1xf32>
    %14 = vector.broadcast %13 : vector<4x1xf32> to vector<4x1024xf32>
    %15 = arith.subf %7, %14 : vector<4x1024xf32>
    %16 = arith.mulf %15, %15 : vector<4x1024xf32>
    %cst_13 = arith.constant dense<0.000000e+00> : vector<4xf32>
    %17 = vector.multi_reduction <add>, %16, %cst_13 [1] : vector<4x1024xf32> to vector<4xf32>
    %18 = vector.shape_cast %17 : vector<4xf32> to vector<4x1xf32>
    %cst_14 = arith.constant 9.765625E-4 : f32
    %19 = vector.broadcast %cst_14 : f32 to vector<4x1xf32>
    %20 = arith.mulf %18, %19 : vector<4x1xf32>
    %cst_15 = arith.constant 9.99999974E-6 : f32
    %21 = vector.broadcast %cst_15 : f32 to vector<4x1xf32>
    %22 = arith.addf %20, %21 : vector<4x1xf32>
    %23 = math.rsqrt %22 : vector<4x1xf32>
    %24 = vector.broadcast %23 : vector<4x1xf32> to vector<4x1024xf32>
    %25 = arith.mulf %15, %24 : vector<4x1024xf32>
    %26 = vector.broadcast %8 : vector<4x1xf32> to vector<4x1024xf32>
    %27 = arith.mulf %25, %26 : vector<4x1024xf32>
    %28 = vector.broadcast %9 : vector<4x1xf32> to vector<4x1024xf32>
    %29 = arith.addf %27, %28 : vector<4x1024xf32>
    %cst_16 = arith.constant 0.000000e+00 : f32
    %30 = vector.broadcast %cst_16 : f32 to vector<4x1024xf32>
    %31 = arith.cmpf ogt, %29, %30 : vector<4x1024xf32>
    %cst_17 = arith.constant 2.000000e-01 : f32
    %32 = vector.broadcast %cst_17 : f32 to vector<4x1024xf32>
    %33 = arith.mulf %32, %29 : vector<4x1024xf32>
    %34 = arith.select %31, %29, %33 : vector<4x1024xi1>, vector<4x1024xf32>
    %c0_18 = arith.constant 0 : index
    %c0_19 = arith.constant 0 : index
    %35 = vector.load %arg6[%c0_18, %c0_19] : memref<4x1024xf32, #tpu.memory_space<vmem>>, vector<4x1024xf32>
    tpu.vector_store %arg6[%c0_18, %c0_19], %34 {strides = array<i32>} : memref<4x1024xf32, #tpu.memory_space<vmem>>, vector<4x1024xf32>,
    return
  }
}

module attributes {stable_mosaic.version = 11 : i64} {
  func.func @_gemm_bias_kernel(%arg0: i32, %arg1: memref<64x32xf32, #tpu.memory_space<vmem>>, %arg2: memref<32x1024xf32, #tpu.memory_space<vmem>>, %arg3: memref<64x1xf32, #tpu.memory_space<vmem>>, %arg4: memref<64x1024xf32, #tpu.memory_space<vmem>>) attributes {dimension_semantics = [#tpu.dimension_semantics<parallel>], iteration_bounds = array<i64: 1>, scalar_prefetch = 0 : i64, scratch_operands = 0 : i64, tpu.core_type = #tpu.core_type<tc>, window_params = [{pipeline_mode = #tpu.pipeline_mode<synchronous>, transform_indices = @transform_0, window_bounds = array<i64: 64, 32>}, {transform_indices = @transform_1, window_bounds = array<i64: 32, 1024>}, {pipeline_mode = #tpu.pipeline_mode<synchronous>, transform_indices = @transform_2, window_bounds = array<i64: 64, 1>}, {transform_indices = @transform_3, window_bounds = array<i64: 64, 1024>}]} {
    %c0 = arith.constant 0 : index
    %c0_0 = arith.constant 0 : index
    %0 = vector.load %arg1[%c0, %c0_0] : memref<64x32xf32, #tpu.memory_space<vmem>>, vector<64x32xf32>
    %c0_1 = arith.constant 0 : index
    %c0_2 = arith.constant 0 : index
    %1 = vector.load %arg2[%c0_1, %c0_2] : memref<32x1024xf32, #tpu.memory_space<vmem>>, vector<32x1024xf32>
    %cst = arith.constant dense<0.000000e+00> : vector<64x1024xf32>
    %2 = tpu.matmul %0, %1, %cst {dimension_numbers = #tpu.dot_dimension_numbers<[1], [0], [0], [1], [0, 0, 1, 1], [], []>} : vector<64x32xf32>, vector<32x1024xf32>, vector<64x1024xf32> -> vector<64x1024xf32>
    %c0_3 = arith.constant 0 : index
    %c0_4 = arith.constant 0 : index
    %3 = vector.load %arg3[%c0_3, %c0_4] : memref<64x1xf32, #tpu.memory_space<vmem>>, vector<64x1xf32>
    %4 = vector.broadcast %3 : vector<64x1xf32> to vector<64x1024xf32>
    %5 = arith.addf %2, %4 : vector<64x1024xf32>
    %c0_5 = arith.constant 0 : index
    %c0_6 = arith.constant 0 : index
    %6 = vector.load %arg4[%c0_5, %c0_6] : memref<64x1024xf32, #tpu.memory_space<vmem>>, vector<64x1024xf32>
    tpu.vector_store %arg4[%c0_5, %c0_6], %5 {strides = array<i32>} : memref<64x1024xf32, #tpu.memory_space<vmem>>, vector<64x1024xf32>,
    return
  }
  func.func @transform_0(%arg0: i32) -> (i32, i32) {
    %c0_i32 = arith.constant 0 : i32
    %c0_i32_0 = arith.constant 0 : i32
    %c0_i32_1 = arith.constant 0 : i32
    return %c0_i32, %c0_i32_0 : i32, i32
  }
  func.func @transform_1(%arg0: i32) -> (i32, i32) {
    %c0_i32 = arith.constant 0 : i32
    %c0_i32_0 = arith.constant 0 : i32
    return %c0_i32, %arg0 : i32, i32
  }
  func.func @transform_2(%arg0: i32) -> (i32, i32) {
    %c0_i32 = arith.constant 0 : i32
    %c0_i32_0 = arith.constant 0 : i32
    %c0_i32_1 = arith.constant 0 : i32
    return %c0_i32, %c0_i32_0 : i32, i32
  }
  func.func @transform_3(%arg0: i32) -> (i32, i32) {
    %c0_i32 = arith.constant 0 : i32
    %c0_i32_0 = arith.constant 0 : i32
    return %c0_i32, %arg0 : i32, i32
  }
}

module attributes {stable_mosaic.version = 11 : i64} {
  func.func @_add_bn_lrelu_kernel(%arg0: memref<8x8192xf32, #tpu.memory_space<vmem>>, %arg1: memref<8x8192xf32, #tpu.memory_space<vmem>>, %arg2: memref<8x1xf32, #tpu.memory_space<vmem>>, %arg3: memref<8x1xf32, #tpu.memory_space<vmem>>, %arg4: memref<8x8192xf32, #tpu.memory_space<vmem>>) attributes {dimension_semantics = [], scalar_prefetch = 0 : i64, scratch_operands = 0 : i64, tpu.core_type = #tpu.core_type<tc>} {
    %c0 = arith.constant 0 : index
    %c0_0 = arith.constant 0 : index
    %0 = vector.load %arg0[%c0, %c0_0] : memref<8x8192xf32, #tpu.memory_space<vmem>>, vector<8x8192xf32>
    %c0_1 = arith.constant 0 : index
    %c0_2 = arith.constant 0 : index
    %1 = vector.load %arg1[%c0_1, %c0_2] : memref<8x8192xf32, #tpu.memory_space<vmem>>, vector<8x8192xf32>
    %2 = arith.addf %0, %1 : vector<8x8192xf32>
    %c0_3 = arith.constant 0 : index
    %c0_4 = arith.constant 0 : index
    %3 = vector.load %arg2[%c0_3, %c0_4] : memref<8x1xf32, #tpu.memory_space<vmem>>, vector<8x1xf32>
    %c0_5 = arith.constant 0 : index
    %c0_6 = arith.constant 0 : index
    %4 = vector.load %arg3[%c0_5, %c0_6] : memref<8x1xf32, #tpu.memory_space<vmem>>, vector<8x1xf32>
    %cst = arith.constant dense<0.000000e+00> : vector<8xf32>
    %5 = vector.multi_reduction <add>, %2, %cst [1] : vector<8x8192xf32> to vector<8xf32>
    %6 = vector.shape_cast %5 : vector<8xf32> to vector<8x1xf32>
    %cst_7 = arith.constant 1.22070313E-4 : f32
    %7 = vector.broadcast %cst_7 : f32 to vector<8x1xf32>
    %8 = arith.mulf %6, %7 : vector<8x1xf32>
    %9 = vector.broadcast %8 : vector<8x1xf32> to vector<8x8192xf32>
    %10 = arith.subf %2, %9 : vector<8x8192xf32>
    %11 = arith.mulf %10, %10 : vector<8x8192xf32>
    %cst_8 = arith.constant dense<0.000000e+00> : vector<8xf32>
    %12 = vector.multi_reduction <add>, %11, %cst_8 [1] : vector<8x8192xf32> to vector<8xf32>
    %13 = vector.shape_cast %12 : vector<8xf32> to vector<8x1xf32>
    %cst_9 = arith.constant 1.22070313E-4 : f32
    %14 = vector.broadcast %cst_9 : f32 to vector<8x1xf32>
    %15 = arith.mulf %13, %14 : vector<8x1xf32>
    %cst_10 = arith.constant 9.99999974E-6 : f32
    %16 = vector.broadcast %cst_10 : f32 to vector<8x1xf32>
    %17 = arith.addf %15, %16 : vector<8x1xf32>
    %18 = math.rsqrt %17 : vector<8x1xf32>
    %19 = vector.broadcast %18 : vector<8x1xf32> to vector<8x8192xf32>
    %20 = arith.mulf %10, %19 : vector<8x8192xf32>
    %21 = vector.broadcast %3 : vector<8x1xf32> to vector<8x8192xf32>
    %22 = arith.mulf %20, %21 : vector<8x8192xf32>
    %23 = vector.broadcast %4 : vector<8x1xf32> to vector<8x8192xf32>
    %24 = arith.addf %22, %23 : vector<8x8192xf32>
    %cst_11 = arith.constant 0.000000e+00 : f32
    %25 = vector.broadcast %cst_11 : f32 to vector<8x8192xf32>
    %26 = arith.cmpf ogt, %24, %25 : vector<8x8192xf32>
    %cst_12 = arith.constant 2.000000e-01 : f32
    %27 = vector.broadcast %cst_12 : f32 to vector<8x8192xf32>
    %28 = arith.mulf %27, %24 : vector<8x8192xf32>
    %29 = arith.select %26, %24, %28 : vector<8x8192xi1>, vector<8x8192xf32>
    %c0_13 = arith.constant 0 : index
    %c0_14 = arith.constant 0 : index
    %30 = vector.load %arg4[%c0_13, %c0_14] : memref<8x8192xf32, #tpu.memory_space<vmem>>, vector<8x8192xf32>
    tpu.vector_store %arg4[%c0_13, %c0_14], %29 {strides = array<i32>} : memref<8x8192xf32, #tpu.memory_space<vmem>>, vector<8x8192xf32>,
    return
  }
}

module attributes {stable_mosaic.version = 11 : i64} {
  func.func @_gemm_bias_kernel(%arg0: i32, %arg1: memref<8x216xf32, #tpu.memory_space<vmem>>, %arg2: memref<216x2048xf32, #tpu.memory_space<vmem>>, %arg3: memref<8x1xf32, #tpu.memory_space<vmem>>, %arg4: memref<8x2048xf32, #tpu.memory_space<vmem>>) attributes {dimension_semantics = [#tpu.dimension_semantics<parallel>], iteration_bounds = array<i64: 4>, scalar_prefetch = 0 : i64, scratch_operands = 0 : i64, tpu.core_type = #tpu.core_type<tc>, window_params = [{pipeline_mode = #tpu.pipeline_mode<synchronous>, transform_indices = @transform_0, window_bounds = array<i64: 8, 216>}, {transform_indices = @transform_1, window_bounds = array<i64: 216, 2048>}, {pipeline_mode = #tpu.pipeline_mode<synchronous>, transform_indices = @transform_2, window_bounds = array<i64: 8, 1>}, {transform_indices = @transform_3, window_bounds = array<i64: 8, 2048>}]} {
    %c0 = arith.constant 0 : index
    %c0_0 = arith.constant 0 : index
    %0 = vector.load %arg1[%c0, %c0_0] : memref<8x216xf32, #tpu.memory_space<vmem>>, vector<8x216xf32>
    %c0_1 = arith.constant 0 : index
    %c0_2 = arith.constant 0 : index
    %1 = vector.load %arg2[%c0_1, %c0_2] : memref<216x2048xf32, #tpu.memory_space<vmem>>, vector<216x2048xf32>
    %cst = arith.constant dense<0.000000e+00> : vector<8x2048xf32>
    %2 = tpu.matmul %0, %1, %cst {dimension_numbers = #tpu.dot_dimension_numbers<[1], [0], [0], [1], [0, 0, 1, 1], [], []>} : vector<8x216xf32>, vector<216x2048xf32>, vector<8x2048xf32> -> vector<8x2048xf32>
    %c0_3 = arith.constant 0 : index
    %c0_4 = arith.constant 0 : index
    %3 = vector.load %arg3[%c0_3, %c0_4] : memref<8x1xf32, #tpu.memory_space<vmem>>, vector<8x1xf32>
    %4 = vector.broadcast %3 : vector<8x1xf32> to vector<8x2048xf32>
    %5 = arith.addf %2, %4 : vector<8x2048xf32>
    %c0_5 = arith.constant 0 : index
    %c0_6 = arith.constant 0 : index
    %6 = vector.load %arg4[%c0_5, %c0_6] : memref<8x2048xf32, #tpu.memory_space<vmem>>, vector<8x2048xf32>
    tpu.vector_store %arg4[%c0_5, %c0_6], %5 {strides = array<i32>} : memref<8x2048xf32, #tpu.memory_space<vmem>>, vector<8x2048xf32>,
    return
  }
  func.func @transform_0(%arg0: i32) -> (i32, i32) {
    %c0_i32 = arith.constant 0 : i32
    %c0_i32_0 = arith.constant 0 : i32
    %c0_i32_1 = arith.constant 0 : i32
    return %c0_i32, %c0_i32_0 : i32, i32
  }
  func.func @transform_1(%arg0: i32) -> (i32, i32) {
    %c0_i32 = arith.constant 0 : i32
    %c0_i32_0 = arith.constant 0 : i32
    return %c0_i32, %arg0 : i32, i32
  }
  func.func @transform_2(%arg0: i32) -> (i32, i32) {
    %c0_i32 = arith.constant 0 : i32
    %c0_i32_0 = arith.constant 0 : i32
    %c0_i32_1 = arith.constant 0 : i32
    return %c0_i32, %c0_i32_0 : i32, i32
  }
  func.func @transform_3(%arg0: i32) -> (i32, i32) {
    %c0_i32 = arith.constant 0 : i32
    %c0_i32_0 = arith.constant 0 : i32
    return %c0_i32, %arg0 : i32, i32
  }
}

</mosaic_0001>

<llo_original>
// kernel: tile.13
$region0: #{tile.13}
  #allocation2 [shape = 's32[1]{0}', space=sflag, size = 0x4, scoped, tag = 'scoped memory for tile.13']
  %s0 = inlined_call_operand.hbm [shape: f32[8], index: 0, kind: input, shape index: {}]
  %s1 = inlined_call_operand.vmem [shape: f32[8,8], index: 1, kind: output, shape index: {}]
  $region1: #{tile.13} parent=0
    #allocation0 [shape = 'u8[512]{0}', space=vmem, size = 0x400, scoped, tag = 'operand span for operand 0']
    #allocation1 [shape = 's32[1]{0}', space=sflag, size = 0x4, scoped, tag = 'scoped memory for tile.13']
    %2 = vsyncpa [#allocation1], 0
    // Predicated region
    $region2: #{tile.13} parent=1 // pred_check
      _
    $region3: #{tile.13} parent=1 // pred_check_branch
      %4 = sbr.rel (0) target = $region5
    $region4: #{tile.13} parent=1 // pred_region
      %6 = vsyncadd [#allocation1], 0
      %s8 = sshll.u32 %s0, 4
      %s9 = int_to_ptr.hbm [resolvable:$true] %s8
      %s10 = sshll.u32 [#allocation0], 4
      %s11 = int_to_ptr.vmem [resolvable:$true] %s10
      %13 = dma.hbm_to_vmem [thread:$0]  %s9, 16, %s11, [#allocation1]
    $region5: #{tile.13} parent=1 // pred_fallthru
      _
    // Predicated region
    $region6: #{tile.13} parent=1 // pred_check
      _
    $region7: #{tile.13} parent=1 // pred_check_branch
      %15 = sbr.rel (0) target = $region9
    $region8: #{tile.13} parent=1 // pred_region
      %17 = dma.done [#allocation1], 16
    $region9: #{tile.13} parent=1 // pred_fallthru
      _
    %v18 = vld [vmem:[#allocation0] ss:$0 sm:$0xff]
    %19 = vst [vmem:[%s1] sm:$0xff] %v18
    %20 = vsyncpa [#allocation1], 1

// kernel: tile.1
$region0: #{tile.1}
  %s0 = inlined_call_operand.vmem [shape: f32[8,8], index: 0, kind: input, shape index: {}]
  %s1 = inlined_call_operand.vmem [shape: f32[64,1], index: 1, kind: output, shape index: {}]
  %v2 = vld [vmem:[%s0] sm:$0xff]
  %vm3 = vcmask 7168
  %4 = vst.msk [vmem:[%s1] ss:$8 sm:$0xf] %vm3, %v2
  %5 = vst.msk [vmem:[%s1] ss:$8 sm:$0xf0] %vm3, %v2
  %v6 = vld [vmem:[%s0] sm:$0xff]
  %7 = vrot.lane.b32.xlu0 %v6, 127
  %v8 = vpop.permute.xlu0 %7
  %vm9 = vcmask 7168
  %s10 = scalar_lea.vmem %s1, 1
  %11 = vst.msk [vmem:[%s10] ss:$8 sm:$0xf] %vm9, %v8
  %s12 = scalar_lea.vmem %s1, 1
  %13 = vst.msk [vmem:[%s12] ss:$8 sm:$0xf0] %vm9, %v8
  %v14 = vld [vmem:[%s0] sm:$0xff]
  %15 = vrot.lane.b32.xlu0 %v14, 126
  %v16 = vpop.permute.xlu0 %15
  %vm17 = vcmask 7168
  %s18 = scalar_lea.vmem %s1, 2
  %19 = vst.msk [vmem:[%s18] ss:$8 sm:$0xf] %vm17, %v16
  %s20 = scalar_lea.vmem %s1, 2
  %21 = vst.msk [vmem:[%s20] ss:$8 sm:$0xf0] %vm17, %v16
  %v22 = vld [vmem:[%s0] sm:$0xff]
  %23 = vrot.lane.b32.xlu0 %v22, 125
  %v24 = vpop.permute.xlu0 %23
  %vm25 = vcmask 7168
  %s26 = scalar_lea.vmem %s1, 3
  %27 = vst.msk [vmem:[%s26] ss:$8 sm:$0xf] %vm25, %v24
  %s28 = scalar_lea.vmem %s1, 3
  %29 = vst.msk [vmem:[%s28] ss:$8 sm:$0xf0] %vm25, %v24
  %v30 = vld [vmem:[%s0] sm:$0xff]
  %31 = vrot.lane.b32.xlu0 %v30, 124
  %v32 = vpop.permute.xlu0 %31
  %vm33 = vcmask 7168
  %s34 = scalar_lea.vmem %s1, 4
  %35 = vst.msk [vmem:[%s34] ss:$8 sm:$0xf] %vm33, %v32
  %s36 = scalar_lea.vmem %s1, 4
  %37 = vst.msk [vmem:[%s36] ss:$8 sm:$0xf0] %vm33, %v32
  %v38 = vld [vmem:[%s0] sm:$0xff]
  %39 = vrot.lane.b32.xlu0 %v38, 123
  %v40 = vpop.permute.xlu0 %39
  %vm41 = vcmask 7168
  %s42 = scalar_lea.vmem %s1, 5
  %43 = vst.msk [vmem:[%s42] ss:$8 sm:$0xf] %vm41, %v40
  %s44 = scalar_lea.vmem %s1, 5
  %45 = vst.msk [vmem:[%s44] ss:$8 sm:$0xf0] %vm41, %v40
  %v46 = vld [vmem:[%s0] sm:$0xff]
  %47 = vrot.lane.b32.xlu0 %v46, 122
  %v48 = vpop.permute.xlu0 %47
  %vm49 = vcmask 7168
  %s50 = scalar_lea.vmem %s1, 6
  %51 = vst.msk [vmem:[%s50] ss:$8 sm:$0xf] %vm49, %v48
  %s52 = scalar_lea.vmem %s1, 6
  %53 = vst.msk [vmem:[%s52] ss:$8 sm:$0xf0] %vm49, %v48
  %v54 = vld [vmem:[%s0] sm:$0xff]
  %55 = vrot.lane.b32.xlu0 %v54, 121
  %v56 = vpop.permute.xlu0 %55
  %vm57 = vcmask 7168
  %s58 = scalar_lea.vmem %s1, 7
  %59 = vst.msk [vmem:[%s58] ss:$8 sm:$0xf] %vm57, %v56
  %s60 = scalar_lea.vmem %s1, 7
  %61 = vst.msk [vmem:[%s60] ss:$8 sm:$0xf0] %vm57, %v56

// kernel: squeeze.34
$region0: #{squeeze.34}
  %s0 = inlined_call_operand.vmem [shape: f32[1,2,256], index: 0, kind: input, shape index: {}]
  %s1 = inlined_call_operand.vmem [shape: f32[2,4,4,4,4], index: 1, kind: output, shape index: {}]
  $region1: #{squeeze.34} parent=0
    #allocation0 [shape = 'u8[131072]{0}', space=vmem, size = 0x20000, scoped, tag = 'scoped mem for output reshape']
    #allocation1 [shape = 'u8[8192]{0}', space=vmem, size = 0x2000, scoped, tag = 'scoped mem for input reshape']
    %s3 = ssub.s32 4, 1
    %s4 = scalar_lea.vmem %s0, 2
    %v5 = vld [vmem:[%s4] sm:%s3]
    %s6 = scalar_lea.vmem [#allocation1], 8
    %7 = vst [vmem:[%s6] sm:%s3] %v5
    %v8 = vld [vmem:[%s0] sm:%s3]
    %9 = vst [vmem:[#allocation1] sm:%s3] %v8
    %v10 = vld [vmem:[#allocation1] sm:$0x3]
    %vm11 = vcmask 31744
    %12 = vst.msk [vmem:[#allocation0] sm:$0x1] %vm11, %v10
    %s13 = scalar_lea.vmem [#allocation0], 127
    %14 = vst.msk [vmem:[%s13] sm:$0x2] %vm11, %v10
    %s15 = scalar_lea.vmem [#allocation1], 8
    %v16 = vld [vmem:[%s15] sm:$0x3]
    %vm17 = vcmask 31744
    %s18 = scalar_lea.vmem [#allocation0], 64
    %19 = vst.msk [vmem:[%s18] sm:$0x1] %vm17, %v16
    %s20 = scalar_lea.vmem [#allocation0], 191
    %21 = vst.msk [vmem:[%s20] sm:$0x2] %vm17, %v16
    %v22 = vld.sshfl [vmem:[#allocation1] sm:$0xff pattern:$0x99999810]
    %23 = vrot.lane.b32.xlu0 %v22, 124
    %v24 = vpop.permute.xlu0 %23
    %vm25 = vcmask 31744
    %s26 = scalar_lea.vmem [#allocation0], 1
    %27 = vst.msk [vmem:[%s26] sm:$0x1] %vm25, %v24
    %s28 = scalar_lea.vmem [#allocation0], 128
    %29 = vst.msk [vmem:[%s28] sm:$0x2] %vm25, %v24
    %s30 = scalar_lea.vmem [#allocation0], 63
    %31 = vst.msk [vmem:[%s30] sm:$0x4] %vm25, %v24
    %s32 = scalar_lea.vmem [#allocation0], 190
    %33 = vst.msk [vmem:[%s32] sm:$0x8] %vm25, %v24
    %v34 = vld.sshfl [vmem:[#allocation1] sm:$0xff pattern:$0x99999810]
    %35 = vrot.lane.b32.xlu0 %v34, 120
    %v36 = vpop.permute.xlu0 %35
    %vm37 = vcmask 31744
    %s38 = scalar_lea.vmem [#allocation0], 2
    %39 = vst.msk [vmem:[%s38] sm:$0x1] %vm37, %v36
    %s40 = scalar_lea.vmem [#allocation0], 129
    %41 = vst.msk [vmem:[%s40] sm:$0x2] %vm37, %v36
    %s42 = scalar_lea.vmem [#allocation0], 64
    %43 = vst.msk [vmem:[%s42] sm:$0x4] %vm37, %v36
    %s44 = scalar_lea.vmem [#allocation0], 191
    %45 = vst.msk [vmem:[%s44] sm:$0x8] %vm37, %v36
    %v46 = vld.sshfl [vmem:[#allocation1] sm:$0xff pattern:$0x99999810]
    %47 = vrot.lane.b32.xlu0 %v46, 116
    %v48 = vpop.permute.xlu0 %47
    %vm49 = vcmask 31744
    %s50 = scalar_lea.vmem [#allocation0], 3
    %51 = vst.msk [vmem:[%s50] sm:$0x1] %vm49, %v48
    %s52 = scalar_lea.vmem [#allocation0], 130
    %53 = vst.msk [vmem:[%s52] sm:$0x2] %vm49, %v48
    %s54 = scalar_lea.vmem [#allocation0], 65
    %55 = vst.msk [vmem:[%s54] sm:$0x4] %vm49, %v48
    %s56 = scalar_lea.vmem [#allocation0], 192
    %57 = vst.msk [vmem:[%s56] sm:$0x8] %vm49, %v48
    %v58 = vld.sshfl [vmem:[#allocation1] sm:$0xff pattern:$0x99999810]
    %59 = vrot.lane.b32.xlu0 %v58, 112
    %v60 = vpop.permute.xlu0 %59
    %vm61 = vcmask 31744
    %s62 = scalar_lea.vmem [#allocation0], 8
    %63 = vst.msk [vmem:[%s62] sm:$0x1] %vm61, %v60
    %s64 = scalar_lea.vmem [#allocation0], 135
    %65 = vst.msk [vmem:[%s64] sm:$0x2] %vm61, %v60
    %s66 = scalar_lea.vmem [#allocation0], 70
    %67 = vst.msk [vmem:[%s66] sm:$0x4] %vm61, %v60
    %s68 = scalar_lea.vmem [#allocation0], 197
    %69 = vst.msk [vmem:[%s68] sm:$0x8] %vm61, %v60
    %v70 = vld.sshfl [vmem:[#allocation1] sm:$0xff pattern:$0x99999810]
    %71 = vrot.lane.b32.xlu0 %v70, 108
    %v72 = vpop.permute.xlu0 %71
    %vm73 = vcmask 31744
    %s74 = scalar_lea.vmem [#allocation0], 9
    %75 = vst.msk [vmem:[%s74] sm:$0x1] %vm73, %v72
    %s76 = scalar_lea.vmem [#allocation0], 136
    %77 = vst.msk [vmem:[%s76] sm:$0x2] %vm73, %v72
    %s78 = scalar_lea.vmem [#allocation0], 71
    %79 = vst.msk [vmem:[%s78] sm:$0x4] %vm73, %v72
    %s80 = scalar_lea.vmem [#allocation0], 198
    %81 = vst.msk [vmem:[%s80] sm:$0x8] %vm73, %v72
    %v82 = vld.sshfl [vmem:[#allocation1] sm:$0xff pattern:$0x99999810]
    %83 = vrot.lane.b32.xlu0 %v82, 104
    %v84 = vpop.permute.xlu0 %83
    %vm85 = vcmask 31744
    %s86 = scalar_lea.vmem [#allocation0], 10
    %87 = vst.msk [vmem:[%s86] sm:$0x1] %vm85, %v84
    %s88 = scalar_lea.vmem [#allocation0], 137
    %89 = vst.msk [vmem:[%s88] sm:$0x2] %vm85, %v84
    %s90 = scalar_lea.vmem [#allocation0], 72
    %91 = vst.msk [vmem:[%s90] sm:$0x4] %vm85, %v84
    %s92 = scalar_lea.vmem [#allocation0], 199
    %93 = vst.msk [vmem:[%s92] sm:$0x8] %vm85, %v84
    %v94 = vld.sshfl [vmem:[#allocation1] sm:$0xff pattern:$0x99999810]
    %95 = vrot.lane.b32.xlu0 %v94, 100
    %v96 = vpop.permute.xlu0 %95
    %vm97 = vcmask 31744
    %s98 = scalar_lea.vmem [#allocation0], 11
    %99 = vst.msk [vmem:[%s98] sm:$0x1] %vm97, %v96
    %s100 = scalar_lea.vmem [#allocation0], 138
    %101 = vst.msk [vmem:[%s100] sm:$0x2] %vm97, %v96
    %s102 = scalar_lea.vmem [#allocation0], 73
    %103 = vst.msk [vmem:[%s102] sm:$0x4] %vm97, %v96
    %s104 = scalar_lea.vmem [#allocation0], 200
    %105 = vst.msk [vmem:[%s104] sm:$0x8] %vm97, %v96
    %v106 = vld.sshfl [vmem:[#allocation1] sm:$0xff pattern:$0x99999810]
    %107 = vrot.lane.b32.xlu0 %v106, 96
    %v108 = vpop.permute.xlu0 %107
    %vm109 = vcmask 31744
    %s110 = scalar_lea.vmem [#allocation0], 16
    %111 = vst.msk [vmem:[%s110] sm:$0x1] %vm109, %v108
    %s112 = scalar_lea.vmem [#allocation0], 143
    %113 = vst.msk [vmem:[%s112] sm:$0x2] %vm109, %v108
    %s114 = scalar_lea.vmem [#allocation0], 78
    %115 = vst.msk [vmem:[%s114] sm:$0x4] %vm109, %v108
    %s116 = scalar_lea.vmem [#allocation0], 205
    %117 = vst.msk [vmem:[%s116] sm:$0x8] %vm109, %v108
    %v118 = vld.sshfl [vmem:[#allocation1] sm:$0xff pattern:$0x99999810]
    %119 = vrot.lane.b32.xlu0 %v118, 92
    %v120 = vpop.permute.xlu0 %119
    %vm121 = vcmask 31744
    %s122 = scalar_lea.vmem [#allocation0], 17
    %123 = vst.msk [vmem:[%s122] sm:$0x1] %vm121, %v120
    %s124 = scalar_lea.vmem [#allocation0], 144
    %125 = vst.msk [vmem:[%s124] sm:$0x2] %vm121, %v120
    %s126 = scalar_lea.vmem [#allocation0], 79
    %127 = vst.msk [vmem:[%s126] sm:$0x4] %vm121, %v120
    %s128 = scalar_lea.vmem [#allocation0], 206
    %129 = vst.msk [vmem:[%s128] sm:$0x8] %vm121, %v120
    %v130 = vld.sshfl [vmem:[#allocation1] sm:$0xff pattern:$0x99999810]
    %131 = vrot.lane.b32.xlu0 %v130, 88
    %v132 = vpop.permute.xlu0 %131
    %vm133 = vcmask 31744
    %s134 = scalar_lea.vmem [#allocation0], 18
    %135 = vst.msk [vmem:[%s134] sm:$0x1] %vm133, %v132
    %s136 = scalar_lea.vmem [#allocation0], 145
    %137 = vst.msk [vmem:[%s136] sm:$0x2] %vm133, %v132
    %s138 = scalar_lea.vmem [#allocation0], 80
    %139 = vst.msk [vmem:[%s138] sm:$0x4] %vm133, %v132
    %s140 = scalar_lea.vmem [#allocation0], 207
    %141 = vst.msk [vmem:[%s140] sm:$0x8] %vm133, %v132
    %v142 = vld.sshfl [vmem:[#allocation1] sm:$0xff pattern:$0x99999810]
    %143 = vrot.lane.b32.xlu0 %v142, 84
    %v144 = vpop.permute.xlu0 %143
    %vm145 = vcmask 31744
    %s146 = scalar_lea.vmem [#allocation0], 19
    %147 = vst.msk [vmem:[%s146] sm:$0x1] %vm145, %v144
    %s148 = scalar_lea.vmem [#allocation0], 146
    %149 = vst.msk [vmem:[%s148] sm:$0x2] %vm145, %v144
    %s150 = scalar_lea.vmem [#allocation0], 81
    %151 = vst.msk [vmem:[%s150] sm:$0x4] %vm145, %v144
    %s152 = scalar_lea.vmem [#allocation0], 208
    %153 = vst.msk [vmem:[%s152] sm:$0x8] %vm145, %v144
    %v154 = vld.sshfl [vmem:[#allocation1] sm:$0xff pattern:$0x99999810]
    %155 = vrot.lane.b32.xlu0 %v154, 80
    %v156 = vpop.permute.xlu0 %155
    %vm157 = vcmask 31744
    %s158 = scalar_lea.vmem [#allocation0], 24
    %159 = vst.msk [vmem:[%s158] sm:$0x1] %vm157, %v156
    %s160 = scalar_lea.vmem [#allocation0], 151
    %161 = vst.msk [vmem:[%s160] sm:$0x2] %vm157, %v156
    %s162 = scalar_lea.vmem [#allocation0], 86
    %163 = vst.msk [vmem:[%s162] sm:$0x4] %vm157, %v156
    %s164 = scalar_lea.vmem [#allocation0], 213
    %165 = vst.msk [vmem:[%s164] sm:$0x8] %vm157, %v156
    %v166 = vld.sshfl [vmem:[#allocation1] sm:$0xff pattern:$0x99999810]
    %167 = vrot.lane.b32.xlu0 %v166, 76
    %v168 = vpop.permute.xlu0 %167
    %vm169 = vcmask 31744
    %s170 = scalar_lea.vmem [#allocation0], 25
    %171 = vst.msk [vmem:[%s170] sm:$0x1] %vm169, %v168
    %s172 = scalar_lea.vmem [#allocation0], 152
    %173 = vst.msk [vmem:[%s172] sm:$0x2] %vm169, %v168
    %s174 = scalar_lea.vmem [#allocation0], 87
    %175 = vst.msk [vmem:[%s174] sm:$0x4] %vm169, %v168
    %s176 = scalar_lea.vmem [#allocation0], 214
    %177 = vst.msk [vmem:[%s176] sm:$0x8] %vm169, %v168
    %v178 = vld.sshfl [vmem:[#allocation1] sm:$0xff pattern:$0x99999810]
    %179 = vrot.lane.b32.xlu0 %v178, 72
    %v180 = vpop.permute.xlu0 %179
    %vm181 = vcmask 31744
    %s182 = scalar_lea.vmem [#allocation0], 26
    %183 = vst.msk [vmem:[%s182] sm:$0x1] %vm181, %v180
    %s184 = scalar_lea.vmem [#allocation0], 153
    %185 = vst.msk [vmem:[%s184] sm:$0x2] %vm181, %v180
    %s186 = scalar_lea.vmem [#allocation0], 88
    %187 = vst.msk [vmem:[%s186] sm:$0x4] %vm181, %v180
    %s188 = scalar_lea.vmem [#allocation0], 215
    %189 = vst.msk [vmem:[%s188] sm:$0x8] %vm181, %v180
    %v190 = vld.sshfl [vmem:[#allocation1] sm:$0xff pattern:$0x99999810]
    %191 = vrot.lane.b32.xlu0 %v190, 68
    %v192 = vpop.permute.xlu0 %191
    %vm193 = vcmask 31744
    %s194 = scalar_lea.vmem [#allocation0], 27
    %195 = vst.msk [vmem:[%s194] sm:$0x1] %vm193, %v192
    %s196 = scalar_lea.vmem [#allocation0], 154
    %197 = vst.msk [vmem:[%s196] sm:$0x2] %vm193, %v192
    %s198 = scalar_lea.vmem [#allocation0], 89
    %199 = vst.msk [vmem:[%s198] sm:$0x4] %vm193, %v192
    %s200 = scalar_lea.vmem [#allocation0], 216
    %201 = vst.msk [vmem:[%s200] sm:$0x8] %vm193, %v192
    %v202 = vld.sshfl [vmem:[#allocation1] sm:$0xff pattern:$0x99999810]
    %203 = vrot.lane.b32.xlu0 %v202, 64
    %v204 = vpop.permute.xlu0 %203
    %vm205 = vcmask 31744
    %s206 = scalar_lea.vmem [#allocation0], 32
    %207 = vst.msk [vmem:[%s206] sm:$0x1] %vm205, %v204
    %s208 = scalar_lea.vmem [#allocation0], 159
    %209 = vst.msk [vmem:[%s208] sm:$0x2] %vm205, %v204
    %s210 = scalar_lea.vmem [#allocation0], 94
    %211 = vst.msk [vmem:[%s210] sm:$0x4] %vm205, %v204
    %s212 = scalar_lea.vmem [#allocation0], 221
    %213 = vst.msk [vmem:[%s212] sm:$0x8] %vm205, %v204
    %v214 = vld.sshfl [vmem:[#allocation1] sm:$0xff pattern:$0x99999810]
    %215 = vrot.lane.b32.xlu0 %v214, 60
    %v216 = vpop.permute.xlu0 %215
    %vm217 = vcmask 31744
    %s218 = scalar_lea.vmem [#allocation0], 33
    %219 = vst.msk [vmem:[%s218] sm:$0x1] %vm217, %v216
    %s220 = scalar_lea.vmem [#allocation0], 160
    %221 = vst.msk [vmem:[%s220] sm:$0x2] %vm217, %v216
    %s222 = scalar_lea.vmem [#allocation0], 95
    %223 = vst.msk [vmem:[%s222] sm:$0x4] %vm217, %v216
    %s224 = scalar_lea.vmem [#allocation0], 222
    %225 = vst.msk [vmem:[%s224] sm:$0x8] %vm217, %v216
    %v226 = vld.sshfl [vmem:[#allocation1] sm:$0xff pattern:$0x99999810]
    %227 = vrot.lane.b32.xlu0 %v226, 56
    %v228 = vpop.permute.xlu0 %227
    %vm229 = vcmask 31744
    %s230 = scalar_lea.vmem [#allocation0], 34
    %231 = vst.msk [vmem:[%s230] sm:$0x1] %vm229, %v228
    %s232 = scalar_lea.vmem [#allocation0], 161
    %233 = vst.msk [vmem:[%s232] sm:$0x2] %vm229, %v228
    %s234 = scalar_lea.vmem [#allocation0], 96
    %235 = vst.msk [vmem:[%s234] sm:$0x4] %vm229, %v228
    %s236 = scalar_lea.vmem [#allocation0], 223
    %237 = vst.msk [vmem:[%s236] sm:$0x8] %vm229, %v228
    %v238 = vld.sshfl [vmem:[#allocation1] sm:$0xff pattern:$0x99999810]
    %239 = vrot.lane.b32.xlu0 %v238, 52
    %v240 = vpop.permute.xlu0 %239
    %vm241 = vcmask 31744
    %s242 = scalar_lea.vmem [#allocation0], 35
    %243 = vst.msk [vmem:[%s242] sm:$0x1] %vm241, %v240
    %s244 = scalar_lea.vmem [#allocation0], 162
    %245 = vst.msk [vmem:[%s244] sm:$0x2] %vm241, %v240
    %s246 = scalar_lea.vmem [#allocation0], 97
    %247 = vst.msk [vmem:[%s246] sm:$0x4] %vm241, %v240
    %s248 = scalar_lea.vmem [#allocation0], 224
    %249 = vst.msk [vmem:[%s248] sm:$0x8] %vm241, %v240
    %v250 = vld.sshfl [vmem:[#allocation1] sm:$0xff pattern:$0x99999810]
    %251 = vrot.lane.b32.xlu0 %v250, 48
    %v252 = vpop.permute.xlu0 %251
    %vm253 = vcmask 31744
    %s254 = scalar_lea.vmem [#allocation0], 40
    %255 = vst.msk [vmem:[%s254] sm:$0x1] %vm253, %v252
    %s256 = scalar_lea.vmem [#allocation0], 167
    %257 = vst.msk [vmem:[%s256] sm:$0x2] %vm253, %v252
    %s258 = scalar_lea.vmem [#allocation0], 102
    %259 = vst.msk [vmem:[%s258] sm:$0x4] %vm253, %v252
    %s260 = scalar_lea.vmem [#allocation0], 229
    %261 = vst.msk [vmem:[%s260] sm:$0x8] %vm253, %v252
    %v262 = vld.sshfl [vmem:[#allocation1] sm:$0xff pattern:$0x99999810]
    %263 = vrot.lane.b32.xlu0 %v262, 44
    %v264 = vpop.permute.xlu0 %263
    %vm265 = vcmask 31744
    %s266 = scalar_lea.vmem [#allocation0], 41
    %267 = vst.msk [vmem:[%s266] sm:$0x1] %vm265, %v264
    %s268 = scalar_lea.vmem [#allocation0], 168
    %269 = vst.msk [vmem:[%s268] sm:$0x2] %vm265, %v264
    %s270 = scalar_lea.vmem [#allocation0], 103
    %271 = vst.msk [vmem:[%s270] sm:$0x4] %vm265, %v264
    %s272 = scalar_lea.vmem [#allocation0], 230
    %273 = vst.msk [vmem:[%s272] sm:$0x8] %vm265, %v264
    %v274 = vld.sshfl [vmem:[#allocation1] sm:$0xff pattern:$0x99999810]
    %275 = vrot.lane.b32.xlu0 %v274, 40
    %v276 = vpop.permute.xlu0 %275
    %vm277 = vcmask 31744
    %s278 = scalar_lea.vmem [#allocation0], 42
    %279 = vst.msk [vmem:[%s278] sm:$0x1] %vm277, %v276
    %s280 = scalar_lea.vmem [#allocation0], 169
    %281 = vst.msk [vmem:[%s280] sm:$0x2] %vm277, %v276
    %s282 = scalar_lea.vmem [#allocation0], 104
    %283 = vst.msk [vmem:[%s282] sm:$0x4] %vm277, %v276
    %s284 = scalar_lea.vmem [#allocation0], 231
    %285 = vst.msk [vmem:[%s284] sm:$0x8] %vm277, %v276
    %v286 = vld.sshfl [vmem:[#allocation1] sm:$0xff pattern:$0x99999810]
    %287 = vrot.lane.b32.xlu0 %v286, 36
    %v288 = vpop.permute.xlu0 %287
    %vm289 = vcmask 31744
    %s290 = scalar_lea.vmem [#allocation0], 43
    %291 = vst.msk [vmem:[%s290] sm:$0x1] %vm289, %v288
    %s292 = scalar_lea.vmem [#allocation0], 170
    %293 = vst.msk [vmem:[%s292] sm:$0x2] %vm289, %v288
    %s294 = scalar_lea.vmem [#allocation0], 105
    %295 = vst.msk [vmem:[%s294] sm:$0x4] %vm289, %v288
    %s296 = scalar_lea.vmem [#allocation0], 232
    %297 = vst.msk [vmem:[%s296] sm:$0x8] %vm289, %v288
    %v298 = vld.sshfl [vmem:[#allocation1] sm:$0xff pattern:$0x99999810]
    %299 = vrot.lane.b32.xlu0 %v298, 32
    %v300 = vpop.permute.xlu0 %299
    %vm301 = vcmask 31744
    %s302 = scalar_lea.vmem [#allocation0], 48
    %303 = vst.msk [vmem:[%s302] sm:$0x1] %vm301, %v300
    %s304 = scalar_lea.vmem [#allocation0], 175
    %305 = vst.msk [vmem:[%s304] sm:$0x2] %vm301, %v300
    %s306 = scalar_lea.vmem [#allocation0], 110
    %307 = vst.msk [vmem:[%s306] sm:$0x4] %vm301, %v300
    %s308 = scalar_lea.vmem [#allocation0], 237
    %309 = vst.msk [vmem:[%s308] sm:$0x8] %vm301, %v300
    %v310 = vld.sshfl [vmem:[#allocation1] sm:$0xff pattern:$0x99999810]
    %311 = vrot.lane.b32.xlu0 %v310, 28
    %v312 = vpop.permute.xlu0 %311
    %vm313 = vcmask 31744
    %s314 = scalar_lea.vmem [#allocation0], 49
    %315 = vst.msk [vmem:[%s314] sm:$0x1] %vm313, %v312
    %s316 = scalar_lea.vmem [#allocation0], 176
    %317 = vst.msk [vmem:[%s316] sm:$0x2] %vm313, %v312
    %s318 = scalar_lea.vmem [#allocation0], 111
    %319 = vst.msk [vmem:[%s318] sm:$0x4] %vm313, %v312
    %s320 = scalar_lea.vmem [#allocation0], 238
    %321 = vst.msk [vmem:[%s320] sm:$0x8] %vm313, %v312
    %v322 = vld.sshfl [vmem:[#allocation1] sm:$0xff pattern:$0x99999810]
    %323 = vrot.lane.b32.xlu0 %v322, 24
    %v324 = vpop.permute.xlu0 %323
    %vm325 = vcmask 31744
    %s326 = scalar_lea.vmem [#allocation0], 50
    %327 = vst.msk [vmem:[%s326] sm:$0x1] %vm325, %v324
    %s328 = scalar_lea.vmem [#allocation0], 177
    %329 = vst.msk [vmem:[%s328] sm:$0x2] %vm325, %v324
    %s330 = scalar_lea.vmem [#allocation0], 112
    %331 = vst.msk [vmem:[%s330] sm:$0x4] %vm325, %v324
    %s332 = scalar_lea.vmem [#allocation0], 239
    %333 = vst.msk [vmem:[%s332] sm:$0x8] %vm325, %v324
    %v334 = vld.sshfl [vmem:[#allocation1] sm:$0xff pattern:$0x99999810]
    %335 = vrot.lane.b32.xlu0 %v334, 20
    %v336 = vpop.permute.xlu0 %335
    %vm337 = vcmask 31744
    %s338 = scalar_lea.vmem [#allocation0], 51
    %339 = vst.msk [vmem:[%s338] sm:$0x1] %vm337, %v336
    %s340 = scalar_lea.vmem [#allocation0], 178
    %341 = vst.msk [vmem:[%s340] sm:$0x2] %vm337, %v336
    %s342 = scalar_lea.vmem [#allocation0], 113
    %343 = vst.msk [vmem:[%s342] sm:$0x4] %vm337, %v336
    %s344 = scalar_lea.vmem [#allocation0], 240
    %345 = vst.msk [vmem:[%s344] sm:$0x8] %vm337, %v336
    %v346 = vld.sshfl [vmem:[#allocation1] sm:$0xff pattern:$0x99999810]
    %347 = vrot.lane.b32.xlu0 %v346, 16
    %v348 = vpop.permute.xlu0 %347
    %vm349 = vcmask 31744
    %s350 = scalar_lea.vmem [#allocation0], 56
    %351 = vst.msk [vmem:[%s350] sm:$0x1] %vm349, %v348
    %s352 = scalar_lea.vmem [#allocation0], 183
    %353 = vst.msk [vmem:[%s352] sm:$0x2] %vm349, %v348
    %s354 = scalar_lea.vmem [#allocation0], 118
    %355 = vst.msk [vmem:[%s354] sm:$0x4] %vm349, %v348
    %s356 = scalar_lea.vmem [#allocation0], 245
    %357 = vst.msk [vmem:[%s356] sm:$0x8] %vm349, %v348
    %v358 = vld.sshfl [vmem:[#allocation1] sm:$0xff pattern:$0x99999810]
    %359 = vrot.lane.b32.xlu0 %v358, 12
    %v360 = vpop.permute.xlu0 %359
    %vm361 = vcmask 31744
    %s362 = scalar_lea.vmem [#allocation0], 57
    %363 = vst.msk [vmem:[%s362] sm:$0x1] %vm361, %v360
    %s364 = scalar_lea.vmem [#allocation0], 184
    %365 = vst.msk [vmem:[%s364] sm:$0x2] %vm361, %v360
    %s366 = scalar_lea.vmem [#allocation0], 119
    %367 = vst.msk [vmem:[%s366] sm:$0x4] %vm361, %v360
    %s368 = scalar_lea.vmem [#allocation0], 246
    %369 = vst.msk [vmem:[%s368] sm:$0x8] %vm361, %v360
    %v370 = vld.sshfl [vmem:[#allocation1] sm:$0xff pattern:$0x99999810]
    %371 = vrot.lane.b32.xlu0 %v370, 8
    %v372 = vpop.permute.xlu0 %371
    %vm373 = vcmask 31744
    %s374 = scalar_lea.vmem [#allocation0], 58
    %375 = vst.msk [vmem:[%s374] sm:$0x1] %vm373, %v372
    %s376 = scalar_lea.vmem [#allocation0], 185
    %377 = vst.msk [vmem:[%s376] sm:$0x2] %vm373, %v372
    %s378 = scalar_lea.vmem [#allocation0], 120
    %379 = vst.msk [vmem:[%s378] sm:$0x4] %vm373, %v372
    %s380 = scalar_lea.vmem [#allocation0], 247
    %381 = vst.msk [vmem:[%s380] sm:$0x8] %vm373, %v372
    %v382 = vld.sshfl [vmem:[#allocation1] sm:$0xff pattern:$0x99999810]
    %383 = vrot.lane.b32.xlu0 %v382, 4
    %v384 = vpop.permute.xlu0 %383
    %vm385 = vcmask 31744
    %s386 = scalar_lea.vmem [#allocation0], 59
    %387 = vst.msk [vmem:[%s386] sm:$0x1] %vm385, %v384
    %s388 = scalar_lea.vmem [#allocation0], 186
    %389 = vst.msk [vmem:[%s388] sm:$0x2] %vm385, %v384
    %s390 = scalar_lea.vmem [#allocation0], 121
    %391 = vst.msk [vmem:[%s390] sm:$0x4] %vm385, %v384
    %s392 = scalar_lea.vmem [#allocation0], 248
    %393 = vst.msk [vmem:[%s392] sm:$0x8] %vm385, %v384
    %s395 = ssub.s32 16, 1
    %v396 = vld [vmem:[#allocation0] sm:%s395]
    %s398 = ssub.s32 16, 1
    %399 = vst [vmem:[%s1] sm:%s398] %v396
    %s400 = scalar_lea.vmem [#allocation0], 8
    %v401 = vld [vmem:[%s400] sm:%s395]
    %s403 = ssub.s32 16, 1
    %s404 = scalar_lea.vmem %s1, 4
    %405 = vst [vmem:[%s404] sm:%s403] %v401
    %s406 = scalar_lea.vmem [#allocation0], 16
    %v407 = vld [vmem:[%s406] sm:%s395]
    %s409 = ssub.s32 16, 1
    %s410 = scalar_lea.vmem %s1, 8
    %411 = vst [vmem:[%s410] sm:%s409] %v407
    %s412 = scalar_lea.vmem [#allocation0], 24
    %v413 = vld [vmem:[%s412] sm:%s395]
    %s415 = ssub.s32 16, 1
    %s416 = scalar_lea.vmem %s1, 12
    %417 = vst [vmem:[%s416] sm:%s415] %v413
    %s418 = scalar_lea.vmem [#allocation0], 32
    %v419 = vld [vmem:[%s418] sm:%s395]
    %s421 = ssub.s32 16, 1
    %s422 = scalar_lea.vmem %s1, 16
    %423 = vst [vmem:[%s422] sm:%s421] %v419
    %s424 = scalar_lea.vmem [#allocation0], 40
    %v425 = vld [vmem:[%s424] sm:%s395]
    %s427 = ssub.s32 16, 1
    %s428 = scalar_lea.vmem %s1, 20
    %429 = vst [vmem:[%s428] sm:%s427] %v425
    %s430 = scalar_lea.vmem [#allocation0], 48
    %v431 = vld [vmem:[%s430] sm:%s395]
    %s433 = ssub.s32 16, 1
    %s434 = scalar_lea.vmem %s1, 24
    %435 = vst [vmem:[%s434] sm:%s433] %v431
    %s436 = scalar_lea.vmem [#allocation0], 56
    %v437 = vld [vmem:[%s436] sm:%s395]
    %s439 = ssub.s32 16, 1
    %s440 = scalar_lea.vmem %s1, 28
    %441 = vst [vmem:[%s440] sm:%s439] %v437
    %s442 = scalar_lea.vmem [#allocation0], 64
    %v443 = vld [vmem:[%s442] sm:%s395]
    %s445 = ssub.s32 16, 1
    %s446 = scalar_lea.vmem %s1, 32
    %447 = vst [vmem:[%s446] sm:%s445] %v443
    %s448 = scalar_lea.vmem [#allocation0], 72
    %v449 = vld [vmem:[%s448] sm:%s395]
    %s451 = ssub.s32 16, 1
    %s452 = scalar_lea.vmem %s1, 36
    %453 = vst [vmem:[%s452] sm:%s451] %v449
    %s454 = scalar_lea.vmem [#allocation0], 80
    %v455 = vld [vmem:[%s454] sm:%s395]
    %s457 = ssub.s32 16, 1
    %s458 = scalar_lea.vmem %s1, 40
    %459 = vst [vmem:[%s458] sm:%s457] %v455
    %s460 = scalar_lea.vmem [#allocation0], 88
    %v461 = vld [vmem:[%s460] sm:%s395]
    %s463 = ssub.s32 16, 1
    %s464 = scalar_lea.vmem %s1, 44
    %465 = vst [vmem:[%s464] sm:%s463] %v461
    %s466 = scalar_lea.vmem [#allocation0], 96
    %v467 = vld [vmem:[%s466] sm:%s395]
    %s469 = ssub.s32 16, 1
    %s470 = scalar_lea.vmem %s1, 48
    %471 = vst [vmem:[%s470] sm:%s469] %v467
    %s472 = scalar_lea.vmem [#allocation0], 104
    %v473 = vld [vmem:[%s472] sm:%s395]
    %s475 = ssub.s32 16, 1
    %s476 = scalar_lea.vmem %s1, 52
    %477 = vst [vmem:[%s476] sm:%s475] %v473
    %s478 = scalar_lea.vmem [#allocation0], 112
    %v479 = vld [vmem:[%s478] sm:%s395]
    %s481 = ssub.s32 16, 1
    %s482 = scalar_lea.vmem %s1, 56
    %483 = vst [vmem:[%s482] sm:%s481] %v479
    %s484 = scalar_lea.vmem [#allocation0], 120
    %v485 = vld [vmem:[%s484] sm:%s395]
    %s487 = ssub.s32 16, 1
    %s488 = scalar_lea.vmem %s1, 60
    %489 = vst [vmem:[%s488] sm:%s487] %v485
    %s490 = scalar_lea.vmem [#allocation0], 128
    %v491 = vld [vmem:[%s490] sm:%s395]
    %s493 = ssub.s32 16, 1
    %s494 = scalar_lea.vmem %s1, 64
    %495 = vst [vmem:[%s494] sm:%s493] %v491
    %s496 = scalar_lea.vmem [#allocation0], 136
    %v497 = vld [vmem:[%s496] sm:%s395]
    %s499 = ssub.s32 16, 1
    %s500 = scalar_lea.vmem %s1, 68
    %501 = vst [vmem:[%s500] sm:%s499] %v497
    %s502 = scalar_lea.vmem [#allocation0], 144
    %v503 = vld [vmem:[%s502] sm:%s395]
    %s505 = ssub.s32 16, 1
    %s506 = scalar_lea.vmem %s1, 72
    %507 = vst [vmem:[%s506] sm:%s505] %v503
    %s508 = scalar_lea.vmem [#allocation0], 152
    %v509 = vld [vmem:[%s508] sm:%s395]
    %s511 = ssub.s32 16, 1
    %s512 = scalar_lea.vmem %s1, 76
    %513 = vst [vmem:[%s512] sm:%s511] %v509
    %s514 = scalar_lea.vmem [#allocation0], 160
    %v515 = vld [vmem:[%s514] sm:%s395]
    %s517 = ssub.s32 16, 1
    %s518 = scalar_lea.vmem %s1, 80
    %519 = vst [vmem:[%s518] sm:%s517] %v515
    %s520 = scalar_lea.vmem [#allocation0], 168
    %v521 = vld [vmem:[%s520] sm:%s395]
    %s523 = ssub.s32 16, 1
    %s524 = scalar_lea.vmem %s1, 84
    %525 = vst [vmem:[%s524] sm:%s523] %v521
    %s526 = scalar_lea.vmem [#allocation0], 176
    %v527 = vld [vmem:[%s526] sm:%s395]
    %s529 = ssub.s32 16, 1
    %s530 = scalar_lea.vmem %s1, 88
    %531 = vst [vmem:[%s530] sm:%s529] %v527
    %s532 = scalar_lea.vmem [#allocation0], 184
    %v533 = vld [vmem:[%s532] sm:%s395]
    %s535 = ssub.s32 16, 1
    %s536 = scalar_lea.vmem %s1, 92
    %537 = vst [vmem:[%s536] sm:%s535] %v533
    %s538 = scalar_lea.vmem [#allocation0], 192
    %v539 = vld [vmem:[%s538] sm:%s395]
    %s541 = ssub.s32 16, 1
    %s542 = scalar_lea.vmem %s1, 96
    %543 = vst [vmem:[%s542] sm:%s541] %v539
    %s544 = scalar_lea.vmem [#allocation0], 200
    %v545 = vld [vmem:[%s544] sm:%s395]
    %s547 = ssub.s32 16, 1
    %s548 = scalar_lea.vmem %s1, 100
    %549 = vst [vmem:[%s548] sm:%s547] %v545
    %s550 = scalar_lea.vmem [#allocation0], 208
    %v551 = vld [vmem:[%s550] sm:%s395]
    %s553 = ssub.s32 16, 1
    %s554 = scalar_lea.vmem %s1, 104
    %555 = vst [vmem:[%s554] sm:%s553] %v551
    %s556 = scalar_lea.vmem [#allocation0], 216
    %v557 = vld [vmem:[%s556] sm:%s395]
    %s559 = ssub.s32 16, 1
    %s560 = scalar_lea.vmem %s1, 108
    %561 = vst [vmem:[%s560] sm:%s559] %v557
    %s562 = scalar_lea.vmem [#allocation0], 224
    %v563 = vld [vmem:[%s562] sm:%s395]
    %s565 = ssub.s32 16, 1
    %s566 = scalar_lea.vmem %s1, 112
    %567 = vst [vmem:[%s566] sm:%s565] %v563
    %s568 = scalar_lea.vmem [#allocation0], 232
    %v569 = vld [vmem:[%s568] sm:%s395]
    %s571 = ssub.s32 16, 1
    %s572 = scalar_lea.vmem %s1, 116
    %573 = vst [vmem:[%s572] sm:%s571] %v569
    %s574 = scalar_lea.vmem [#allocation0], 240
    %v575 = vld [vmem:[%s574] sm:%s395]
    %s577 = ssub.s32 16, 1
    %s578 = scalar_lea.vmem %s1, 120
    %579 = vst [vmem:[%s578] sm:%s577] %v575
    %s580 = scalar_lea.vmem [#allocation0], 248
    %v581 = vld [vmem:[%s580] sm:%s395]
    %s583 = ssub.s32 16, 1
    %s584 = scalar_lea.vmem %s1, 124
    %585 = vst [vmem:[%s584] sm:%s583] %v581

// kernel: jigsaw_block_forward.6
$region0: #{jigsaw_block_forward.6}
  #allocation0 [shape = 'u32[]', space=smem, size = 0x4, offset = 0x4, fixed_abs, tag = 'smem constant byte address 0x4 - core index']
  #allocation1 [shape = 'u32[72,128]{1,0:T(1,128)}', space=vmem, size = 0x9000, scoped, tag = 'internal scratch']
  %s0 = inlined_call_operand.vmem [shape: f32[4,2,6], index: 0, kind: input, shape index: {}]
  %s1 = inlined_call_operand.vmem [shape: f32[4,6,256], index: 1, kind: input, shape index: {}]
  %s2 = inlined_call_operand.hbm [shape: f32[4,1,6], index: 2, kind: input, shape index: {}]
  %s3 = inlined_call_operand.vmem [shape: f32[4,1,256], index: 3, kind: input, shape index: {}]
  %s4 = inlined_call_operand.vmem [shape: f32[4,2,256], index: 4, kind: output, shape index: {}]
  %s5 = sld [smem:[#allocation0]]
  $region30: #{jigsaw_block_forward.6} parent=0
    _
  %s7 = ssub.s32 1, %s5
  %s8 = scalar_select 0, %s7, %s5
  $region1: #{jigsaw_block_forward.6} parent=0
    #allocation2 [shape = 'u8[2048]{0}', space=vmem, size = 0x800, scoped, tag = 'input window, operand 2, single buffered']
    #allocation3 [shape = 's32[1]{0}', space=sflag, size = 0x4, scoped, tag = 'scoped memory for jigsaw_block_forward.6']
    %9 = vsyncpa [#allocation3], 0
    // Predicated region
    $region2: #{jigsaw_block_forward.6} parent=1 // pred_check
      _
    $region3: #{jigsaw_block_forward.6} parent=1 // pred_check_branch
      %11 = sbr.rel (0) target = $region5
    $region4: #{jigsaw_block_forward.6} parent=1 // pred_region
      _
    $region5: #{jigsaw_block_forward.6} parent=1 // pred_fallthru
      _
    // Predicated region
    $region6: #{jigsaw_block_forward.6} parent=1 // pred_check
      _
    $region7: #{jigsaw_block_forward.6} parent=1 // pred_check_branch
      %13 = sbr.rel (0) target = $region9
    $region8: #{jigsaw_block_forward.6} parent=1 // pred_region
      _
    $region9: #{jigsaw_block_forward.6} parent=1 // pred_fallthru
      _
    // Predicated region
    $region10: #{jigsaw_block_forward.6} parent=1 // pred_check
      _
    $region11: #{jigsaw_block_forward.6} parent=1 // pred_check_branch
      %15 = sbr.rel (0) target = $region13
    $region12: #{jigsaw_block_forward.6} parent=1 // pred_region
      %17 = vsyncadd [#allocation3], 0
      %s18 = sshll.u32 %s2, 4
      %s19 = int_to_ptr.hbm [resolvable:$true] %s18
      %s20 = sshll.u32 [#allocation2], 4
      %s21 = int_to_ptr.vmem [resolvable:$true] %s20
      %26 = dma.hbm_to_vmem [thread:$0]  %s19, 64, %s21, [#allocation3], 16, 16, 1
    $region13: #{jigsaw_block_forward.6} parent=1 // pred_fallthru
      _
    // Predicated region
    $region14: #{jigsaw_block_forward.6} parent=1 // pred_check
      _
    $region15: #{jigsaw_block_forward.6} parent=1 // pred_check_branch
      %28 = sbr.rel (0) target = $region17
    $region16: #{jigsaw_block_forward.6} parent=1 // pred_region
      _
    $region17: #{jigsaw_block_forward.6} parent=1 // pred_fallthru
      _
    // Predicated region
    $region18: #{jigsaw_block_forward.6} parent=1 // pred_check
      _
    $region19: #{jigsaw_block_forward.6} parent=1 // pred_check_branch
      %30 = sbr.rel (0) target = $region21
    $region20: #{jigsaw_block_forward.6} parent=1 // pred_region
      %32 = dma.done [#allocation3], 64
    $region21: #{jigsaw_block_forward.6} parent=1 // pred_fallthru
      _
    %v33 = vld [vmem:[%s0] sm:$0x3]
    %v34 = vld [vmem:[#allocation2] sm:$0x1]
    %v36 = vperm.slane %v34, 0
    %v38 = vmul.f32 %v33, %v36
    %v39 = vld [vmem:[%s1] sm:$0x3f]
    %v40 = vld [vmem:[%s1 + $0x8] sm:$0x3f]
    %v41 = vld [vmem:[%s3] sm:$0x3]
    %v43 = vperm.slane %v41, 0
    %v44 = vperm.slane %v41, 1
    %vm47 = vcmask 48128
    %v49 = vsel %vm47, %v38, 0
    %vm51 = vcmask 1045504
    %v53 = vsel %vm51, %v39, 0
    %v56 = vsel %vm51, %v40, 0
    %58 = vmatpush.msra.mxu0 0.0
    %59 = vmatpush.msra.mxu0 0.0
    %60 = vmatpush.msra.mxu0 0.0
    %61 = vmatpush.msra.mxu0 0.0
    %62 = vmatpush.msra.mxu0 0.0
    %63 = vmatpush.msra.mxu0 0.0
    %64 = vmatpush.msra.mxu0 0.0
    %65 = vmatpush.msra.mxu0 0.0
    %66 = vmatpush.msra.mxu0 0.0
    %67 = vmatpush.msra.mxu0 0.0
    %68 = vmatpush.msra.mxu0 0.0
    %69 = vmatpush.msra.mxu0 0.0
    %70 = vmatpush.msra.mxu0 0.0
    %71 = vmatpush.msra.mxu0 0.0
    %72 = vmatpush.msra.mxu0 0.0
    %73 = vmatpush.msra.mxu0 %v53
    %74 = vmatmul.f32.gmra.mxu0 %v49
    %v75 = vpop.f32.mrf.mxu0
    %v76 = vadd.f32 %v43, %v75
    %77 = vdwg.mxu0
    %78 = vmatpush.msra.mxu0 0.0
    %79 = vmatpush.msra.mxu0 0.0
    %80 = vmatpush.msra.mxu0 0.0
    %81 = vmatpush.msra.mxu0 0.0
    %82 = vmatpush.msra.mxu0 0.0
    %83 = vmatpush.msra.mxu0 0.0
    %84 = vmatpush.msra.mxu0 0.0
    %85 = vmatpush.msra.mxu0 0.0
    %86 = vmatpush.msra.mxu0 0.0
    %87 = vmatpush.msra.mxu0 0.0
    %88 = vmatpush.msra.mxu0 0.0
    %89 = vmatpush.msra.mxu0 0.0
    %90 = vmatpush.msra.mxu0 0.0
    %91 = vmatpush.msra.mxu0 0.0
    %92 = vmatpush.msra.mxu0 0.0
    %93 = vmatpush.msra.mxu0 %v56
    %94 = vmatmul.f32.gmra.mxu0 %v49
    %v95 = vpop.f32.mrf.mxu0
    %v96 = vadd.f32 %v44, %v95
    %97 = vdwg.mxu0
    %v100 = vrot.slane %v96, 6
    %vm101 = vcmask 1041408
    %v102 = vsel %vm101, %v76, %v100
    %104 = vst [vmem:[%s4] sm:$0xf] %v102
    %s105 = scalar_lea.vmem %s0, 2
    %v106 = vld [vmem:[%s105] sm:$0x3]
    %s107 = scalar_lea.vmem [#allocation2], 1
    %v108 = vld [vmem:[%s107] sm:$0x1]
    %v110 = vperm.slane %v108, 0
    %v112 = vmul.f32 %v106, %v110
    %s113 = scalar_lea.vmem %s1, 16
    %v114 = vld [vmem:[%s113] sm:$0x3f]
    %v115 = vld [vmem:[%s113 + $0x8] sm:$0x3f]
    %s116 = scalar_lea.vmem %s3, 2
    %v117 = vld [vmem:[%s116] sm:$0x3]
    %v119 = vperm.slane %v117, 0
    %v120 = vperm.slane %v117, 1
    %v124 = vsel %vm47, %v112, 0
    %v127 = vsel %vm51, %v114, 0
    %v130 = vsel %vm51, %v115, 0
    %132 = vmatpush.msra.mxu0 0.0
    %133 = vmatpush.msra.mxu0 0.0
    %134 = vmatpush.msra.mxu0 0.0
    %135 = vmatpush.msra.mxu0 0.0
    %136 = vmatpush.msra.mxu0 0.0
    %137 = vmatpush.msra.mxu0 0.0
    %138 = vmatpush.msra.mxu0 0.0
    %139 = vmatpush.msra.mxu0 0.0
    %140 = vmatpush.msra.mxu0 0.0
    %141 = vmatpush.msra.mxu0 0.0
    %142 = vmatpush.msra.mxu0 0.0
    %143 = vmatpush.msra.mxu0 0.0
    %144 = vmatpush.msra.mxu0 0.0
    %145 = vmatpush.msra.mxu0 0.0
    %146 = vmatpush.msra.mxu0 0.0
    %147 = vmatpush.msra.mxu0 %v127
    %148 = vmatmul.f32.gmra.mxu0 %v124
    %v149 = vpop.f32.mrf.mxu0
    %v150 = vadd.f32 %v119, %v149
    %151 = vdwg.mxu0
    %152 = vmatpush.msra.mxu0 0.0
    %153 = vmatpush.msra.mxu0 0.0
    %154 = vmatpush.msra.mxu0 0.0
    %155 = vmatpush.msra.mxu0 0.0
    %156 = vmatpush.msra.mxu0 0.0
    %157 = vmatpush.msra.mxu0 0.0
    %158 = vmatpush.msra.mxu0 0.0
    %159 = vmatpush.msra.mxu0 0.0
    %160 = vmatpush.msra.mxu0 0.0
    %161 = vmatpush.msra.mxu0 0.0
    %162 = vmatpush.msra.mxu0 0.0
    %163 = vmatpush.msra.mxu0 0.0
    %164 = vmatpush.msra.mxu0 0.0
    %165 = vmatpush.msra.mxu0 0.0
    %166 = vmatpush.msra.mxu0 0.0
    %167 = vmatpush.msra.mxu0 %v130
    %168 = vmatmul.f32.gmra.mxu0 %v124
    %v169 = vpop.f32.mrf.mxu0
    %v170 = vadd.f32 %v120, %v169
    %171 = vdwg.mxu0
    %v174 = vrot.slane %v170, 6
    %v175 = vsel %vm101, %v150, %v174
    %s177 = scalar_lea.vmem %s4, 4
    %178 = vst [vmem:[%s177] sm:$0xf] %v175
    %s179 = scalar_lea.vmem %s0, 4
    %v180 = vld [vmem:[%s179] sm:$0x3]
    %s181 = scalar_lea.vmem [#allocation2], 2
    %v182 = vld [vmem:[%s181] sm:$0x1]
    %v184 = vperm.slane %v182, 0
    %v186 = vmul.f32 %v180, %v184
    %s187 = scalar_lea.vmem %s1, 32
    %v188 = vld [vmem:[%s187] sm:$0x3f]
    %v189 = vld [vmem:[%s187 + $0x8] sm:$0x3f]
    %s190 = scalar_lea.vmem %s3, 4
    %v191 = vld [vmem:[%s190] sm:$0x3]
    %v193 = vperm.slane %v191, 0
    %v194 = vperm.slane %v191, 1
    %v198 = vsel %vm47, %v186, 0
    %v201 = vsel %vm51, %v188, 0
    %v204 = vsel %vm51, %v189, 0
    %206 = vmatpush.msra.mxu0 0.0
    %207 = vmatpush.msra.mxu0 0.0
    %208 = vmatpush.msra.mxu0 0.0
    %209 = vmatpush.msra.mxu0 0.0
    %210 = vmatpush.msra.mxu0 0.0
    %211 = vmatpush.msra.mxu0 0.0
    %212 = vmatpush.msra.mxu0 0.0
    %213 = vmatpush.msra.mxu0 0.0
    %214 = vmatpush.msra.mxu0 0.0
    %215 = vmatpush.msra.mxu0 0.0
    %216 = vmatpush.msra.mxu0 0.0
    %217 = vmatpush.msra.mxu0 0.0
    %218 = vmatpush.msra.mxu0 0.0
    %219 = vmatpush.msra.mxu0 0.0
    %220 = vmatpush.msra.mxu0 0.0
    %221 = vmatpush.msra.mxu0 %v201
    %222 = vmatmul.f32.gmra.mxu0 %v198
    %v223 = vpop.f32.mrf.mxu0
    %v224 = vadd.f32 %v193, %v223
    %225 = vdwg.mxu0
    %226 = vmatpush.msra.mxu0 0.0
    %227 = vmatpush.msra.mxu0 0.0
    %228 = vmatpush.msra.mxu0 0.0
    %229 = vmatpush.msra.mxu0 0.0
    %230 = vmatpush.msra.mxu0 0.0
    %231 = vmatpush.msra.mxu0 0.0
    %232 = vmatpush.msra.mxu0 0.0
    %233 = vmatpush.msra.mxu0 0.0
    %234 = vmatpush.msra.mxu0 0.0
    %235 = vmatpush.msra.mxu0 0.0
    %236 = vmatpush.msra.mxu0 0.0
    %237 = vmatpush.msra.mxu0 0.0
    %238 = vmatpush.msra.mxu0 0.0
    %239 = vmatpush.msra.mxu0 0.0
    %240 = vmatpush.msra.mxu0 0.0
    %241 = vmatpush.msra.mxu0 %v204
    %242 = vmatmul.f32.gmra.mxu0 %v198
    %v243 = vpop.f32.mrf.mxu0
    %v244 = vadd.f32 %v194, %v243
    %245 = vdwg.mxu0
    %v248 = vrot.slane %v244, 6
    %v249 = vsel %vm101, %v224, %v248
    %s251 = scalar_lea.vmem %s4, 8
    %252 = vst [vmem:[%s251] sm:$0xf] %v249
    %s253 = scalar_lea.vmem %s0, 6
    %v254 = vld [vmem:[%s253] sm:$0x3]
    %s255 = scalar_lea.vmem [#allocation2], 3
    %v256 = vld [vmem:[%s255] sm:$0x1]
    %v258 = vperm.slane %v256, 0
    %v260 = vmul.f32 %v254, %v258
    %s261 = scalar_lea.vmem %s1, 48
    %v262 = vld [vmem:[%s261] sm:$0x3f]
    %v263 = vld [vmem:[%s261 + $0x8] sm:$0x3f]
    %s264 = scalar_lea.vmem %s3, 6
    %v265 = vld [vmem:[%s264] sm:$0x3]
    %v267 = vperm.slane %v265, 0
    %v268 = vperm.slane %v265, 1
    %v272 = vsel %vm47, %v260, 0
    %v275 = vsel %vm51, %v262, 0
    %v278 = vsel %vm51, %v263, 0
    %280 = vmatpush.msra.mxu0 0.0
    %281 = vmatpush.msra.mxu0 0.0
    %282 = vmatpush.msra.mxu0 0.0
    %283 = vmatpush.msra.mxu0 0.0
    %284 = vmatpush.msra.mxu0 0.0
    %285 = vmatpush.msra.mxu0 0.0
    %286 = vmatpush.msra.mxu0 0.0
    %287 = vmatpush.msra.mxu0 0.0
    %288 = vmatpush.msra.mxu0 0.0
    %289 = vmatpush.msra.mxu0 0.0
    %290 = vmatpush.msra.mxu0 0.0
    %291 = vmatpush.msra.mxu0 0.0
    %292 = vmatpush.msra.mxu0 0.0
    %293 = vmatpush.msra.mxu0 0.0
    %294 = vmatpush.msra.mxu0 0.0
    %295 = vmatpush.msra.mxu0 %v275
    %296 = vmatmul.f32.gmra.mxu0 %v272
    %v297 = vpop.f32.mrf.mxu0
    %v298 = vadd.f32 %v267, %v297
    %299 = vdwg.mxu0
    %300 = vmatpush.msra.mxu0 0.0
    %301 = vmatpush.msra.mxu0 0.0
    %302 = vmatpush.msra.mxu0 0.0
    %303 = vmatpush.msra.mxu0 0.0
    %304 = vmatpush.msra.mxu0 0.0
    %305 = vmatpush.msra.mxu0 0.0
    %306 = vmatpush.msra.mxu0 0.0
    %307 = vmatpush.msra.mxu0 0.0
    %308 = vmatpush.msra.mxu0 0.0
    %309 = vmatpush.msra.mxu0 0.0
    %310 = vmatpush.msra.mxu0 0.0
    %311 = vmatpush.msra.mxu0 0.0
    %312 = vmatpush.msra.mxu0 0.0
    %313 = vmatpush.msra.mxu0 0.0
    %314 = vmatpush.msra.mxu0 0.0
    %315 = vmatpush.msra.mxu0 %v278
    %316 = vmatmul.f32.gmra.mxu0 %v272
    %v317 = vpop.f32.mrf.mxu0
    %v318 = vadd.f32 %v268, %v317
    %319 = vdwg.mxu0
    %v322 = vrot.slane %v318, 6
    %v323 = vsel %vm101, %v298, %v322
    %s325 = scalar_lea.vmem %s4, 12
    %326 = vst [vmem:[%s325] sm:$0xf] %v323
    // Predicated region
    $region22: #{jigsaw_block_forward.6} parent=1 // pred_check
      _
    $region23: #{jigsaw_block_forward.6} parent=1 // pred_check_branch
      %328 = sbr.rel (0) target = $region25
    $region24: #{jigsaw_block_forward.6} parent=1 // pred_region
      _
    $region25: #{jigsaw_block_forward.6} parent=1 // pred_fallthru
      _
    // Predicated region
    $region26: #{jigsaw_block_forward.6} parent=1 // pred_check
      _
    $region27: #{jigsaw_block_forward.6} parent=1 // pred_check_branch
      %330 = sbr.rel (0) target = $region29
    $region28: #{jigsaw_block_forward.6} parent=1 // pred_region
      _
    $region29: #{jigsaw_block_forward.6} parent=1 // pred_fallthru
      _
    %331 = vsyncpa [#allocation3], 1

// kernel: jigsaw_block_forward.7
$region0: #{jigsaw_block_forward.7}
  #allocation0 [shape = 'u32[]', space=smem, size = 0x4, offset = 0x4, fixed_abs, tag = 'smem constant byte address 0x4 - core index']
  #allocation1 [shape = 'u32[72,128]{1,0:T(1,128)}', space=vmem, size = 0x9000, scoped, tag = 'internal scratch']
  %s0 = inlined_call_operand.vmem [shape: f32[4,1024], index: 0, kind: input, shape index: {}]
  %s1 = inlined_call_operand.vmem [shape: f32[4,1024], index: 1, kind: input, shape index: {}]
  %s2 = inlined_call_operand.vmem [shape: f32[4,4], index: 2, kind: input, shape index: {}]
  %s3 = inlined_call_operand.vmem [shape: f32[4,1], index: 3, kind: input, shape index: {}]
  %s4 = inlined_call_operand.vmem [shape: f32[4,1], index: 4, kind: input, shape index: {}]
  %s5 = inlined_call_operand.vmem [shape: f32[4,1], index: 5, kind: input, shape index: {}]
  %s6 = inlined_call_operand.vmem [shape: f32[4,1024], index: 6, kind: output, shape index: {}]
  %s7 = sld [smem:[#allocation0]]
  $region34: #{jigsaw_block_forward.7} parent=0
    _
  %s9 = ssub.s32 1, %s7
  %s10 = scalar_select 0, %s9, %s7
  // Predicated region
  $region2: #{jigsaw_block_forward.7} parent=0 // pred_check
    _
  $region3: #{jigsaw_block_forward.7} parent=0 // pred_check_branch
    %12 = sbr.rel (0) target = $region5
  $region4: #{jigsaw_block_forward.7} parent=0 // pred_region
    _
  $region5: #{jigsaw_block_forward.7} parent=0 // pred_fallthru
    _
  // Predicated region
  $region6: #{jigsaw_block_forward.7} parent=0 // pred_check
    _
  $region7: #{jigsaw_block_forward.7} parent=0 // pred_check_branch
    %14 = sbr.rel (0) target = $region9
  $region8: #{jigsaw_block_forward.7} parent=0 // pred_region
    _
  $region9: #{jigsaw_block_forward.7} parent=0 // pred_fallthru
    _
  // Predicated region
  $region10: #{jigsaw_block_forward.7} parent=0 // pred_check
    _
  $region11: #{jigsaw_block_forward.7} parent=0 // pred_check_branch
    %16 = sbr.rel (0) target = $region13
  $region12: #{jigsaw_block_forward.7} parent=0 // pred_region
    _
  $region13: #{jigsaw_block_forward.7} parent=0 // pred_fallthru
    _
  // Predicated region
  $region14: #{jigsaw_block_forward.7} parent=0 // pred_check
    _
  $region15: #{jigsaw_block_forward.7} parent=0 // pred_check_branch
    %18 = sbr.rel (0) target = $region17
  $region16: #{jigsaw_block_forward.7} parent=0 // pred_region
    _
  $region17: #{jigsaw_block_forward.7} parent=0 // pred_fallthru
    _
  // Predicated region
  $region18: #{jigsaw_block_forward.7} parent=0 // pred_check
    _
  $region19: #{jigsaw_block_forward.7} parent=0 // pred_check_branch
    %20 = sbr.rel (0) target = $region21
  $region20: #{jigsaw_block_forward.7} parent=0 // pred_region
    _
  $region21: #{jigsaw_block_forward.7} parent=0 // pred_fallthru
    _
  // Predicated region
  $region22: #{jigsaw_block_forward.7} parent=0 // pred_check
    _
  $region23: #{jigsaw_block_forward.7} parent=0 // pred_check_branch
    %22 = sbr.rel (0) target = $region25
  $region24: #{jigsaw_block_forward.7} parent=0 // pred_region
    _
  $region25: #{jigsaw_block_forward.7} parent=0 // pred_fallthru
    _
  %v23 = vld [vmem:[%s2] sm:$0xf]
  %v24 = vld [vmem:[%s0] sm:$0xff]
  %v25 = vld [vmem:[%s0 + $0x8] sm:$0xff]
  %v26 = vld [vmem:[%s0 + $0x10] sm:$0xff]
  %v27 = vld [vmem:[%s0 + $0x18] sm:$0xff]
  %v28 = vld [vmem:[%s3] sm:$0xf]
  %30 = vset.pattern.permute.xlu0 0
  %31 = vperm.xlu0 %30, %v28
  %v32 = vpop.permute.xlu0 %31
  %38 = vst [vmem:[#allocation1] ss:$2 sm:$0xff] %v24
  %s39 = scalar_lea.vmem [#allocation1], 16
  %40 = vst [vmem:[%s39] ss:$2 sm:$0xff] %v25
  %s41 = scalar_lea.vmem [#allocation1], 32
  %42 = vst [vmem:[%s41] ss:$2 sm:$0xff] %v26
  %s43 = scalar_lea.vmem [#allocation1], 48
  %44 = vst [vmem:[%s43] ss:$2 sm:$0xff] %v27
  %v45 = vld.sshfl [vmem:[#allocation1] sm:$0xff pattern:$0x75316420]
  %v46 = vld.sshfl [vmem:[#allocation1 + $0x8] sm:$0xff pattern:$0x75316420]
  %v47 = vld.sshfl [vmem:[#allocation1 + $0x10] sm:$0xff pattern:$0x75316420]
  %v48 = vld.sshfl [vmem:[#allocation1 + $0x18] sm:$0xff pattern:$0x75316420]
  %v49 = vld.sshfl [vmem:[#allocation1 + $0x20] sm:$0xff pattern:$0x75316420]
  %v50 = vld.sshfl [vmem:[#allocation1 + $0x28] sm:$0xff pattern:$0x75316420]
  %v51 = vld.sshfl [vmem:[#allocation1 + $0x30] sm:$0xff pattern:$0x75316420]
  %v52 = vld.sshfl [vmem:[#allocation1 + $0x38] sm:$0xff pattern:$0x75316420]
  %vm53 = vcmask 31744
  %v55 = vsel %vm53, %v23, 0
  %vm57 = vcmask 1043456
  %v58 = vsel %vm57, %v45, 0
  %v60 = vsel %vm57, %v46, 0
  %v62 = vsel %vm57, %v47, 0
  %v64 = vsel %vm57, %v48, 0
  %v66 = vsel %vm57, %v49, 0
  %v68 = vsel %vm57, %v50, 0
  %v70 = vsel %vm57, %v51, 0
  %v72 = vsel %vm57, %v52, 0
  %74 = vmatpush.msra.mxu0 0.0
  %75 = vmatpush.msra.mxu0 0.0
  %76 = vmatpush.msra.mxu0 0.0
  %77 = vmatpush.msra.mxu0 0.0
  %78 = vmatpush.msra.mxu0 0.0
  %79 = vmatpush.msra.mxu0 0.0
  %80 = vmatpush.msra.mxu0 0.0
  %81 = vmatpush.msra.mxu0 0.0
  %82 = vmatpush.msra.mxu0 0.0
  %83 = vmatpush.msra.mxu0 0.0
  %84 = vmatpush.msra.mxu0 0.0
  %85 = vmatpush.msra.mxu0 0.0
  %86 = vmatpush.msra.mxu0 0.0
  %87 = vmatpush.msra.mxu0 0.0
  %88 = vmatpush.msra.mxu0 0.0
  %89 = vmatpush.msra.mxu0 %v58
  %90 = vmatmul.f32.gmra.mxu0 %v55
  %v91 = vpop.f32.mrf.mxu0
  %v92 = vadd.f32 %v32, %v91
  %93 = vdwg.mxu0
  %94 = vmatpush.msra.mxu0 0.0
  %95 = vmatpush.msra.mxu0 0.0
  %96 = vmatpush.msra.mxu0 0.0
  %97 = vmatpush.msra.mxu0 0.0
  %98 = vmatpush.msra.mxu0 0.0
  %99 = vmatpush.msra.mxu0 0.0
  %100 = vmatpush.msra.mxu0 0.0
  %101 = vmatpush.msra.mxu0 0.0
  %102 = vmatpush.msra.mxu0 0.0
  %103 = vmatpush.msra.mxu0 0.0
  %104 = vmatpush.msra.mxu0 0.0
  %105 = vmatpush.msra.mxu0 0.0
  %106 = vmatpush.msra.mxu0 0.0
  %107 = vmatpush.msra.mxu0 0.0
  %108 = vmatpush.msra.mxu0 0.0
  %109 = vmatpush.msra.mxu0 %v60
  %110 = vmatmul.f32.gmra.mxu0 %v55
  %v111 = vpop.f32.mrf.mxu0
  %v112 = vadd.f32 %v32, %v111
  %113 = vdwg.mxu0
  %114 = vmatpush.msra.mxu0 0.0
  %115 = vmatpush.msra.mxu0 0.0
  %116 = vmatpush.msra.mxu0 0.0
  %117 = vmatpush.msra.mxu0 0.0
  %118 = vmatpush.msra.mxu0 0.0
  %119 = vmatpush.msra.mxu0 0.0
  %120 = vmatpush.msra.mxu0 0.0
  %121 = vmatpush.msra.mxu0 0.0
  %122 = vmatpush.msra.mxu0 0.0
  %123 = vmatpush.msra.mxu0 0.0
  %124 = vmatpush.msra.mxu0 0.0
  %125 = vmatpush.msra.mxu0 0.0
  %126 = vmatpush.msra.mxu0 0.0
  %127 = vmatpush.msra.mxu0 0.0
  %128 = vmatpush.msra.mxu0 0.0
  %129 = vmatpush.msra.mxu0 %v62
  %130 = vmatmul.f32.gmra.mxu0 %v55
  %v131 = vpop.f32.mrf.mxu0
  %v132 = vadd.f32 %v32, %v131
  %133 = vdwg.mxu0
  %134 = vmatpush.msra.mxu0 0.0
  %135 = vmatpush.msra.mxu0 0.0
  %136 = vmatpush.msra.mxu0 0.0
  %137 = vmatpush.msra.mxu0 0.0
  %138 = vmatpush.msra.mxu0 0.0
  %139 = vmatpush.msra.mxu0 0.0
  %140 = vmatpush.msra.mxu0 0.0
  %141 = vmatpush.msra.mxu0 0.0
  %142 = vmatpush.msra.mxu0 0.0
  %143 = vmatpush.msra.mxu0 0.0
  %144 = vmatpush.msra.mxu0 0.0
  %145 = vmatpush.msra.mxu0 0.0
  %146 = vmatpush.msra.mxu0 0.0
  %147 = vmatpush.msra.mxu0 0.0
  %148 = vmatpush.msra.mxu0 0.0
  %149 = vmatpush.msra.mxu0 %v64
  %150 = vmatmul.f32.gmra.mxu0 %v55
  %v151 = vpop.f32.mrf.mxu0
  %v152 = vadd.f32 %v32, %v151
  %153 = vdwg.mxu0
  %154 = vmatpush.msra.mxu0 0.0
  %155 = vmatpush.msra.mxu0 0.0
  %156 = vmatpush.msra.mxu0 0.0
  %157 = vmatpush.msra.mxu0 0.0
  %158 = vmatpush.msra.mxu0 0.0
  %159 = vmatpush.msra.mxu0 0.0
  %160 = vmatpush.msra.mxu0 0.0
  %161 = vmatpush.msra.mxu0 0.0
  %162 = vmatpush.msra.mxu0 0.0
  %163 = vmatpush.msra.mxu0 0.0
  %164 = vmatpush.msra.mxu0 0.0
  %165 = vmatpush.msra.mxu0 0.0
  %166 = vmatpush.msra.mxu0 0.0
  %167 = vmatpush.msra.mxu0 0.0
  %168 = vmatpush.msra.mxu0 0.0
  %169 = vmatpush.msra.mxu0 %v66
  %170 = vmatmul.f32.gmra.mxu0 %v55
  %v171 = vpop.f32.mrf.mxu0
  %v172 = vadd.f32 %v32, %v171
  %173 = vdwg.mxu0
  %174 = vmatpush.msra.mxu0 0.0
  %175 = vmatpush.msra.mxu0 0.0
  %176 = vmatpush.msra.mxu0 0.0
  %177 = vmatpush.msra.mxu0 0.0
  %178 = vmatpush.msra.mxu0 0.0
  %179 = vmatpush.msra.mxu0 0.0
  %180 = vmatpush.msra.mxu0 0.0
  %181 = vmatpush.msra.mxu0 0.0
  %182 = vmatpush.msra.mxu0 0.0
  %183 = vmatpush.msra.mxu0 0.0
  %184 = vmatpush.msra.mxu0 0.0
  %185 = vmatpush.msra.mxu0 0.0
  %186 = vmatpush.msra.mxu0 0.0
  %187 = vmatpush.msra.mxu0 0.0
  %188 = vmatpush.msra.mxu0 0.0
  %189 = vmatpush.msra.mxu0 %v68
  %190 = vmatmul.f32.gmra.mxu0 %v55
  %v191 = vpop.f32.mrf.mxu0
  %v192 = vadd.f32 %v32, %v191
  %193 = vdwg.mxu0
  %194 = vmatpush.msra.mxu0 0.0
  %195 = vmatpush.msra.mxu0 0.0
  %196 = vmatpush.msra.mxu0 0.0
  %197 = vmatpush.msra.mxu0 0.0
  %198 = vmatpush.msra.mxu0 0.0
  %199 = vmatpush.msra.mxu0 0.0
  %200 = vmatpush.msra.mxu0 0.0
  %201 = vmatpush.msra.mxu0 0.0
  %202 = vmatpush.msra.mxu0 0.0
  %203 = vmatpush.msra.mxu0 0.0
  %204 = vmatpush.msra.mxu0 0.0
  %205 = vmatpush.msra.mxu0 0.0
  %206 = vmatpush.msra.mxu0 0.0
  %207 = vmatpush.msra.mxu0 0.0
  %208 = vmatpush.msra.mxu0 0.0
  %209 = vmatpush.msra.mxu0 %v70
  %210 = vmatmul.f32.gmra.mxu0 %v55
  %v211 = vpop.f32.mrf.mxu0
  %v212 = vadd.f32 %v32, %v211
  %213 = vdwg.mxu0
  %214 = vmatpush.msra.mxu0 0.0
  %215 = vmatpush.msra.mxu0 0.0
  %216 = vmatpush.msra.mxu0 0.0
  %217 = vmatpush.msra.mxu0 0.0
  %218 = vmatpush.msra.mxu0 0.0
  %219 = vmatpush.msra.mxu0 0.0
  %220 = vmatpush.msra.mxu0 0.0
  %221 = vmatpush.msra.mxu0 0.0
  %222 = vmatpush.msra.mxu0 0.0
  %223 = vmatpush.msra.mxu0 0.0
  %224 = vmatpush.msra.mxu0 0.0
  %225 = vmatpush.msra.mxu0 0.0
  %226 = vmatpush.msra.mxu0 0.0
  %227 = vmatpush.msra.mxu0 0.0
  %228 = vmatpush.msra.mxu0 0.0
  %229 = vmatpush.msra.mxu0 %v72
  %230 = vmatmul.f32.gmra.mxu0 %v55
  %v231 = vpop.f32.mrf.mxu0
  %v232 = vadd.f32 %v32, %v231
  %233 = vdwg.mxu0
  %v234 = vld [vmem:[%s1] sm:$0xff]
  %v235 = vld [vmem:[%s1 + $0x8] sm:$0xff]
  %v236 = vld [vmem:[%s1 + $0x10] sm:$0xff]
  %v237 = vld [vmem:[%s1 + $0x18] sm:$0xff]
  %v246 = vrot.slane %v112, 4
  %v247 = vrot.slane %v152, 4
  %v248 = vrot.slane %v192, 4
  %v249 = vrot.slane %v232, 4
  %v250 = vsel %vm57, %v92, %v246
  %v251 = vsel %vm57, %v132, %v247
  %v252 = vsel %vm57, %v172, %v248
  %v253 = vsel %vm57, %v212, %v249
  %v258 = vadd.f32 %v234, %v250
  %v259 = vadd.f32 %v235, %v251
  %v260 = vadd.f32 %v236, %v252
  %v261 = vadd.f32 %v237, %v253
  %v262 = vld [vmem:[%s4] sm:$0xf]
  %v263 = vld [vmem:[%s5] sm:$0xf]
  %268 = vst [vmem:[#allocation1] ss:$2 sm:$0xff] %v258
  %s269 = scalar_lea.vmem [#allocation1], 16
  %270 = vst [vmem:[%s269] ss:$2 sm:$0xff] %v259
  %s271 = scalar_lea.vmem [#allocation1], 32
  %272 = vst [vmem:[%s271] ss:$2 sm:$0xff] %v260
  %s273 = scalar_lea.vmem [#allocation1], 48
  %274 = vst [vmem:[%s273] ss:$2 sm:$0xff] %v261
  %v275 = vld.sshfl [vmem:[#allocation1] sm:$0xff pattern:$0x75316420]
  %v276 = vld.sshfl [vmem:[#allocation1 + $0x8] sm:$0xff pattern:$0x75316420]
  %v277 = vld.sshfl [vmem:[#allocation1 + $0x10] sm:$0xff pattern:$0x75316420]
  %v278 = vld.sshfl [vmem:[#allocation1 + $0x18] sm:$0xff pattern:$0x75316420]
  %v279 = vld.sshfl [vmem:[#allocation1 + $0x20] sm:$0xff pattern:$0x75316420]
  %v280 = vld.sshfl [vmem:[#allocation1 + $0x28] sm:$0xff pattern:$0x75316420]
  %v281 = vld.sshfl [vmem:[#allocation1 + $0x30] sm:$0xff pattern:$0x75316420]
  %v282 = vld.sshfl [vmem:[#allocation1 + $0x38] sm:$0xff pattern:$0x75316420]
  %v291 = vsel %vm57, %v275, 0.0
  %v292 = vsel %vm57, %v276, 0.0
  %v293 = vadd.f32 %v291, %v292
  %v294 = vsel %vm57, %v277, 0.0
  %v295 = vadd.f32 %v293, %v294
  %v296 = vsel %vm57, %v278, 0.0
  %v297 = vadd.f32 %v295, %v296
  %v298 = vsel %vm57, %v279, 0.0
  %v299 = vadd.f32 %v297, %v298
  %v300 = vsel %vm57, %v280, 0.0
  %v301 = vadd.f32 %v299, %v300
  %v302 = vsel %vm57, %v281, 0.0
  %v303 = vadd.f32 %v301, %v302
  %v304 = vsel %vm57, %v282, 0.0
  %v305 = vadd.f32 %v303, %v304
  %306 = vadd.xlane.f32.xlu0 %v305
  %v307 = vpop.xlane.xlu0 %306
  %v308 = vmul.f32 %v307, 0.0009765625
  %v311 = vunpack.c.l.s4 839922192
  %v312 = vunpack.c.0.s8 %v311
  %v313 = vperm.slane %v308, %v312
  %v315 = vsub.f32 %v258, %v313
  %v316 = vsub.f32 %v259, %v313
  %v317 = vsub.f32 %v260, %v313
  %v318 = vsub.f32 %v261, %v313
  %v319 = vmul.f32 %v315, %v315
  %v320 = vmul.f32 %v316, %v316
  %v321 = vmul.f32 %v317, %v317
  %v322 = vmul.f32 %v318, %v318
  %327 = vst [vmem:[#allocation1] ss:$2 sm:$0xff] %v319
  %s328 = scalar_lea.vmem [#allocation1], 16
  %329 = vst [vmem:[%s328] ss:$2 sm:$0xff] %v320
  %s330 = scalar_lea.vmem [#allocation1], 32
  %331 = vst [vmem:[%s330] ss:$2 sm:$0xff] %v321
  %s332 = scalar_lea.vmem [#allocation1], 48
  %333 = vst [vmem:[%s332] ss:$2 sm:$0xff] %v322
  %v334 = vld.sshfl [vmem:[#allocation1] sm:$0xff pattern:$0x75316420]
  %v335 = vld.sshfl [vmem:[#allocation1 + $0x8] sm:$0xff pattern:$0x75316420]
  %v336 = vld.sshfl [vmem:[#allocation1 + $0x10] sm:$0xff pattern:$0x75316420]
  %v337 = vld.sshfl [vmem:[#allocation1 + $0x18] sm:$0xff pattern:$0x75316420]
  %v338 = vld.sshfl [vmem:[#allocation1 + $0x20] sm:$0xff pattern:$0x75316420]
  %v339 = vld.sshfl [vmem:[#allocation1 + $0x28] sm:$0xff pattern:$0x75316420]
  %v340 = vld.sshfl [vmem:[#allocation1 + $0x30] sm:$0xff pattern:$0x75316420]
  %v341 = vld.sshfl [vmem:[#allocation1 + $0x38] sm:$0xff pattern:$0x75316420]
  %v350 = vsel %vm57, %v334, 0.0
  %v351 = vsel %vm57, %v335, 0.0
  %v352 = vadd.f32 %v350, %v351
  %v353 = vsel %vm57, %v336, 0.0
  %v354 = vadd.f32 %v352, %v353
  %v355 = vsel %vm57, %v337, 0.0
  %v356 = vadd.f32 %v354, %v355
  %v357 = vsel %vm57, %v338, 0.0
  %v358 = vadd.f32 %v356, %v357
  %v359 = vsel %vm57, %v339, 0.0
  %v360 = vadd.f32 %v358, %v359
  %v361 = vsel %vm57, %v340, 0.0
  %v362 = vadd.f32 %v360, %v361
  %v363 = vsel %vm57, %v341, 0.0
  %v364 = vadd.f32 %v362, %v363
  %365 = vadd.xlane.f32.xlu0 %v364
  %v366 = vpop.xlane.xlu0 %365
  %v367 = vmul.f32 %v366, 0.0009765625
  %v368 = vadd.f32 %v367, 1e-05
  %v369 = vrsqrt.pop %v368
  %v370 = vmul.f32 %v369, %v368
  %v371 = vmul.f32 %v370, %v369
  %v372 = vmul.f32 0.5, %v371
  %v373 = vsub.f32 1.5, %v372
  %v374 = vmul.f32 %v369, %v373
  %vm375 = vweird.f32 %v368
  %vm376 = vweird.f32 %v369
  %vm377 = vmor %vm375, %vm376
  %v378 = vsel %vm377, %v369, %v374
  %v381 = vunpack.c.l.s4 839922192
  %v382 = vunpack.c.0.s8 %v381
  %v383 = vperm.slane %v378, %v382
  %v385 = vmul.f32 %v315, %v383
  %v386 = vmul.f32 %v316, %v383
  %v387 = vmul.f32 %v317, %v383
  %v388 = vmul.f32 %v318, %v383
  %390 = vset.pattern.permute.xlu0 0
  %391 = vperm.xlu0 %390, %v262
  %v392 = vpop.permute.xlu0 %391
  %v394 = vunpack.c.l.s4 839922192
  %v395 = vunpack.c.0.s8 %v394
  %v396 = vperm.slane %v392, %v395
  %v398 = vmul.f32 %v385, %v396
  %v399 = vmul.f32 %v386, %v396
  %v400 = vmul.f32 %v387, %v396
  %v401 = vmul.f32 %v388, %v396
  %403 = vset.pattern.permute.xlu0 0
  %404 = vperm.xlu0 %403, %v263
  %v405 = vpop.permute.xlu0 %404
  %v407 = vunpack.c.l.s4 839922192
  %v408 = vunpack.c.0.s8 %v407
  %v409 = vperm.slane %v405, %v408
  %v411 = vadd.f32 %v398, %v409
  %v412 = vadd.f32 %v399, %v409
  %v413 = vadd.f32 %v400, %v409
  %v414 = vadd.f32 %v401, %v409
  %vm415 = vcmp.gt.f32.partialorder %v411, 0.0
  %vm416 = vcmp.gt.f32.partialorder %v412, 0.0
  %vm417 = vcmp.gt.f32.partialorder %v413, 0.0
  %vm418 = vcmp.gt.f32.partialorder %v414, 0.0
  %v419 = vmul.f32 %v411, 0.2
  %v420 = vmul.f32 %v412, 0.2
  %v421 = vmul.f32 %v413, 0.2
  %v422 = vmul.f32 %v414, 0.2
  %v423 = vsel %vm415, %v411, %v419
  %v424 = vsel %vm416, %v412, %v420
  %v425 = vsel %vm417, %v413, %v421
  %v426 = vsel %vm418, %v414, %v422
  %427 = vst [vmem:[%s6] sm:$0xff] %v423
  %428 = vst [vmem:[%s6 + $0x8] sm:$0xff] %v424
  %429 = vst [vmem:[%s6 + $0x10] sm:$0xff] %v425
  %430 = vst [vmem:[%s6 + $0x18] sm:$0xff] %v426
  // Predicated region
  $region26: #{jigsaw_block_forward.7} parent=0 // pred_check
    _
  $region27: #{jigsaw_block_forward.7} parent=0 // pred_check_branch
    %432 = sbr.rel (0) target = $region29
  $region28: #{jigsaw_block_forward.7} parent=0 // pred_region
    _
  $region29: #{jigsaw_block_forward.7} parent=0 // pred_fallthru
    _
  // Predicated region
  $region30: #{jigsaw_block_forward.7} parent=0 // pred_check
    _
  $region31: #{jigsaw_block_forward.7} parent=0 // pred_check_branch
    %434 = sbr.rel (0) target = $region33
  $region32: #{jigsaw_block_forward.7} parent=0 // pred_region
    _
  $region33: #{jigsaw_block_forward.7} parent=0 // pred_fallthru
    _

// kernel: jigsaw_block_forward.8
$region0: #{jigsaw_block_forward.8}
  #allocation0 [shape = 'u32[]', space=smem, size = 0x4, offset = 0x4, fixed_abs, tag = 'smem constant byte address 0x4 - core index']
  #allocation1 [shape = 'u32[72,128]{1,0:T(1,128)}', space=vmem, size = 0x9000, scoped, tag = 'internal scratch']
  %s0 = inlined_call_operand.vmem [shape: f32[64,32], index: 0, kind: input, shape index: {}]
  %s1 = inlined_call_operand.vmem [shape: f32[32,1024], index: 1, kind: input, shape index: {}]
  %s2 = inlined_call_operand.vmem [shape: f32[64,1], index: 2, kind: input, shape index: {}]
  %s3 = inlined_call_operand.vmem [shape: f32[64,1024], index: 3, kind: output, shape index: {}]
  %s4 = sld [smem:[#allocation0]]
  $region22: #{jigsaw_block_forward.8} parent=0
    _
  %s6 = ssub.s32 1, %s4
  %s7 = scalar_select 0, %s6, %s4
  // Predicated region
  $region2: #{jigsaw_block_forward.8} parent=0 // pred_check
    _
  $region3: #{jigsaw_block_forward.8} parent=0 // pred_check_branch
    %9 = sbr.rel (0) target = $region5
  $region4: #{jigsaw_block_forward.8} parent=0 // pred_region
    _
  $region5: #{jigsaw_block_forward.8} parent=0 // pred_fallthru
    _
  // Predicated region
  $region6: #{jigsaw_block_forward.8} parent=0 // pred_check
    _
  $region7: #{jigsaw_block_forward.8} parent=0 // pred_check_branch
    %11 = sbr.rel (0) target = $region9
  $region8: #{jigsaw_block_forward.8} parent=0 // pred_region
    _
  $region9: #{jigsaw_block_forward.8} parent=0 // pred_fallthru
    _
  // Predicated region
  $region10: #{jigsaw_block_forward.8} parent=0 // pred_check
    _
  $region11: #{jigsaw_block_forward.8} parent=0 // pred_check_branch
    %13 = sbr.rel (0) target = $region13
  $region12: #{jigsaw_block_forward.8} parent=0 // pred_region
    _
  $region13: #{jigsaw_block_forward.8} parent=0 // pred_fallthru
    _
  %v14 = vld [vmem:[%s0] sm:$0xff]
  %v15 = vld [vmem:[%s0 + $0x8] sm:$0xff]
  %v16 = vld [vmem:[%s0 + $0x10] sm:$0xff]
  %v17 = vld [vmem:[%s0 + $0x18] sm:$0xff]
  %v18 = vld [vmem:[%s0 + $0x20] sm:$0xff]
  %v19 = vld [vmem:[%s0 + $0x28] sm:$0xff]
  %v20 = vld [vmem:[%s0 + $0x30] sm:$0xff]
  %v21 = vld [vmem:[%s0 + $0x38] sm:$0xff]
  %v22 = vld [vmem:[%s1] sm:$0xff]
  %v23 = vld [vmem:[%s1 + $0x8] sm:$0xff]
  %v24 = vld [vmem:[%s1 + $0x10] sm:$0xff]
  %v25 = vld [vmem:[%s1 + $0x18] sm:$0xff]
  %v26 = vld [vmem:[%s1 + $0x20] sm:$0xff]
  %v27 = vld [vmem:[%s1 + $0x28] sm:$0xff]
  %v28 = vld [vmem:[%s1 + $0x30] sm:$0xff]
  %v29 = vld [vmem:[%s1 + $0x38] sm:$0xff]
  %v30 = vld [vmem:[%s1 + $0x40] sm:$0xff]
  %v31 = vld [vmem:[%s1 + $0x48] sm:$0xff]
  %v32 = vld [vmem:[%s1 + $0x50] sm:$0xff]
  %v33 = vld [vmem:[%s1 + $0x58] sm:$0xff]
  %v34 = vld [vmem:[%s1 + $0x60] sm:$0xff]
  %v35 = vld [vmem:[%s1 + $0x68] sm:$0xff]
  %v36 = vld [vmem:[%s1 + $0x70] sm:$0xff]
  %v37 = vld [vmem:[%s1 + $0x78] sm:$0xff]
  %v38 = vld [vmem:[%s1 + $0x80] sm:$0xff]
  %v39 = vld [vmem:[%s1 + $0x88] sm:$0xff]
  %v40 = vld [vmem:[%s1 + $0x90] sm:$0xff]
  %v41 = vld [vmem:[%s1 + $0x98] sm:$0xff]
  %v42 = vld [vmem:[%s1 + $0xa0] sm:$0xff]
  %v43 = vld [vmem:[%s1 + $0xa8] sm:$0xff]
  %v44 = vld [vmem:[%s1 + $0xb0] sm:$0xff]
  %v45 = vld [vmem:[%s1 + $0xb8] sm:$0xff]
  %v46 = vld [vmem:[%s1 + $0xc0] sm:$0xff]
  %v47 = vld [vmem:[%s1 + $0xc8] sm:$0xff]
  %v48 = vld [vmem:[%s1 + $0xd0] sm:$0xff]
  %v49 = vld [vmem:[%s1 + $0xd8] sm:$0xff]
  %v50 = vld [vmem:[%s1 + $0xe0] sm:$0xff]
  %v51 = vld [vmem:[%s1 + $0xe8] sm:$0xff]
  %v52 = vld [vmem:[%s1 + $0xf0] sm:$0xff]
  %v53 = vld [vmem:[%s1 + $0xf8] sm:$0xff]
  %v54 = vld [vmem:[%s2] sm:$0xff]
  %v55 = vld [vmem:[%s2 + $0x8] sm:$0xff]
  %v56 = vld [vmem:[%s2 + $0x10] sm:$0xff]
  %v57 = vld [vmem:[%s2 + $0x18] sm:$0xff]
  %v58 = vld [vmem:[%s2 + $0x20] sm:$0xff]
  %v59 = vld [vmem:[%s2 + $0x28] sm:$0xff]
  %v60 = vld [vmem:[%s2 + $0x30] sm:$0xff]
  %v61 = vld [vmem:[%s2 + $0x38] sm:$0xff]
  %63 = vset.pattern.permute.xlu0 0
  %64 = vperm.xlu0 %63, %v54
  %v65 = vpop.permute.xlu0 %64
  %68 = vset.pattern.permute.xlu0 0
  %69 = vperm.xlu0 %68, %v55
  %v70 = vpop.permute.xlu0 %69
  %73 = vset.pattern.permute.xlu0 0
  %74 = vperm.xlu0 %73, %v56
  %v75 = vpop.permute.xlu0 %74
  %78 = vset.pattern.permute.xlu0 0
  %79 = vperm.xlu0 %78, %v57
  %v80 = vpop.permute.xlu0 %79
  %83 = vset.pattern.permute.xlu0 0
  %84 = vperm.xlu0 %83, %v58
  %v85 = vpop.permute.xlu0 %84
  %88 = vset.pattern.permute.xlu0 0
  %89 = vperm.xlu0 %88, %v59
  %v90 = vpop.permute.xlu0 %89
  %93 = vset.pattern.permute.xlu0 0
  %94 = vperm.xlu0 %93, %v60
  %v95 = vpop.permute.xlu0 %94
  %98 = vset.pattern.permute.xlu0 0
  %99 = vperm.xlu0 %98, %v61
  %v100 = vpop.permute.xlu0 %99
  %vm102 = vcmask 261120
  %v104 = vsel %vm102, %v14, 0
  %v107 = vsel %vm102, %v15, 0
  %v110 = vsel %vm102, %v16, 0
  %v113 = vsel %vm102, %v17, 0
  %v116 = vsel %vm102, %v18, 0
  %v119 = vsel %vm102, %v19, 0
  %v122 = vsel %vm102, %v20, 0
  %v125 = vsel %vm102, %v21, 0
  %127 = vmatpush.msra.mxu0 0.0
  %128 = vmatpush.msra.mxu0 0.0
  %129 = vmatpush.msra.mxu0 0.0
  %130 = vmatpush.msra.mxu0 0.0
  %131 = vmatpush.msra.mxu0 0.0
  %132 = vmatpush.msra.mxu0 0.0
  %133 = vmatpush.msra.mxu0 0.0
  %134 = vmatpush.msra.mxu0 0.0
  %135 = vmatpush.msra.mxu0 0.0
  %136 = vmatpush.msra.mxu0 0.0
  %137 = vmatpush.msra.mxu0 0.0
  %138 = vmatpush.msra.mxu0 0.0
  %139 = vmatpush.msra.mxu0 %v46
  %140 = vmatpush.msra.mxu0 %v38
  %141 = vmatpush.msra.mxu0 %v30
  %142 = vmatpush.msra.mxu0 %v22
  %143 = vmatmul.f32.gmra.mxu0 %v104
  %v144 = vpop.f32.mrf.mxu0
  %v145 = vadd.f32 %v65, %v144
  %146 = vmatmul.f32.gmra.mxu0 %v107
  %v147 = vpop.f32.mrf.mxu0
  %v148 = vadd.f32 %v70, %v147
  %149 = vmatmul.f32.gmra.mxu0 %v110
  %v150 = vpop.f32.mrf.mxu0
  %v151 = vadd.f32 %v75, %v150
  %152 = vmatmul.f32.gmra.mxu0 %v113
  %v153 = vpop.f32.mrf.mxu0
  %v154 = vadd.f32 %v80, %v153
  %155 = vmatmul.f32.gmra.mxu0 %v116
  %v156 = vpop.f32.mrf.mxu0
  %v157 = vadd.f32 %v85, %v156
  %158 = vmatmul.f32.gmra.mxu0 %v119
  %v159 = vpop.f32.mrf.mxu0
  %v160 = vadd.f32 %v90, %v159
  %161 = vmatmul.f32.gmra.mxu0 %v122
  %v162 = vpop.f32.mrf.mxu0
  %v163 = vadd.f32 %v95, %v162
  %164 = vmatmul.f32.gmra.mxu0 %v125
  %v165 = vpop.f32.mrf.mxu0
  %v166 = vadd.f32 %v100, %v165
  %167 = vdwg.mxu0
  %168 = vmatpush.msra.mxu0 0.0
  %169 = vmatpush.msra.mxu0 0.0
  %170 = vmatpush.msra.mxu0 0.0
  %171 = vmatpush.msra.mxu0 0.0
  %172 = vmatpush.msra.mxu0 0.0
  %173 = vmatpush.msra.mxu0 0.0
  %174 = vmatpush.msra.mxu0 0.0
  %175 = vmatpush.msra.mxu0 0.0
  %176 = vmatpush.msra.mxu0 0.0
  %177 = vmatpush.msra.mxu0 0.0
  %178 = vmatpush.msra.mxu0 0.0
  %179 = vmatpush.msra.mxu0 0.0
  %180 = vmatpush.msra.mxu0 %v47
  %181 = vmatpush.msra.mxu0 %v39
  %182 = vmatpush.msra.mxu0 %v31
  %183 = vmatpush.msra.mxu0 %v23
  %184 = vmatmul.f32.gmra.mxu0 %v104
  %v185 = vpop.f32.mrf.mxu0
  %v186 = vadd.f32 %v65, %v185
  %187 = vmatmul.f32.gmra.mxu0 %v107
  %v188 = vpop.f32.mrf.mxu0
  %v189 = vadd.f32 %v70, %v188
  %190 = vmatmul.f32.gmra.mxu0 %v110
  %v191 = vpop.f32.mrf.mxu0
  %v192 = vadd.f32 %v75, %v191
  %193 = vmatmul.f32.gmra.mxu0 %v113
  %v194 = vpop.f32.mrf.mxu0
  %v195 = vadd.f32 %v80, %v194
  %196 = vmatmul.f32.gmra.mxu0 %v116
  %v197 = vpop.f32.mrf.mxu0
  %v198 = vadd.f32 %v85, %v197
  %199 = vmatmul.f32.gmra.mxu0 %v119
  %v200 = vpop.f32.mrf.mxu0
  %v201 = vadd.f32 %v90, %v200
  %202 = vmatmul.f32.gmra.mxu0 %v122
  %v203 = vpop.f32.mrf.mxu0
  %v204 = vadd.f32 %v95, %v203
  %205 = vmatmul.f32.gmra.mxu0 %v125
  %v206 = vpop.f32.mrf.mxu0
  %v207 = vadd.f32 %v100, %v206
  %208 = vdwg.mxu0
  %209 = vmatpush.msra.mxu0 0.0
  %210 = vmatpush.msra.mxu0 0.0
  %211 = vmatpush.msra.mxu0 0.0
  %212 = vmatpush.msra.mxu0 0.0
  %213 = vmatpush.msra.mxu0 0.0
  %214 = vmatpush.msra.mxu0 0.0
  %215 = vmatpush.msra.mxu0 0.0
  %216 = vmatpush.msra.mxu0 0.0
  %217 = vmatpush.msra.mxu0 0.0
  %218 = vmatpush.msra.mxu0 0.0
  %219 = vmatpush.msra.mxu0 0.0
  %220 = vmatpush.msra.mxu0 0.0
  %221 = vmatpush.msra.mxu0 %v48
  %222 = vmatpush.msra.mxu0 %v40
  %223 = vmatpush.msra.mxu0 %v32
  %224 = vmatpush.msra.mxu0 %v24
  %225 = vmatmul.f32.gmra.mxu0 %v104
  %v226 = vpop.f32.mrf.mxu0
  %v227 = vadd.f32 %v65, %v226
  %228 = vmatmul.f32.gmra.mxu0 %v107
  %v229 = vpop.f32.mrf.mxu0
  %v230 = vadd.f32 %v70, %v229
  %231 = vmatmul.f32.gmra.mxu0 %v110
  %v232 = vpop.f32.mrf.mxu0
  %v233 = vadd.f32 %v75, %v232
  %234 = vmatmul.f32.gmra.mxu0 %v113
  %v235 = vpop.f32.mrf.mxu0
  %v236 = vadd.f32 %v80, %v235
  %237 = vmatmul.f32.gmra.mxu0 %v116
  %v238 = vpop.f32.mrf.mxu0
  %v239 = vadd.f32 %v85, %v238
  %240 = vmatmul.f32.gmra.mxu0 %v119
  %v241 = vpop.f32.mrf.mxu0
  %v242 = vadd.f32 %v90, %v241
  %243 = vmatmul.f32.gmra.mxu0 %v122
  %v244 = vpop.f32.mrf.mxu0
  %v245 = vadd.f32 %v95, %v244
  %246 = vmatmul.f32.gmra.mxu0 %v125
  %v247 = vpop.f32.mrf.mxu0
  %v248 = vadd.f32 %v100, %v247
  %249 = vdwg.mxu0
  %250 = vmatpush.msra.mxu0 0.0
  %251 = vmatpush.msra.mxu0 0.0
  %252 = vmatpush.msra.mxu0 0.0
  %253 = vmatpush.msra.mxu0 0.0
  %254 = vmatpush.msra.mxu0 0.0
  %255 = vmatpush.msra.mxu0 0.0
  %256 = vmatpush.msra.mxu0 0.0
  %257 = vmatpush.msra.mxu0 0.0
  %258 = vmatpush.msra.mxu0 0.0
  %259 = vmatpush.msra.mxu0 0.0
  %260 = vmatpush.msra.mxu0 0.0
  %261 = vmatpush.msra.mxu0 0.0
  %262 = vmatpush.msra.mxu0 %v49
  %263 = vmatpush.msra.mxu0 %v41
  %264 = vmatpush.msra.mxu0 %v33
  %265 = vmatpush.msra.mxu0 %v25
  %266 = vmatmul.f32.gmra.mxu0 %v104
  %v267 = vpop.f32.mrf.mxu0
  %v268 = vadd.f32 %v65, %v267
  %269 = vmatmul.f32.gmra.mxu0 %v107
  %v270 = vpop.f32.mrf.mxu0
  %v271 = vadd.f32 %v70, %v270
  %272 = vmatmul.f32.gmra.mxu0 %v110
  %v273 = vpop.f32.mrf.mxu0
  %v274 = vadd.f32 %v75, %v273
  %275 = vmatmul.f32.gmra.mxu0 %v113
  %v276 = vpop.f32.mrf.mxu0
  %v277 = vadd.f32 %v80, %v276
  %278 = vmatmul.f32.gmra.mxu0 %v116
  %v279 = vpop.f32.mrf.mxu0
  %v280 = vadd.f32 %v85, %v279
  %281 = vmatmul.f32.gmra.mxu0 %v119
  %v282 = vpop.f32.mrf.mxu0
  %v283 = vadd.f32 %v90, %v282
  %284 = vmatmul.f32.gmra.mxu0 %v122
  %v285 = vpop.f32.mrf.mxu0
  %v286 = vadd.f32 %v95, %v285
  %287 = vmatmul.f32.gmra.mxu0 %v125
  %v288 = vpop.f32.mrf.mxu0
  %v289 = vadd.f32 %v100, %v288
  %290 = vdwg.mxu0
  %291 = vmatpush.msra.mxu0 0.0
  %292 = vmatpush.msra.mxu0 0.0
  %293 = vmatpush.msra.mxu0 0.0
  %294 = vmatpush.msra.mxu0 0.0
  %295 = vmatpush.msra.mxu0 0.0
  %296 = vmatpush.msra.mxu0 0.0
  %297 = vmatpush.msra.mxu0 0.0
  %298 = vmatpush.msra.mxu0 0.0
  %299 = vmatpush.msra.mxu0 0.0
  %300 = vmatpush.msra.mxu0 0.0
  %301 = vmatpush.msra.mxu0 0.0
  %302 = vmatpush.msra.mxu0 0.0
  %303 = vmatpush.msra.mxu0 %v50
  %304 = vmatpush.msra.mxu0 %v42
  %305 = vmatpush.msra.mxu0 %v34
  %306 = vmatpush.msra.mxu0 %v26
  %307 = vmatmul.f32.gmra.mxu0 %v104
  %v308 = vpop.f32.mrf.mxu0
  %v309 = vadd.f32 %v65, %v308
  %310 = vmatmul.f32.gmra.mxu0 %v107
  %v311 = vpop.f32.mrf.mxu0
  %v312 = vadd.f32 %v70, %v311
  %313 = vmatmul.f32.gmra.mxu0 %v110
  %v314 = vpop.f32.mrf.mxu0
  %v315 = vadd.f32 %v75, %v314
  %316 = vmatmul.f32.gmra.mxu0 %v113
  %v317 = vpop.f32.mrf.mxu0
  %v318 = vadd.f32 %v80, %v317
  %319 = vmatmul.f32.gmra.mxu0 %v116
  %v320 = vpop.f32.mrf.mxu0
  %v321 = vadd.f32 %v85, %v320
  %322 = vmatmul.f32.gmra.mxu0 %v119
  %v323 = vpop.f32.mrf.mxu0
  %v324 = vadd.f32 %v90, %v323
  %325 = vmatmul.f32.gmra.mxu0 %v122
  %v326 = vpop.f32.mrf.mxu0
  %v327 = vadd.f32 %v95, %v326
  %328 = vmatmul.f32.gmra.mxu0 %v125
  %v329 = vpop.f32.mrf.mxu0
  %v330 = vadd.f32 %v100, %v329
  %331 = vdwg.mxu0
  %332 = vmatpush.msra.mxu0 0.0
  %333 = vmatpush.msra.mxu0 0.0
  %334 = vmatpush.msra.mxu0 0.0
  %335 = vmatpush.msra.mxu0 0.0
  %336 = vmatpush.msra.mxu0 0.0
  %337 = vmatpush.msra.mxu0 0.0
  %338 = vmatpush.msra.mxu0 0.0
  %339 = vmatpush.msra.mxu0 0.0
  %340 = vmatpush.msra.mxu0 0.0
  %341 = vmatpush.msra.mxu0 0.0
  %342 = vmatpush.msra.mxu0 0.0
  %343 = vmatpush.msra.mxu0 0.0
  %344 = vmatpush.msra.mxu0 %v51
  %345 = vmatpush.msra.mxu0 %v43
  %346 = vmatpush.msra.mxu0 %v35
  %347 = vmatpush.msra.mxu0 %v27
  %348 = vmatmul.f32.gmra.mxu0 %v104
  %v349 = vpop.f32.mrf.mxu0
  %v350 = vadd.f32 %v65, %v349
  %351 = vmatmul.f32.gmra.mxu0 %v107
  %v352 = vpop.f32.mrf.mxu0
  %v353 = vadd.f32 %v70, %v352
  %354 = vmatmul.f32.gmra.mxu0 %v110
  %v355 = vpop.f32.mrf.mxu0
  %v356 = vadd.f32 %v75, %v355
  %357 = vmatmul.f32.gmra.mxu0 %v113
  %v358 = vpop.f32.mrf.mxu0
  %v359 = vadd.f32 %v80, %v358
  %360 = vmatmul.f32.gmra.mxu0 %v116
  %v361 = vpop.f32.mrf.mxu0
  %v362 = vadd.f32 %v85, %v361
  %363 = vmatmul.f32.gmra.mxu0 %v119
  %v364 = vpop.f32.mrf.mxu0
  %v365 = vadd.f32 %v90, %v364
  %366 = vmatmul.f32.gmra.mxu0 %v122
  %v367 = vpop.f32.mrf.mxu0
  %v368 = vadd.f32 %v95, %v367
  %369 = vmatmul.f32.gmra.mxu0 %v125
  %v370 = vpop.f32.mrf.mxu0
  %v371 = vadd.f32 %v100, %v370
  %372 = vdwg.mxu0
  %373 = vmatpush.msra.mxu0 0.0
  %374 = vmatpush.msra.mxu0 0.0
  %375 = vmatpush.msra.mxu0 0.0
  %376 = vmatpush.msra.mxu0 0.0
  %377 = vmatpush.msra.mxu0 0.0
  %378 = vmatpush.msra.mxu0 0.0
  %379 = vmatpush.msra.mxu0 0.0
  %380 = vmatpush.msra.mxu0 0.0
  %381 = vmatpush.msra.mxu0 0.0
  %382 = vmatpush.msra.mxu0 0.0
  %383 = vmatpush.msra.mxu0 0.0
  %384 = vmatpush.msra.mxu0 0.0
  %385 = vmatpush.msra.mxu0 %v52
  %386 = vmatpush.msra.mxu0 %v44
  %387 = vmatpush.msra.mxu0 %v36
  %388 = vmatpush.msra.mxu0 %v28
  %389 = vmatmul.f32.gmra.mxu0 %v104
  %v390 = vpop.f32.mrf.mxu0
  %v391 = vadd.f32 %v65, %v390
  %392 = vmatmul.f32.gmra.mxu0 %v107
  %v393 = vpop.f32.mrf.mxu0
  %v394 = vadd.f32 %v70, %v393
  %395 = vmatmul.f32.gmra.mxu0 %v110
  %v396 = vpop.f32.mrf.mxu0
  %v397 = vadd.f32 %v75, %v396
  %398 = vmatmul.f32.gmra.mxu0 %v113
  %v399 = vpop.f32.mrf.mxu0
  %v400 = vadd.f32 %v80, %v399
  %401 = vmatmul.f32.gmra.mxu0 %v116
  %v402 = vpop.f32.mrf.mxu0
  %v403 = vadd.f32 %v85, %v402
  %404 = vmatmul.f32.gmra.mxu0 %v119
  %v405 = vpop.f32.mrf.mxu0
  %v406 = vadd.f32 %v90, %v405
  %407 = vmatmul.f32.gmra.mxu0 %v122
  %v408 = vpop.f32.mrf.mxu0
  %v409 = vadd.f32 %v95, %v408
  %410 = vmatmul.f32.gmra.mxu0 %v125
  %v411 = vpop.f32.mrf.mxu0
  %v412 = vadd.f32 %v100, %v411
  %413 = vdwg.mxu0
  %414 = vmatpush.msra.mxu0 0.0
  %415 = vmatpush.msra.mxu0 0.0
  %416 = vmatpush.msra.mxu0 0.0
  %417 = vmatpush.msra.mxu0 0.0
  %418 = vmatpush.msra.mxu0 0.0
  %419 = vmatpush.msra.mxu0 0.0
  %420 = vmatpush.msra.mxu0 0.0
  %421 = vmatpush.msra.mxu0 0.0
  %422 = vmatpush.msra.mxu0 0.0
  %423 = vmatpush.msra.mxu0 0.0
  %424 = vmatpush.msra.mxu0 0.0
  %425 = vmatpush.msra.mxu0 0.0
  %426 = vmatpush.msra.mxu0 %v53
  %427 = vmatpush.msra.mxu0 %v45
  %428 = vmatpush.msra.mxu0 %v37
  %429 = vmatpush.msra.mxu0 %v29
  %430 = vmatmul.f32.gmra.mxu0 %v104
  %v431 = vpop.f32.mrf.mxu0
  %v432 = vadd.f32 %v65, %v431
  %433 = vmatmul.f32.gmra.mxu0 %v107
  %v434 = vpop.f32.mrf.mxu0
  %v435 = vadd.f32 %v70, %v434
  %436 = vmatmul.f32.gmra.mxu0 %v110
  %v437 = vpop.f32.mrf.mxu0
  %v438 = vadd.f32 %v75, %v437
  %439 = vmatmul.f32.gmra.mxu0 %v113
  %v440 = vpop.f32.mrf.mxu0
  %v441 = vadd.f32 %v80, %v440
  %442 = vmatmul.f32.gmra.mxu0 %v116
  %v443 = vpop.f32.mrf.mxu0
  %v444 = vadd.f32 %v85, %v443
  %445 = vmatmul.f32.gmra.mxu0 %v119
  %v446 = vpop.f32.mrf.mxu0
  %v447 = vadd.f32 %v90, %v446
  %448 = vmatmul.f32.gmra.mxu0 %v122
  %v449 = vpop.f32.mrf.mxu0
  %v450 = vadd.f32 %v95, %v449
  %451 = vmatmul.f32.gmra.mxu0 %v125
  %v452 = vpop.f32.mrf.mxu0
  %v453 = vadd.f32 %v100, %v452
  %454 = vdwg.mxu0
  %455 = vst [vmem:[%s3] sm:$0xff] %v145
  %456 = vst [vmem:[%s3 + $0x8] sm:$0xff] %v186
  %457 = vst [vmem:[%s3 + $0x10] sm:$0xff] %v227
  %458 = vst [vmem:[%s3 + $0x18] sm:$0xff] %v268
  %459 = vst [vmem:[%s3 + $0x20] sm:$0xff] %v309
  %460 = vst [vmem:[%s3 + $0x28] sm:$0xff] %v350
  %461 = vst [vmem:[%s3 + $0x30] sm:$0xff] %v391
  %462 = vst [vmem:[%s3 + $0x38] sm:$0xff] %v432
  %463 = vst [vmem:[%s3 + $0x40] sm:$0xff] %v148
  %464 = vst [vmem:[%s3 + $0x48] sm:$0xff] %v189
  %465 = vst [vmem:[%s3 + $0x50] sm:$0xff] %v230
  %466 = vst [vmem:[%s3 + $0x58] sm:$0xff] %v271
  %467 = vst [vmem:[%s3 + $0x60] sm:$0xff] %v312
  %468 = vst [vmem:[%s3 + $0x68] sm:$0xff] %v353
  %469 = vst [vmem:[%s3 + $0x70] sm:$0xff] %v394
  %470 = vst [vmem:[%s3 + $0x78] sm:$0xff] %v435
  %471 = vst [vmem:[%s3 + $0x80] sm:$0xff] %v151
  %472 = vst [vmem:[%s3 + $0x88] sm:$0xff] %v192
  %473 = vst [vmem:[%s3 + $0x90] sm:$0xff] %v233
  %474 = vst [vmem:[%s3 + $0x98] sm:$0xff] %v274
  %475 = vst [vmem:[%s3 + $0xa0] sm:$0xff] %v315
  %476 = vst [vmem:[%s3 + $0xa8] sm:$0xff] %v356
  %477 = vst [vmem:[%s3 + $0xb0] sm:$0xff] %v397
  %478 = vst [vmem:[%s3 + $0xb8] sm:$0xff] %v438
  %479 = vst [vmem:[%s3 + $0xc0] sm:$0xff] %v154
  %480 = vst [vmem:[%s3 + $0xc8] sm:$0xff] %v195
  %481 = vst [vmem:[%s3 + $0xd0] sm:$0xff] %v236
  %482 = vst [vmem:[%s3 + $0xd8] sm:$0xff] %v277
  %483 = vst [vmem:[%s3 + $0xe0] sm:$0xff] %v318
  %484 = vst [vmem:[%s3 + $0xe8] sm:$0xff] %v359
  %485 = vst [vmem:[%s3 + $0xf0] sm:$0xff] %v400
  %486 = vst [vmem:[%s3 + $0xf8] sm:$0xff] %v441
  %487 = vst [vmem:[%s3 + $0x100] sm:$0xff] %v157
  %488 = vst [vmem:[%s3 + $0x108] sm:$0xff] %v198
  %489 = vst [vmem:[%s3 + $0x110] sm:$0xff] %v239
  %490 = vst [vmem:[%s3 + $0x118] sm:$0xff] %v280
  %491 = vst [vmem:[%s3 + $0x120] sm:$0xff] %v321
  %492 = vst [vmem:[%s3 + $0x128] sm:$0xff] %v362
  %493 = vst [vmem:[%s3 + $0x130] sm:$0xff] %v403
  %494 = vst [vmem:[%s3 + $0x138] sm:$0xff] %v444
  %495 = vst [vmem:[%s3 + $0x140] sm:$0xff] %v160
  %496 = vst [vmem:[%s3 + $0x148] sm:$0xff] %v201
  %497 = vst [vmem:[%s3 + $0x150] sm:$0xff] %v242
  %498 = vst [vmem:[%s3 + $0x158] sm:$0xff] %v283
  %499 = vst [vmem:[%s3 + $0x160] sm:$0xff] %v324
  %500 = vst [vmem:[%s3 + $0x168] sm:$0xff] %v365
  %501 = vst [vmem:[%s3 + $0x170] sm:$0xff] %v406
  %502 = vst [vmem:[%s3 + $0x178] sm:$0xff] %v447
  %503 = vst [vmem:[%s3 + $0x180] sm:$0xff] %v163
  %504 = vst [vmem:[%s3 + $0x188] sm:$0xff] %v204
  %505 = vst [vmem:[%s3 + $0x190] sm:$0xff] %v245
  %506 = vst [vmem:[%s3 + $0x198] sm:$0xff] %v286
  %507 = vst [vmem:[%s3 + $0x1a0] sm:$0xff] %v327
  %508 = vst [vmem:[%s3 + $0x1a8] sm:$0xff] %v368
  %509 = vst [vmem:[%s3 + $0x1b0] sm:$0xff] %v409
  %510 = vst [vmem:[%s3 + $0x1b8] sm:$0xff] %v450
  %511 = vst [vmem:[%s3 + $0x1c0] sm:$0xff] %v166
  %512 = vst [vmem:[%s3 + $0x1c8] sm:$0xff] %v207
  %513 = vst [vmem:[%s3 + $0x1d0] sm:$0xff] %v248
  %514 = vst [vmem:[%s3 + $0x1d8] sm:$0xff] %v289
  %515 = vst [vmem:[%s3 + $0x1e0] sm:$0xff] %v330
  %516 = vst [vmem:[%s3 + $0x1e8] sm:$0xff] %v371
  %517 = vst [vmem:[%s3 + $0x1f0] sm:$0xff] %v412
  %518 = vst [vmem:[%s3 + $0x1f8] sm:$0xff] %v453
  // Predicated region
  $region14: #{jigsaw_block_forward.8} parent=0 // pred_check
    _
  $region15: #{jigsaw_block_forward.8} parent=0 // pred_check_branch
    %520 = sbr.rel (0) target = $region17
  $region16: #{jigsaw_block_forward.8} parent=0 // pred_region
    _
  $region17: #{jigsaw_block_forward.8} parent=0 // pred_fallthru
    _
  // Predicated region
  $region18: #{jigsaw_block_forward.8} parent=0 // pred_check
    _
  $region19: #{jigsaw_block_forward.8} parent=0 // pred_check_branch
    %522 = sbr.rel (0) target = $region21
  $region20: #{jigsaw_block_forward.8} parent=0 // pred_region
    _
  $region21: #{jigsaw_block_forward.8} parent=0 // pred_fallthru
    _

// kernel: jigsaw_block_forward.10
$region0: #{jigsaw_block_forward.10}
  #allocation0 [shape = 'u32[]', space=smem, size = 0x4, offset = 0x4, fixed_abs, tag = 'smem constant byte address 0x4 - core index']
  #allocation1 [shape = 'u32[72,128]{1,0:T(1,128)}', space=vmem, size = 0x9000, scoped, tag = 'internal scratch']
  %s0 = inlined_call_operand.vmem [shape: f32[8,8192], index: 0, kind: input, shape index: {}]
  %s1 = inlined_call_operand.vmem [shape: f32[8,8192], index: 1, kind: input, shape index: {}]
  %s2 = inlined_call_operand.vmem [shape: f32[8,1], index: 2, kind: input, shape index: {}]
  %s3 = inlined_call_operand.vmem [shape: f32[8,1], index: 3, kind: input, shape index: {}]
  %s4 = inlined_call_operand.vmem [shape: f32[8,8192], index: 4, kind: output, shape index: {}]
  %s5 = sld [smem:[#allocation0]]
  $region26: #{jigsaw_block_forward.10} parent=0
    _
  %s7 = ssub.s32 1, %s5
  %s8 = scalar_select 0, %s7, %s5
  // Predicated region
  $region2: #{jigsaw_block_forward.10} parent=0 // pred_check
    _
  $region3: #{jigsaw_block_forward.10} parent=0 // pred_check_branch
    %10 = sbr.rel (0) target = $region5
  $region4: #{jigsaw_block_forward.10} parent=0 // pred_region
    _
  $region5: #{jigsaw_block_forward.10} parent=0 // pred_fallthru
    _
  // Predicated region
  $region6: #{jigsaw_block_forward.10} parent=0 // pred_check
    _
  $region7: #{jigsaw_block_forward.10} parent=0 // pred_check_branch
    %12 = sbr.rel (0) target = $region9
  $region8: #{jigsaw_block_forward.10} parent=0 // pred_region
    _
  $region9: #{jigsaw_block_forward.10} parent=0 // pred_fallthru
    _
  // Predicated region
  $region10: #{jigsaw_block_forward.10} parent=0 // pred_check
    _
  $region11: #{jigsaw_block_forward.10} parent=0 // pred_check_branch
    %14 = sbr.rel (0) target = $region13
  $region12: #{jigsaw_block_forward.10} parent=0 // pred_region
    _
  $region13: #{jigsaw_block_forward.10} parent=0 // pred_fallthru
    _
  // Predicated region
  $region14: #{jigsaw_block_forward.10} parent=0 // pred_check
    _
  $region15: #{jigsaw_block_forward.10} parent=0 // pred_check_branch
    %16 = sbr.rel (0) target = $region17
  $region16: #{jigsaw_block_forward.10} parent=0 // pred_region
    _
  $region17: #{jigsaw_block_forward.10} parent=0 // pred_fallthru
    _
  %v17 = vld [vmem:[%s0] sm:$0xff]
  %v18 = vld [vmem:[%s0 + $0x8] sm:$0xff]
  %v19 = vld [vmem:[%s0 + $0x10] sm:$0xff]
  %v20 = vld [vmem:[%s0 + $0x18] sm:$0xff]
  %v21 = vld [vmem:[%s0 + $0x20] sm:$0xff]
  %v22 = vld [vmem:[%s0 + $0x28] sm:$0xff]
  %v23 = vld [vmem:[%s0 + $0x30] sm:$0xff]
  %v24 = vld [vmem:[%s0 + $0x38] sm:$0xff]
  %v25 = vld [vmem:[%s0 + $0x40] sm:$0xff]
  %v26 = vld [vmem:[%s0 + $0x48] sm:$0xff]
  %v27 = vld [vmem:[%s0 + $0x50] sm:$0xff]
  %v28 = vld [vmem:[%s0 + $0x58] sm:$0xff]
  %v29 = vld [vmem:[%s0 + $0x60] sm:$0xff]
  %v30 = vld [vmem:[%s0 + $0x68] sm:$0xff]
  %v31 = vld [vmem:[%s0 + $0x70] sm:$0xff]
  %v32 = vld [vmem:[%s0 + $0x78] sm:$0xff]
  %v33 = vld [vmem:[%s0 + $0x80] sm:$0xff]
  %v34 = vld [vmem:[%s0 + $0x88] sm:$0xff]
  %v35 = vld [vmem:[%s0 + $0x90] sm:$0xff]
  %v36 = vld [vmem:[%s0 + $0x98] sm:$0xff]
  %v37 = vld [vmem:[%s0 + $0xa0] sm:$0xff]
  %v38 = vld [vmem:[%s0 + $0xa8] sm:$0xff]
  %v39 = vld [vmem:[%s0 + $0xb0] sm:$0xff]
  %v40 = vld [vmem:[%s0 + $0xb8] sm:$0xff]
  %v41 = vld [vmem:[%s0 + $0xc0] sm:$0xff]
  %v42 = vld [vmem:[%s0 + $0xc8] sm:$0xff]
  %v43 = vld [vmem:[%s0 + $0xd0] sm:$0xff]
  %v44 = vld [vmem:[%s0 + $0xd8] sm:$0xff]
  %v45 = vld [vmem:[%s0 + $0xe0] sm:$0xff]
  %v46 = vld [vmem:[%s0 + $0xe8] sm:$0xff]
  %v47 = vld [vmem:[%s0 + $0xf0] sm:$0xff]
  %v48 = vld [vmem:[%s0 + $0xf8] sm:$0xff]
  %v49 = vld [vmem:[%s0 + $0x100] sm:$0xff]
  %v50 = vld [vmem:[%s0 + $0x108] sm:$0xff]
  %v51 = vld [vmem:[%s0 + $0x110] sm:$0xff]
  %v52 = vld [vmem:[%s0 + $0x118] sm:$0xff]
  %v53 = vld [vmem:[%s0 + $0x120] sm:$0xff]
  %v54 = vld [vmem:[%s0 + $0x128] sm:$0xff]
  %v55 = vld [vmem:[%s0 + $0x130] sm:$0xff]
  %v56 = vld [vmem:[%s0 + $0x138] sm:$0xff]
  %v57 = vld [vmem:[%s0 + $0x140] sm:$0xff]
  %v58 = vld [vmem:[%s0 + $0x148] sm:$0xff]
  %v59 = vld [vmem:[%s0 + $0x150] sm:$0xff]
  %v60 = vld [vmem:[%s0 + $0x158] sm:$0xff]
  %v61 = vld [vmem:[%s0 + $0x160] sm:$0xff]
  %v62 = vld [vmem:[%s0 + $0x168] sm:$0xff]
  %v63 = vld [vmem:[%s0 + $0x170] sm:$0xff]
  %v64 = vld [vmem:[%s0 + $0x178] sm:$0xff]
  %v65 = vld [vmem:[%s0 + $0x180] sm:$0xff]
  %v66 = vld [vmem:[%s0 + $0x188] sm:$0xff]
  %v67 = vld [vmem:[%s0 + $0x190] sm:$0xff]
  %v68 = vld [vmem:[%s0 + $0x198] sm:$0xff]
  %v69 = vld [vmem:[%s0 + $0x1a0] sm:$0xff]
  %v70 = vld [vmem:[%s0 + $0x1a8] sm:$0xff]
  %v71 = vld [vmem:[%s0 + $0x1b0] sm:$0xff]
  %v72 = vld [vmem:[%s0 + $0x1b8] sm:$0xff]
  %v73 = vld [vmem:[%s0 + $0x1c0] sm:$0xff]
  %v74 = vld [vmem:[%s0 + $0x1c8] sm:$0xff]
  %v75 = vld [vmem:[%s0 + $0x1d0] sm:$0xff]
  %v76 = vld [vmem:[%s0 + $0x1d8] sm:$0xff]
  %v77 = vld [vmem:[%s0 + $0x1e0] sm:$0xff]
  %v78 = vld [vmem:[%s0 + $0x1e8] sm:$0xff]
  %v79 = vld [vmem:[%s0 + $0x1f0] sm:$0xff]
  %v80 = vld [vmem:[%s0 + $0x1f8] sm:$0xff]
  %v81 = vld [vmem:[%s1] sm:$0xff]
  %v82 = vld [vmem:[%s1 + $0x8] sm:$0xff]
  %v83 = vld [vmem:[%s1 + $0x10] sm:$0xff]
  %v84 = vld [vmem:[%s1 + $0x18] sm:$0xff]
  %v85 = vld [vmem:[%s1 + $0x20] sm:$0xff]
  %v86 = vld [vmem:[%s1 + $0x28] sm:$0xff]
  %v87 = vld [vmem:[%s1 + $0x30] sm:$0xff]
  %v88 = vld [vmem:[%s1 + $0x38] sm:$0xff]
  %v89 = vld [vmem:[%s1 + $0x40] sm:$0xff]
  %v90 = vld [vmem:[%s1 + $0x48] sm:$0xff]
  %v91 = vld [vmem:[%s1 + $0x50] sm:$0xff]
  %v92 = vld [vmem:[%s1 + $0x58] sm:$0xff]
  %v93 = vld [vmem:[%s1 + $0x60] sm:$0xff]
  %v94 = vld [vmem:[%s1 + $0x68] sm:$0xff]
  %v95 = vld [vmem:[%s1 + $0x70] sm:$0xff]
  %v96 = vld [vmem:[%s1 + $0x78] sm:$0xff]
  %v97 = vld [vmem:[%s1 + $0x80] sm:$0xff]
  %v98 = vld [vmem:[%s1 + $0x88] sm:$0xff]
  %v99 = vld [vmem:[%s1 + $0x90] sm:$0xff]
  %v100 = vld [vmem:[%s1 + $0x98] sm:$0xff]
  %v101 = vld [vmem:[%s1 + $0xa0] sm:$0xff]
  %v102 = vld [vmem:[%s1 + $0xa8] sm:$0xff]
  %v103 = vld [vmem:[%s1 + $0xb0] sm:$0xff]
  %v104 = vld [vmem:[%s1 + $0xb8] sm:$0xff]
  %v105 = vld [vmem:[%s1 + $0xc0] sm:$0xff]
  %v106 = vld [vmem:[%s1 + $0xc8] sm:$0xff]
  %v107 = vld [vmem:[%s1 + $0xd0] sm:$0xff]
  %v108 = vld [vmem:[%s1 + $0xd8] sm:$0xff]
  %v109 = vld [vmem:[%s1 + $0xe0] sm:$0xff]
  %v110 = vld [vmem:[%s1 + $0xe8] sm:$0xff]
  %v111 = vld [vmem:[%s1 + $0xf0] sm:$0xff]
  %v112 = vld [vmem:[%s1 + $0xf8] sm:$0xff]
  %v113 = vld [vmem:[%s1 + $0x100] sm:$0xff]
  %v114 = vld [vmem:[%s1 + $0x108] sm:$0xff]
  %v115 = vld [vmem:[%s1 + $0x110] sm:$0xff]
  %v116 = vld [vmem:[%s1 + $0x118] sm:$0xff]
  %v117 = vld [vmem:[%s1 + $0x120] sm:$0xff]
  %v118 = vld [vmem:[%s1 + $0x128] sm:$0xff]
  %v119 = vld [vmem:[%s1 + $0x130] sm:$0xff]
  %v120 = vld [vmem:[%s1 + $0x138] sm:$0xff]
  %v121 = vld [vmem:[%s1 + $0x140] sm:$0xff]
  %v122 = vld [vmem:[%s1 + $0x148] sm:$0xff]
  %v123 = vld [vmem:[%s1 + $0x150] sm:$0xff]
  %v124 = vld [vmem:[%s1 + $0x158] sm:$0xff]
  %v125 = vld [vmem:[%s1 + $0x160] sm:$0xff]
  %v126 = vld [vmem:[%s1 + $0x168] sm:$0xff]
  %v127 = vld [vmem:[%s1 + $0x170] sm:$0xff]
  %v128 = vld [vmem:[%s1 + $0x178] sm:$0xff]
  %v129 = vld [vmem:[%s1 + $0x180] sm:$0xff]
  %v130 = vld [vmem:[%s1 + $0x188] sm:$0xff]
  %v131 = vld [vmem:[%s1 + $0x190] sm:$0xff]
  %v132 = vld [vmem:[%s1 + $0x198] sm:$0xff]
  %v133 = vld [vmem:[%s1 + $0x1a0] sm:$0xff]
  %v134 = vld [vmem:[%s1 + $0x1a8] sm:$0xff]
  %v135 = vld [vmem:[%s1 + $0x1b0] sm:$0xff]
  %v136 = vld [vmem:[%s1 + $0x1b8] sm:$0xff]
  %v137 = vld [vmem:[%s1 + $0x1c0] sm:$0xff]
  %v138 = vld [vmem:[%s1 + $0x1c8] sm:$0xff]
  %v139 = vld [vmem:[%s1 + $0x1d0] sm:$0xff]
  %v140 = vld [vmem:[%s1 + $0x1d8] sm:$0xff]
  %v141 = vld [vmem:[%s1 + $0x1e0] sm:$0xff]
  %v142 = vld [vmem:[%s1 + $0x1e8] sm:$0xff]
  %v143 = vld [vmem:[%s1 + $0x1f0] sm:$0xff]
  %v144 = vld [vmem:[%s1 + $0x1f8] sm:$0xff]
  %v145 = vadd.f32 %v17, %v81
  %v146 = vadd.f32 %v18, %v82
  %v147 = vadd.f32 %v19, %v83
  %v148 = vadd.f32 %v20, %v84
  %v149 = vadd.f32 %v21, %v85
  %v150 = vadd.f32 %v22, %v86
  %v151 = vadd.f32 %v23, %v87
  %v152 = vadd.f32 %v24, %v88
  %v153 = vadd.f32 %v25, %v89
  %v154 = vadd.f32 %v26, %v90
  %v155 = vadd.f32 %v27, %v91
  %v156 = vadd.f32 %v28, %v92
  %v157 = vadd.f32 %v29, %v93
  %v158 = vadd.f32 %v30, %v94
  %v159 = vadd.f32 %v31, %v95
  %v160 = vadd.f32 %v32, %v96
  %v161 = vadd.f32 %v33, %v97
  %v162 = vadd.f32 %v34, %v98
  %v163 = vadd.f32 %v35, %v99
  %v164 = vadd.f32 %v36, %v100
  %v165 = vadd.f32 %v37, %v101
  %v166 = vadd.f32 %v38, %v102
  %v167 = vadd.f32 %v39, %v103
  %v168 = vadd.f32 %v40, %v104
  %v169 = vadd.f32 %v41, %v105
  %v170 = vadd.f32 %v42, %v106
  %v171 = vadd.f32 %v43, %v107
  %v172 = vadd.f32 %v44, %v108
  %v173 = vadd.f32 %v45, %v109
  %v174 = vadd.f32 %v46, %v110
  %v175 = vadd.f32 %v47, %v111
  %v176 = vadd.f32 %v48, %v112
  %v177 = vadd.f32 %v49, %v113
  %v178 = vadd.f32 %v50, %v114
  %v179 = vadd.f32 %v51, %v115
  %v180 = vadd.f32 %v52, %v116
  %v181 = vadd.f32 %v53, %v117
  %v182 = vadd.f32 %v54, %v118
  %v183 = vadd.f32 %v55, %v119
  %v184 = vadd.f32 %v56, %v120
  %v185 = vadd.f32 %v57, %v121
  %v186 = vadd.f32 %v58, %v122
  %v187 = vadd.f32 %v59, %v123
  %v188 = vadd.f32 %v60, %v124
  %v189 = vadd.f32 %v61, %v125
  %v190 = vadd.f32 %v62, %v126
  %v191 = vadd.f32 %v63, %v127
  %v192 = vadd.f32 %v64, %v128
  %v193 = vadd.f32 %v65, %v129
  %v194 = vadd.f32 %v66, %v130
  %v195 = vadd.f32 %v67, %v131
  %v196 = vadd.f32 %v68, %v132
  %v197 = vadd.f32 %v69, %v133
  %v198 = vadd.f32 %v70, %v134
  %v199 = vadd.f32 %v71, %v135
  %v200 = vadd.f32 %v72, %v136
  %v201 = vadd.f32 %v73, %v137
  %v202 = vadd.f32 %v74, %v138
  %v203 = vadd.f32 %v75, %v139
  %v204 = vadd.f32 %v76, %v140
  %v205 = vadd.f32 %v77, %v141
  %v206 = vadd.f32 %v78, %v142
  %v207 = vadd.f32 %v79, %v143
  %v208 = vadd.f32 %v80, %v144
  %v209 = vld [vmem:[%s2] sm:$0xff]
  %v210 = vld [vmem:[%s3] sm:$0xff]
  %v211 = vadd.f32 %v145, %v146
  %v212 = vadd.f32 %v211, %v147
  %v213 = vadd.f32 %v212, %v148
  %v214 = vadd.f32 %v213, %v149
  %v215 = vadd.f32 %v214, %v150
  %v216 = vadd.f32 %v215, %v151
  %v217 = vadd.f32 %v216, %v152
  %v218 = vadd.f32 %v217, %v153
  %v219 = vadd.f32 %v218, %v154
  %v220 = vadd.f32 %v219, %v155
  %v221 = vadd.f32 %v220, %v156
  %v222 = vadd.f32 %v221, %v157
  %v223 = vadd.f32 %v222, %v158
  %v224 = vadd.f32 %v223, %v159
  %v225 = vadd.f32 %v224, %v160
  %v226 = vadd.f32 %v225, %v161
  %v227 = vadd.f32 %v226, %v162
  %v228 = vadd.f32 %v227, %v163
  %v229 = vadd.f32 %v228, %v164
  %v230 = vadd.f32 %v229, %v165
  %v231 = vadd.f32 %v230, %v166
  %v232 = vadd.f32 %v231, %v167
  %v233 = vadd.f32 %v232, %v168
  %v234 = vadd.f32 %v233, %v169
  %v235 = vadd.f32 %v234, %v170
  %v236 = vadd.f32 %v235, %v171
  %v237 = vadd.f32 %v236, %v172
  %v238 = vadd.f32 %v237, %v173
  %v239 = vadd.f32 %v238, %v174
  %v240 = vadd.f32 %v239, %v175
  %v241 = vadd.f32 %v240, %v176
  %v242 = vadd.f32 %v241, %v177
  %v243 = vadd.f32 %v242, %v178
  %v244 = vadd.f32 %v243, %v179
  %v245 = vadd.f32 %v244, %v180
  %v246 = vadd.f32 %v245, %v181
  %v247 = vadd.f32 %v246, %v182
  %v248 = vadd.f32 %v247, %v183
  %v249 = vadd.f32 %v248, %v184
  %v250 = vadd.f32 %v249, %v185
  %v251 = vadd.f32 %v250, %v186
  %v252 = vadd.f32 %v251, %v187
  %v253 = vadd.f32 %v252, %v188
  %v254 = vadd.f32 %v253, %v189
  %v255 = vadd.f32 %v254, %v190
  %v256 = vadd.f32 %v255, %v191
  %v257 = vadd.f32 %v256, %v192
  %v258 = vadd.f32 %v257, %v193
  %v259 = vadd.f32 %v258, %v194
  %v260 = vadd.f32 %v259, %v195
  %v261 = vadd.f32 %v260, %v196
  %v262 = vadd.f32 %v261, %v197
  %v263 = vadd.f32 %v262, %v198
  %v264 = vadd.f32 %v263, %v199
  %v265 = vadd.f32 %v264, %v200
  %v266 = vadd.f32 %v265, %v201
  %v267 = vadd.f32 %v266, %v202
  %v268 = vadd.f32 %v267, %v203
  %v269 = vadd.f32 %v268, %v204
  %v270 = vadd.f32 %v269, %v205
  %v271 = vadd.f32 %v270, %v206
  %v272 = vadd.f32 %v271, %v207
  %v273 = vadd.f32 %v272, %v208
  %274 = vadd.xlane.f32.xlu0 %v273
  %v275 = vpop.xlane.xlu0 %274
  %v276 = vmul.f32 %v275, 0.00012207031
  %v277 = vsub.f32 %v145, %v276
  %v278 = vsub.f32 %v146, %v276
  %v279 = vsub.f32 %v147, %v276
  %v280 = vsub.f32 %v148, %v276
  %v281 = vsub.f32 %v149, %v276
  %v282 = vsub.f32 %v150, %v276
  %v283 = vsub.f32 %v151, %v276
  %v284 = vsub.f32 %v152, %v276
  %v285 = vsub.f32 %v153, %v276
  %v286 = vsub.f32 %v154, %v276
  %v287 = vsub.f32 %v155, %v276
  %v288 = vsub.f32 %v156, %v276
  %v289 = vsub.f32 %v157, %v276
  %v290 = vsub.f32 %v158, %v276
  %v291 = vsub.f32 %v159, %v276
  %v292 = vsub.f32 %v160, %v276
  %v293 = vsub.f32 %v161, %v276
  %v294 = vsub.f32 %v162, %v276
  %v295 = vsub.f32 %v163, %v276
  %v296 = vsub.f32 %v164, %v276
  %v297 = vsub.f32 %v165, %v276
  %v298 = vsub.f32 %v166, %v276
  %v299 = vsub.f32 %v167, %v276
  %v300 = vsub.f32 %v168, %v276
  %v301 = vsub.f32 %v169, %v276
  %v302 = vsub.f32 %v170, %v276
  %v303 = vsub.f32 %v171, %v276
  %v304 = vsub.f32 %v172, %v276
  %v305 = vsub.f32 %v173, %v276
  %v306 = vsub.f32 %v174, %v276
  %v307 = vsub.f32 %v175, %v276
  %v308 = vsub.f32 %v176, %v276
  %v309 = vsub.f32 %v177, %v276
  %v310 = vsub.f32 %v178, %v276
  %v311 = vsub.f32 %v179, %v276
  %v312 = vsub.f32 %v180, %v276
  %v313 = vsub.f32 %v181, %v276
  %v314 = vsub.f32 %v182, %v276
  %v315 = vsub.f32 %v183, %v276
  %v316 = vsub.f32 %v184, %v276
  %v317 = vsub.f32 %v185, %v276
  %v318 = vsub.f32 %v186, %v276
  %v319 = vsub.f32 %v187, %v276
  %v320 = vsub.f32 %v188, %v276
  %v321 = vsub.f32 %v189, %v276
  %v322 = vsub.f32 %v190, %v276
  %v323 = vsub.f32 %v191, %v276
  %v324 = vsub.f32 %v192, %v276
  %v325 = vsub.f32 %v193, %v276
  %v326 = vsub.f32 %v194, %v276
  %v327 = vsub.f32 %v195, %v276
  %v328 = vsub.f32 %v196, %v276
  %v329 = vsub.f32 %v197, %v276
  %v330 = vsub.f32 %v198, %v276
  %v331 = vsub.f32 %v199, %v276
  %v332 = vsub.f32 %v200, %v276
  %v333 = vsub.f32 %v201, %v276
  %v334 = vsub.f32 %v202, %v276
  %v335 = vsub.f32 %v203, %v276
  %v336 = vsub.f32 %v204, %v276
  %v337 = vsub.f32 %v205, %v276
  %v338 = vsub.f32 %v206, %v276
  %v339 = vsub.f32 %v207, %v276
  %v340 = vsub.f32 %v208, %v276
  %v341 = vmul.f32 %v277, %v277
  %v342 = vmul.f32 %v278, %v278
  %v343 = vmul.f32 %v279, %v279
  %v344 = vmul.f32 %v280, %v280
  %v345 = vmul.f32 %v281, %v281
  %v346 = vmul.f32 %v282, %v282
  %v347 = vmul.f32 %v283, %v283
  %v348 = vmul.f32 %v284, %v284
  %v349 = vmul.f32 %v285, %v285
  %v350 = vmul.f32 %v286, %v286
  %v351 = vmul.f32 %v287, %v287
  %v352 = vmul.f32 %v288, %v288
  %v353 = vmul.f32 %v289, %v289
  %v354 = vmul.f32 %v290, %v290
  %v355 = vmul.f32 %v291, %v291
  %v356 = vmul.f32 %v292, %v292
  %v357 = vmul.f32 %v293, %v293
  %v358 = vmul.f32 %v294, %v294
  %v359 = vmul.f32 %v295, %v295
  %v360 = vmul.f32 %v296, %v296
  %v361 = vmul.f32 %v297, %v297
  %v362 = vmul.f32 %v298, %v298
  %v363 = vmul.f32 %v299, %v299
  %v364 = vmul.f32 %v300, %v300
  %v365 = vmul.f32 %v301, %v301
  %v366 = vmul.f32 %v302, %v302
  %v367 = vmul.f32 %v303, %v303
  %v368 = vmul.f32 %v304, %v304
  %v369 = vmul.f32 %v305, %v305
  %v370 = vmul.f32 %v306, %v306
  %v371 = vmul.f32 %v307, %v307
  %v372 = vmul.f32 %v308, %v308
  %v373 = vmul.f32 %v309, %v309
  %v374 = vmul.f32 %v310, %v310
  %v375 = vmul.f32 %v311, %v311
  %v376 = vmul.f32 %v312, %v312
  %v377 = vmul.f32 %v313, %v313
  %v378 = vmul.f32 %v314, %v314
  %v379 = vmul.f32 %v315, %v315
  %v380 = vmul.f32 %v316, %v316
  %v381 = vmul.f32 %v317, %v317
  %v382 = vmul.f32 %v318, %v318
  %v383 = vmul.f32 %v319, %v319
  %v384 = vmul.f32 %v320, %v320
  %v385 = vmul.f32 %v321, %v321
  %v386 = vmul.f32 %v322, %v322
  %v387 = vmul.f32 %v323, %v323
  %v388 = vmul.f32 %v324, %v324
  %v389 = vmul.f32 %v325, %v325
  %v390 = vmul.f32 %v326, %v326
  %v391 = vmul.f32 %v327, %v327
  %v392 = vmul.f32 %v328, %v328
  %v393 = vmul.f32 %v329, %v329
  %v394 = vmul.f32 %v330, %v330
  %v395 = vmul.f32 %v331, %v331
  %v396 = vmul.f32 %v332, %v332
  %v397 = vmul.f32 %v333, %v333
  %v398 = vmul.f32 %v334, %v334
  %v399 = vmul.f32 %v335, %v335
  %v400 = vmul.f32 %v336, %v336
  %v401 = vmul.f32 %v337, %v337
  %v402 = vmul.f32 %v338, %v338
  %v403 = vmul.f32 %v339, %v339
  %v404 = vmul.f32 %v340, %v340
  %v405 = vadd.f32 %v341, %v342
  %v406 = vadd.f32 %v405, %v343
  %v407 = vadd.f32 %v406, %v344
  %v408 = vadd.f32 %v407, %v345
  %v409 = vadd.f32 %v408, %v346
  %v410 = vadd.f32 %v409, %v347
  %v411 = vadd.f32 %v410, %v348
  %v412 = vadd.f32 %v411, %v349
  %v413 = vadd.f32 %v412, %v350
  %v414 = vadd.f32 %v413, %v351
  %v415 = vadd.f32 %v414, %v352
  %v416 = vadd.f32 %v415, %v353
  %v417 = vadd.f32 %v416, %v354
  %v418 = vadd.f32 %v417, %v355
  %v419 = vadd.f32 %v418, %v356
  %v420 = vadd.f32 %v419, %v357
  %v421 = vadd.f32 %v420, %v358
  %v422 = vadd.f32 %v421, %v359
  %v423 = vadd.f32 %v422, %v360
  %v424 = vadd.f32 %v423, %v361
  %v425 = vadd.f32 %v424, %v362
  %v426 = vadd.f32 %v425, %v363
  %v427 = vadd.f32 %v426, %v364
  %v428 = vadd.f32 %v427, %v365
  %v429 = vadd.f32 %v428, %v366
  %v430 = vadd.f32 %v429, %v367
  %v431 = vadd.f32 %v430, %v368
  %v432 = vadd.f32 %v431, %v369
  %v433 = vadd.f32 %v432, %v370
  %v434 = vadd.f32 %v433, %v371
  %v435 = vadd.f32 %v434, %v372
  %v436 = vadd.f32 %v435, %v373
  %v437 = vadd.f32 %v436, %v374
  %v438 = vadd.f32 %v437, %v375
  %v439 = vadd.f32 %v438, %v376
  %v440 = vadd.f32 %v439, %v377
  %v441 = vadd.f32 %v440, %v378
  %v442 = vadd.f32 %v441, %v379
  %v443 = vadd.f32 %v442, %v380
  %v444 = vadd.f32 %v443, %v381
  %v445 = vadd.f32 %v444, %v382
  %v446 = vadd.f32 %v445, %v383
  %v447 = vadd.f32 %v446, %v384
  %v448 = vadd.f32 %v447, %v385
  %v449 = vadd.f32 %v448, %v386
  %v450 = vadd.f32 %v449, %v387
  %v451 = vadd.f32 %v450, %v388
  %v452 = vadd.f32 %v451, %v389
  %v453 = vadd.f32 %v452, %v390
  %v454 = vadd.f32 %v453, %v391
  %v455 = vadd.f32 %v454, %v392
  %v456 = vadd.f32 %v455, %v393
  %v457 = vadd.f32 %v456, %v394
  %v458 = vadd.f32 %v457, %v395
  %v459 = vadd.f32 %v458, %v396
  %v460 = vadd.f32 %v459, %v397
  %v461 = vadd.f32 %v460, %v398
  %v462 = vadd.f32 %v461, %v399
  %v463 = vadd.f32 %v462, %v400
  %v464 = vadd.f32 %v463, %v401
  %v465 = vadd.f32 %v464, %v402
  %v466 = vadd.f32 %v465, %v403
  %v467 = vadd.f32 %v466, %v404
  %468 = vadd.xlane.f32.xlu0 %v467
  %v469 = vpop.xlane.xlu0 %468
  %v470 = vmul.f32 %v469, 0.00012207031
  %v471 = vadd.f32 %v470, 1e-05
  %v472 = vrsqrt.pop %v471
  %v473 = vmul.f32 %v472, %v471
  %v474 = vmul.f32 %v473, %v472
  %v475 = vmul.f32 0.5, %v474
  %v476 = vsub.f32 1.5, %v475
  %v477 = vmul.f32 %v472, %v476
  %vm478 = vweird.f32 %v471
  %vm479 = vweird.f32 %v472
  %vm480 = vmor %vm478, %vm479
  %v481 = vsel %vm480, %v472, %v477
  %v482 = vmul.f32 %v277, %v481
  %v483 = vmul.f32 %v278, %v481
  %v484 = vmul.f32 %v279, %v481
  %v485 = vmul.f32 %v280, %v481
  %v486 = vmul.f32 %v281, %v481
  %v487 = vmul.f32 %v282, %v481
  %v488 = vmul.f32 %v283, %v481
  %v489 = vmul.f32 %v284, %v481
  %v490 = vmul.f32 %v285, %v481
  %v491 = vmul.f32 %v286, %v481
  %v492 = vmul.f32 %v287, %v481
  %v493 = vmul.f32 %v288, %v481
  %v494 = vmul.f32 %v289, %v481
  %v495 = vmul.f32 %v290, %v481
  %v496 = vmul.f32 %v291, %v481
  %v497 = vmul.f32 %v292, %v481
  %v498 = vmul.f32 %v293, %v481
  %v499 = vmul.f32 %v294, %v481
  %v500 = vmul.f32 %v295, %v481
  %v501 = vmul.f32 %v296, %v481
  %v502 = vmul.f32 %v297, %v481
  %v503 = vmul.f32 %v298, %v481
  %v504 = vmul.f32 %v299, %v481
  %v505 = vmul.f32 %v300, %v481
  %v506 = vmul.f32 %v301, %v481
  %v507 = vmul.f32 %v302, %v481
  %v508 = vmul.f32 %v303, %v481
  %v509 = vmul.f32 %v304, %v481
  %v510 = vmul.f32 %v305, %v481
  %v511 = vmul.f32 %v306, %v481
  %v512 = vmul.f32 %v307, %v481
  %v513 = vmul.f32 %v308, %v481
  %v514 = vmul.f32 %v309, %v481
  %v515 = vmul.f32 %v310, %v481
  %v516 = vmul.f32 %v311, %v481
  %v517 = vmul.f32 %v312, %v481
  %v518 = vmul.f32 %v313, %v481
  %v519 = vmul.f32 %v314, %v481
  %v520 = vmul.f32 %v315, %v481
  %v521 = vmul.f32 %v316, %v481
  %v522 = vmul.f32 %v317, %v481
  %v523 = vmul.f32 %v318, %v481
  %v524 = vmul.f32 %v319, %v481
  %v525 = vmul.f32 %v320, %v481
  %v526 = vmul.f32 %v321, %v481
  %v527 = vmul.f32 %v322, %v481
  %v528 = vmul.f32 %v323, %v481
  %v529 = vmul.f32 %v324, %v481
  %v530 = vmul.f32 %v325, %v481
  %v531 = vmul.f32 %v326, %v481
  %v532 = vmul.f32 %v327, %v481
  %v533 = vmul.f32 %v328, %v481
  %v534 = vmul.f32 %v329, %v481
  %v535 = vmul.f32 %v330, %v481
  %v536 = vmul.f32 %v331, %v481
  %v537 = vmul.f32 %v332, %v481
  %v538 = vmul.f32 %v333, %v481
  %v539 = vmul.f32 %v334, %v481
  %v540 = vmul.f32 %v335, %v481
  %v541 = vmul.f32 %v336, %v481
  %v542 = vmul.f32 %v337, %v481
  %v543 = vmul.f32 %v338, %v481
  %v544 = vmul.f32 %v339, %v481
  %v545 = vmul.f32 %v340, %v481
  %547 = vset.pattern.permute.xlu0 0
  %548 = vperm.xlu0 %547, %v209
  %v549 = vpop.permute.xlu0 %548
  %v551 = vmul.f32 %v482, %v549
  %v552 = vmul.f32 %v483, %v549
  %v553 = vmul.f32 %v484, %v549
  %v554 = vmul.f32 %v485, %v549
  %v555 = vmul.f32 %v486, %v549
  %v556 = vmul.f32 %v487, %v549
  %v557 = vmul.f32 %v488, %v549
  %v558 = vmul.f32 %v489, %v549
  %v559 = vmul.f32 %v490, %v549
  %v560 = vmul.f32 %v491, %v549
  %v561 = vmul.f32 %v492, %v549
  %v562 = vmul.f32 %v493, %v549
  %v563 = vmul.f32 %v494, %v549
  %v564 = vmul.f32 %v495, %v549
  %v565 = vmul.f32 %v496, %v549
  %v566 = vmul.f32 %v497, %v549
  %v567 = vmul.f32 %v498, %v549
  %v568 = vmul.f32 %v499, %v549
  %v569 = vmul.f32 %v500, %v549
  %v570 = vmul.f32 %v501, %v549
  %v571 = vmul.f32 %v502, %v549
  %v572 = vmul.f32 %v503, %v549
  %v573 = vmul.f32 %v504, %v549
  %v574 = vmul.f32 %v505, %v549
  %v575 = vmul.f32 %v506, %v549
  %v576 = vmul.f32 %v507, %v549
  %v577 = vmul.f32 %v508, %v549
  %v578 = vmul.f32 %v509, %v549
  %v579 = vmul.f32 %v510, %v549
  %v580 = vmul.f32 %v511, %v549
  %v581 = vmul.f32 %v512, %v549
  %v582 = vmul.f32 %v513, %v549
  %v583 = vmul.f32 %v514, %v549
  %v584 = vmul.f32 %v515, %v549
  %v585 = vmul.f32 %v516, %v549
  %v586 = vmul.f32 %v517, %v549
  %v587 = vmul.f32 %v518, %v549
  %v588 = vmul.f32 %v519, %v549
  %v589 = vmul.f32 %v520, %v549
  %v590 = vmul.f32 %v521, %v549
  %v591 = vmul.f32 %v522, %v549
  %v592 = vmul.f32 %v523, %v549
  %v593 = vmul.f32 %v524, %v549
  %v594 = vmul.f32 %v525, %v549
  %v595 = vmul.f32 %v526, %v549
  %v596 = vmul.f32 %v527, %v549
  %v597 = vmul.f32 %v528, %v549
  %v598 = vmul.f32 %v529, %v549
  %v599 = vmul.f32 %v530, %v549
  %v600 = vmul.f32 %v531, %v549
  %v601 = vmul.f32 %v532, %v549
  %v602 = vmul.f32 %v533, %v549
  %v603 = vmul.f32 %v534, %v549
  %v604 = vmul.f32 %v535, %v549
  %v605 = vmul.f32 %v536, %v549
  %v606 = vmul.f32 %v537, %v549
  %v607 = vmul.f32 %v538, %v549
  %v608 = vmul.f32 %v539, %v549
  %v609 = vmul.f32 %v540, %v549
  %v610 = vmul.f32 %v541, %v549
  %v611 = vmul.f32 %v542, %v549
  %v612 = vmul.f32 %v543, %v549
  %v613 = vmul.f32 %v544, %v549
  %v614 = vmul.f32 %v545, %v549
  %616 = vset.pattern.permute.xlu0 0
  %617 = vperm.xlu0 %616, %v210
  %v618 = vpop.permute.xlu0 %617
  %v620 = vadd.f32 %v551, %v618
  %v621 = vadd.f32 %v552, %v618
  %v622 = vadd.f32 %v553, %v618
  %v623 = vadd.f32 %v554, %v618
  %v624 = vadd.f32 %v555, %v618
  %v625 = vadd.f32 %v556, %v618
  %v626 = vadd.f32 %v557, %v618
  %v627 = vadd.f32 %v558, %v618
  %v628 = vadd.f32 %v559, %v618
  %v629 = vadd.f32 %v560, %v618
  %v630 = vadd.f32 %v561, %v618
  %v631 = vadd.f32 %v562, %v618
  %v632 = vadd.f32 %v563, %v618
  %v633 = vadd.f32 %v564, %v618
  %v634 = vadd.f32 %v565, %v618
  %v635 = vadd.f32 %v566, %v618
  %v636 = vadd.f32 %v567, %v618
  %v637 = vadd.f32 %v568, %v618
  %v638 = vadd.f32 %v569, %v618
  %v639 = vadd.f32 %v570, %v618
  %v640 = vadd.f32 %v571, %v618
  %v641 = vadd.f32 %v572, %v618
  %v642 = vadd.f32 %v573, %v618
  %v643 = vadd.f32 %v574, %v618
  %v644 = vadd.f32 %v575, %v618
  %v645 = vadd.f32 %v576, %v618
  %v646 = vadd.f32 %v577, %v618
  %v647 = vadd.f32 %v578, %v618
  %v648 = vadd.f32 %v579, %v618
  %v649 = vadd.f32 %v580, %v618
  %v650 = vadd.f32 %v581, %v618
  %v651 = vadd.f32 %v582, %v618
  %v652 = vadd.f32 %v583, %v618
  %v653 = vadd.f32 %v584, %v618
  %v654 = vadd.f32 %v585, %v618
  %v655 = vadd.f32 %v586, %v618
  %v656 = vadd.f32 %v587, %v618
  %v657 = vadd.f32 %v588, %v618
  %v658 = vadd.f32 %v589, %v618
  %v659 = vadd.f32 %v590, %v618
  %v660 = vadd.f32 %v591, %v618
  %v661 = vadd.f32 %v592, %v618
  %v662 = vadd.f32 %v593, %v618
  %v663 = vadd.f32 %v594, %v618
  %v664 = vadd.f32 %v595, %v618
  %v665 = vadd.f32 %v596, %v618
  %v666 = vadd.f32 %v597, %v618
  %v667 = vadd.f32 %v598, %v618
  %v668 = vadd.f32 %v599, %v618
  %v669 = vadd.f32 %v600, %v618
  %v670 = vadd.f32 %v601, %v618
  %v671 = vadd.f32 %v602, %v618
  %v672 = vadd.f32 %v603, %v618
  %v673 = vadd.f32 %v604, %v618
  %v674 = vadd.f32 %v605, %v618
  %v675 = vadd.f32 %v606, %v618
  %v676 = vadd.f32 %v607, %v618
  %v677 = vadd.f32 %v608, %v618
  %v678 = vadd.f32 %v609, %v618
  %v679 = vadd.f32 %v610, %v618
  %v680 = vadd.f32 %v611, %v618
  %v681 = vadd.f32 %v612, %v618
  %v682 = vadd.f32 %v613, %v618
  %v683 = vadd.f32 %v614, %v618
  %vm684 = vcmp.gt.f32.partialorder %v620, 0.0
  %vm685 = vcmp.gt.f32.partialorder %v621, 0.0
  %vm686 = vcmp.gt.f32.partialorder %v622, 0.0
  %vm687 = vcmp.gt.f32.partialorder %v623, 0.0
  %vm688 = vcmp.gt.f32.partialorder %v624, 0.0
  %vm689 = vcmp.gt.f32.partialorder %v625, 0.0
  %vm690 = vcmp.gt.f32.partialorder %v626, 0.0
  %vm691 = vcmp.gt.f32.partialorder %v627, 0.0
  %vm692 = vcmp.gt.f32.partialorder %v628, 0.0
  %vm693 = vcmp.gt.f32.partialorder %v629, 0.0
  %vm694 = vcmp.gt.f32.partialorder %v630, 0.0
  %vm695 = vcmp.gt.f32.partialorder %v631, 0.0
  %vm696 = vcmp.gt.f32.partialorder %v632, 0.0
  %vm697 = vcmp.gt.f32.partialorder %v633, 0.0
  %vm698 = vcmp.gt.f32.partialorder %v634, 0.0
  %vm699 = vcmp.gt.f32.partialorder %v635, 0.0
  %vm700 = vcmp.gt.f32.partialorder %v636, 0.0
  %vm701 = vcmp.gt.f32.partialorder %v637, 0.0
  %vm702 = vcmp.gt.f32.partialorder %v638, 0.0
  %vm703 = vcmp.gt.f32.partialorder %v639, 0.0
  %vm704 = vcmp.gt.f32.partialorder %v640, 0.0
  %vm705 = vcmp.gt.f32.partialorder %v641, 0.0
  %vm706 = vcmp.gt.f32.partialorder %v642, 0.0
  %vm707 = vcmp.gt.f32.partialorder %v643, 0.0
  %vm708 = vcmp.gt.f32.partialorder %v644, 0.0
  %vm709 = vcmp.gt.f32.partialorder %v645, 0.0
  %vm710 = vcmp.gt.f32.partialorder %v646, 0.0
  %vm711 = vcmp.gt.f32.partialorder %v647, 0.0
  %vm712 = vcmp.gt.f32.partialorder %v648, 0.0
  %vm713 = vcmp.gt.f32.partialorder %v649, 0.0
  %vm714 = vcmp.gt.f32.partialorder %v650, 0.0
  %vm715 = vcmp.gt.f32.partialorder %v651, 0.0
  %vm716 = vcmp.gt.f32.partialorder %v652, 0.0
  %vm717 = vcmp.gt.f32.partialorder %v653, 0.0
  %vm718 = vcmp.gt.f32.partialorder %v654, 0.0
  %vm719 = vcmp.gt.f32.partialorder %v655, 0.0
  %vm720 = vcmp.gt.f32.partialorder %v656, 0.0
  %vm721 = vcmp.gt.f32.partialorder %v657, 0.0
  %vm722 = vcmp.gt.f32.partialorder %v658, 0.0
  %vm723 = vcmp.gt.f32.partialorder %v659, 0.0
  %vm724 = vcmp.gt.f32.partialorder %v660, 0.0
  %vm725 = vcmp.gt.f32.partialorder %v661, 0.0
  %vm726 = vcmp.gt.f32.partialorder %v662, 0.0
  %vm727 = vcmp.gt.f32.partialorder %v663, 0.0
  %vm728 = vcmp.gt.f32.partialorder %v664, 0.0
  %vm729 = vcmp.gt.f32.partialorder %v665, 0.0
  %vm730 = vcmp.gt.f32.partialorder %v666, 0.0
  %vm731 = vcmp.gt.f32.partialorder %v667, 0.0
  %vm732 = vcmp.gt.f32.partialorder %v668, 0.0
  %vm733 = vcmp.gt.f32.partialorder %v669, 0.0
  %vm734 = vcmp.gt.f32.partialorder %v670, 0.0
  %vm735 = vcmp.gt.f32.partialorder %v671, 0.0
  %vm736 = vcmp.gt.f32.partialorder %v672, 0.0
  %vm737 = vcmp.gt.f32.partialorder %v673, 0.0
  %vm738 = vcmp.gt.f32.partialorder %v674, 0.0
  %vm739 = vcmp.gt.f32.partialorder %v675, 0.0
  %vm740 = vcmp.gt.f32.partialorder %v676, 0.0
  %vm741 = vcmp.gt.f32.partialorder %v677, 0.0
  %vm742 = vcmp.gt.f32.partialorder %v678, 0.0
  %vm743 = vcmp.gt.f32.partialorder %v679, 0.0
  %vm744 = vcmp.gt.f32.partialorder %v680, 0.0
  %vm745 = vcmp.gt.f32.partialorder %v681, 0.0
  %vm746 = vcmp.gt.f32.partialorder %v682, 0.0
  %vm747 = vcmp.gt.f32.partialorder %v683, 0.0
  %v748 = vmul.f32 %v620, 0.2
  %v749 = vmul.f32 %v621, 0.2
  %v750 = vmul.f32 %v622, 0.2
  %v751 = vmul.f32 %v623, 0.2
  %v752 = vmul.f32 %v624, 0.2
  %v753 = vmul.f32 %v625, 0.2
  %v754 = vmul.f32 %v626, 0.2
  %v755 = vmul.f32 %v627, 0.2
  %v756 = vmul.f32 %v628, 0.2
  %v757 = vmul.f32 %v629, 0.2
  %v758 = vmul.f32 %v630, 0.2
  %v759 = vmul.f32 %v631, 0.2
  %v760 = vmul.f32 %v632, 0.2
  %v761 = vmul.f32 %v633, 0.2
  %v762 = vmul.f32 %v634, 0.2
  %v763 = vmul.f32 %v635, 0.2
  %v764 = vmul.f32 %v636, 0.2
  %v765 = vmul.f32 %v637, 0.2
  %v766 = vmul.f32 %v638, 0.2
  %v767 = vmul.f32 %v639, 0.2
  %v768 = vmul.f32 %v640, 0.2
  %v769 = vmul.f32 %v641, 0.2
  %v770 = vmul.f32 %v642, 0.2
  %v771 = vmul.f32 %v643, 0.2
  %v772 = vmul.f32 %v644, 0.2
  %v773 = vmul.f32 %v645, 0.2
  %v774 = vmul.f32 %v646, 0.2
  %v775 = vmul.f32 %v647, 0.2
  %v776 = vmul.f32 %v648, 0.2
  %v777 = vmul.f32 %v649, 0.2
  %v778 = vmul.f32 %v650, 0.2
  %v779 = vmul.f32 %v651, 0.2
  %v780 = vmul.f32 %v652, 0.2
  %v781 = vmul.f32 %v653, 0.2
  %v782 = vmul.f32 %v654, 0.2
  %v783 = vmul.f32 %v655, 0.2
  %v784 = vmul.f32 %v656, 0.2
  %v785 = vmul.f32 %v657, 0.2
  %v786 = vmul.f32 %v658, 0.2
  %v787 = vmul.f32 %v659, 0.2
  %v788 = vmul.f32 %v660, 0.2
  %v789 = vmul.f32 %v661, 0.2
  %v790 = vmul.f32 %v662, 0.2
  %v791 = vmul.f32 %v663, 0.2
  %v792 = vmul.f32 %v664, 0.2
  %v793 = vmul.f32 %v665, 0.2
  %v794 = vmul.f32 %v666, 0.2
  %v795 = vmul.f32 %v667, 0.2
  %v796 = vmul.f32 %v668, 0.2
  %v797 = vmul.f32 %v669, 0.2
  %v798 = vmul.f32 %v670, 0.2
  %v799 = vmul.f32 %v671, 0.2
  %v800 = vmul.f32 %v672, 0.2
  %v801 = vmul.f32 %v673, 0.2
  %v802 = vmul.f32 %v674, 0.2
  %v803 = vmul.f32 %v675, 0.2
  %v804 = vmul.f32 %v676, 0.2
  %v805 = vmul.f32 %v677, 0.2
  %v806 = vmul.f32 %v678, 0.2
  %v807 = vmul.f32 %v679, 0.2
  %v808 = vmul.f32 %v680, 0.2
  %v809 = vmul.f32 %v681, 0.2
  %v810 = vmul.f32 %v682, 0.2
  %v811 = vmul.f32 %v683, 0.2
  %v812 = vsel %vm684, %v620, %v748
  %v813 = vsel %vm685, %v621, %v749
  %v814 = vsel %vm686, %v622, %v750
  %v815 = vsel %vm687, %v623, %v751
  %v816 = vsel %vm688, %v624, %v752
  %v817 = vsel %vm689, %v625, %v753
  %v818 = vsel %vm690, %v626, %v754
  %v819 = vsel %vm691, %v627, %v755
  %v820 = vsel %vm692, %v628, %v756
  %v821 = vsel %vm693, %v629, %v757
  %v822 = vsel %vm694, %v630, %v758
  %v823 = vsel %vm695, %v631, %v759
  %v824 = vsel %vm696, %v632, %v760
  %v825 = vsel %vm697, %v633, %v761
  %v826 = vsel %vm698, %v634, %v762
  %v827 = vsel %vm699, %v635, %v763
  %v828 = vsel %vm700, %v636, %v764
  %v829 = vsel %vm701, %v637, %v765
  %v830 = vsel %vm702, %v638, %v766
  %v831 = vsel %vm703, %v639, %v767
  %v832 = vsel %vm704, %v640, %v768
  %v833 = vsel %vm705, %v641, %v769
  %v834 = vsel %vm706, %v642, %v770
  %v835 = vsel %vm707, %v643, %v771
  %v836 = vsel %vm708, %v644, %v772
  %v837 = vsel %vm709, %v645, %v773
  %v838 = vsel %vm710, %v646, %v774
  %v839 = vsel %vm711, %v647, %v775
  %v840 = vsel %vm712, %v648, %v776
  %v841 = vsel %vm713, %v649, %v777
  %v842 = vsel %vm714, %v650, %v778
  %v843 = vsel %vm715, %v651, %v779
  %v844 = vsel %vm716, %v652, %v780
  %v845 = vsel %vm717, %v653, %v781
  %v846 = vsel %vm718, %v654, %v782
  %v847 = vsel %vm719, %v655, %v783
  %v848 = vsel %vm720, %v656, %v784
  %v849 = vsel %vm721, %v657, %v785
  %v850 = vsel %vm722, %v658, %v786
  %v851 = vsel %vm723, %v659, %v787
  %v852 = vsel %vm724, %v660, %v788
  %v853 = vsel %vm725, %v661, %v789
  %v854 = vsel %vm726, %v662, %v790
  %v855 = vsel %vm727, %v663, %v791
  %v856 = vsel %vm728, %v664, %v792
  %v857 = vsel %vm729, %v665, %v793
  %v858 = vsel %vm730, %v666, %v794
  %v859 = vsel %vm731, %v667, %v795
  %v860 = vsel %vm732, %v668, %v796
  %v861 = vsel %vm733, %v669, %v797
  %v862 = vsel %vm734, %v670, %v798
  %v863 = vsel %vm735, %v671, %v799
  %v864 = vsel %vm736, %v672, %v800
  %v865 = vsel %vm737, %v673, %v801
  %v866 = vsel %vm738, %v674, %v802
  %v867 = vsel %vm739, %v675, %v803
  %v868 = vsel %vm740, %v676, %v804
  %v869 = vsel %vm741, %v677, %v805
  %v870 = vsel %vm742, %v678, %v806
  %v871 = vsel %vm743, %v679, %v807
  %v872 = vsel %vm744, %v680, %v808
  %v873 = vsel %vm745, %v681, %v809
  %v874 = vsel %vm746, %v682, %v810
  %v875 = vsel %vm747, %v683, %v811
  %876 = vst [vmem:[%s4] sm:$0xff] %v812
  %877 = vst [vmem:[%s4 + $0x8] sm:$0xff] %v813
  %878 = vst [vmem:[%s4 + $0x10] sm:$0xff] %v814
  %879 = vst [vmem:[%s4 + $0x18] sm:$0xff] %v815
  %880 = vst [vmem:[%s4 + $0x20] sm:$0xff] %v816
  %881 = vst [vmem:[%s4 + $0x28] sm:$0xff] %v817
  %882 = vst [vmem:[%s4 + $0x30] sm:$0xff] %v818
  %883 = vst [vmem:[%s4 + $0x38] sm:$0xff] %v819
  %884 = vst [vmem:[%s4 + $0x40] sm:$0xff] %v820
  %885 = vst [vmem:[%s4 + $0x48] sm:$0xff] %v821
  %886 = vst [vmem:[%s4 + $0x50] sm:$0xff] %v822
  %887 = vst [vmem:[%s4 + $0x58] sm:$0xff] %v823
  %888 = vst [vmem:[%s4 + $0x60] sm:$0xff] %v824
  %889 = vst [vmem:[%s4 + $0x68] sm:$0xff] %v825
  %890 = vst [vmem:[%s4 + $0x70] sm:$0xff] %v826
  %891 = vst [vmem:[%s4 + $0x78] sm:$0xff] %v827
  %892 = vst [vmem:[%s4 + $0x80] sm:$0xff] %v828
  %893 = vst [vmem:[%s4 + $0x88] sm:$0xff] %v829
  %894 = vst [vmem:[%s4 + $0x90] sm:$0xff] %v830
  %895 = vst [vmem:[%s4 + $0x98] sm:$0xff] %v831
  %896 = vst [vmem:[%s4 + $0xa0] sm:$0xff] %v832
  %897 = vst [vmem:[%s4 + $0xa8] sm:$0xff] %v833
  %898 = vst [vmem:[%s4 + $0xb0] sm:$0xff] %v834
  %899 = vst [vmem:[%s4 + $0xb8] sm:$0xff] %v835
  %900 = vst [vmem:[%s4 + $0xc0] sm:$0xff] %v836
  %901 = vst [vmem:[%s4 + $0xc8] sm:$0xff] %v837
  %902 = vst [vmem:[%s4 + $0xd0] sm:$0xff] %v838
  %903 = vst [vmem:[%s4 + $0xd8] sm:$0xff] %v839
  %904 = vst [vmem:[%s4 + $0xe0] sm:$0xff] %v840
  %905 = vst [vmem:[%s4 + $0xe8] sm:$0xff] %v841
  %906 = vst [vmem:[%s4 + $0xf0] sm:$0xff] %v842
  %907 = vst [vmem:[%s4 + $0xf8] sm:$0xff] %v843
  %908 = vst [vmem:[%s4 + $0x100] sm:$0xff] %v844
  %909 = vst [vmem:[%s4 + $0x108] sm:$0xff] %v845
  %910 = vst [vmem:[%s4 + $0x110] sm:$0xff] %v846
  %911 = vst [vmem:[%s4 + $0x118] sm:$0xff] %v847
  %912 = vst [vmem:[%s4 + $0x120] sm:$0xff] %v848
  %913 = vst [vmem:[%s4 + $0x128] sm:$0xff] %v849
  %914 = vst [vmem:[%s4 + $0x130] sm:$0xff] %v850
  %915 = vst [vmem:[%s4 + $0x138] sm:$0xff] %v851
  %916 = vst [vmem:[%s4 + $0x140] sm:$0xff] %v852
  %917 = vst [vmem:[%s4 + $0x148] sm:$0xff] %v853
  %918 = vst [vmem:[%s4 + $0x150] sm:$0xff] %v854
  %919 = vst [vmem:[%s4 + $0x158] sm:$0xff] %v855
  %920 = vst [vmem:[%s4 + $0x160] sm:$0xff] %v856
  %921 = vst [vmem:[%s4 + $0x168] sm:$0xff] %v857
  %922 = vst [vmem:[%s4 + $0x170] sm:$0xff] %v858
  %923 = vst [vmem:[%s4 + $0x178] sm:$0xff] %v859
  %924 = vst [vmem:[%s4 + $0x180] sm:$0xff] %v860
  %925 = vst [vmem:[%s4 + $0x188] sm:$0xff] %v861
  %926 = vst [vmem:[%s4 + $0x190] sm:$0xff] %v862
  %927 = vst [vmem:[%s4 + $0x198] sm:$0xff] %v863
  %928 = vst [vmem:[%s4 + $0x1a0] sm:$0xff] %v864
  %929 = vst [vmem:[%s4 + $0x1a8] sm:$0xff] %v865
  %930 = vst [vmem:[%s4 + $0x1b0] sm:$0xff] %v866
  %931 = vst [vmem:[%s4 + $0x1b8] sm:$0xff] %v867
  %932 = vst [vmem:[%s4 + $0x1c0] sm:$0xff] %v868
  %933 = vst [vmem:[%s4 + $0x1c8] sm:$0xff] %v869
  %934 = vst [vmem:[%s4 + $0x1d0] sm:$0xff] %v870
  %935 = vst [vmem:[%s4 + $0x1d8] sm:$0xff] %v871
  %936 = vst [vmem:[%s4 + $0x1e0] sm:$0xff] %v872
  %937 = vst [vmem:[%s4 + $0x1e8] sm:$0xff] %v873
  %938 = vst [vmem:[%s4 + $0x1f0] sm:$0xff] %v874
  %939 = vst [vmem:[%s4 + $0x1f8] sm:$0xff] %v875
  // Predicated region
  $region18: #{jigsaw_block_forward.10} parent=0 // pred_check
    _
  $region19: #{jigsaw_block_forward.10} parent=0 // pred_check_branch
    %941 = sbr.rel (0) target = $region21
  $region20: #{jigsaw_block_forward.10} parent=0 // pred_region
    _
  $region21: #{jigsaw_block_forward.10} parent=0 // pred_fallthru
    _
  // Predicated region
  $region22: #{jigsaw_block_forward.10} parent=0 // pred_check
    _
  $region23: #{jigsaw_block_forward.10} parent=0 // pred_check_branch
    %943 = sbr.rel (0) target = $region25
  $region24: #{jigsaw_block_forward.10} parent=0 // pred_region
    _
  $region25: #{jigsaw_block_forward.10} parent=0 // pred_fallthru
    _

// kernel: jigsaw_block_forward.11
$region0: #{jigsaw_block_forward.11}
  #allocation0 [shape = 'u32[]', space=smem, size = 0x4, offset = 0x4, fixed_abs, tag = 'smem constant byte address 0x4 - core index']
  #allocation1 [shape = 'u32[72,128]{1,0:T(1,128)}', space=vmem, size = 0x9000, scoped, tag = 'internal scratch']
  %s0 = inlined_call_operand.vmem [shape: f32[8,216], index: 0, kind: input, shape index: {}]
  %s1 = inlined_call_operand.vmem [shape: f32[216,8192], index: 1, kind: input, shape index: {}]
  %s2 = inlined_call_operand.vmem [shape: f32[8,1], index: 2, kind: input, shape index: {}]
  %s3 = inlined_call_operand.vmem [shape: f32[8,8192], index: 3, kind: output, shape index: {}]
  %s4 = sld [smem:[#allocation0]]
  $region68: #{jigsaw_block_forward.11} parent=0
    _
  %s6 = ssub.s32 1, %s4
  %s7 = scalar_select 0, %s6, %s4
  $region1: #{jigsaw_block_forward.11} parent=0
    #allocation2 [shape = 'u8[3538944]{0}', space=vmem, size = 0x360000, scoped, tag = 'input window, operand 1']
    loop: start=0, step=1, limit=6
    $region2: #{jigsaw_block_forward.11} parent=1 // loop_pre_header
      _
    $region3: #{jigsaw_block_forward.11} parent=1 // loop_header
      %s9 = sphi 0, %s13
      %p10 = scmp.ge.s32.totalorder %s9, 6
      %s17 = sphi 0, %s17
      %s19 = sphi 0, %s17
      %s20 = sphi 0, %s19
      %s34 = sphi 0, %s20
      %s40 = sphi 0, %s42
      %s43 = sphi 0, %s40
      %s44 = sphi 0, %s43
      %s60 = sphi 0, %s44
      %s64 = sphi 0, %s64
      %s66 = sphi 0, %s64
      %s67 = sphi 0, %s66
      %s81 = sphi 0, %s67
      %s87 = sphi 0, %s89
      %s90 = sphi 0, %s87
      %s91 = sphi 0, %s90
      %s107 = sphi 0, %s91
    $region4: #{jigsaw_block_forward.11} parent=1 // loop_header_branch
      %12 = sbr.rel (%p10) target = $region8
    $region5: #{jigsaw_block_forward.11} parent=1 // loop_body
      %s14 = ssub.s32 %s9, 1
      %s15 = ssub.s32 %s9, 2
      %s16 = sadd.s32 %s9, 1
      %s18 = sadd.s32 %s17, 1
      %p21 = scmp.eq.s32.totalorder %s9, 3
      %p22 = scmp.ne.s32.totalorder %s17, %s19
      %p23 = scmp.eq.s32.totalorder %s9, 0
      %p24 = por %p22, %p23
      %p25 = scmp.ne.s32.totalorder %s17, %s19
      %p26 = scmp.eq.s32.totalorder %s14, 3
      %p27 = por %p25, %p26
      %p28 = scmp.ne.s32.totalorder %s19, %s20
      %p29 = scmp.eq.s32.totalorder %s14, 0
      %p30 = por %p28, %p29
      %p31 = scmp.ne.s32.totalorder %s19, %s20
      %p32 = scmp.eq.s32.totalorder %s15, 3
      %p33 = por %p31, %p32
      %p35 = scmp.ne.s32.totalorder %s20, %s34
      %p36 = scmp.eq.s32.totalorder %s15, 0
      %p37 = por %p35, %p36
      %s38 = ssub.s32 %s9, %s16
      %p39 = scmp.eq.s32.totalorder %s38, 0
      %s41 = sadd.s32 %s40, 1
      %s42 = scalar_select %p39, %s40, %s41
      %p45 = pneg %p39
      %p46 = scmp.eq.s32.totalorder %s9, 3
      %p47 = por %p45, %p46
      %p48 = scmp.ne.s32.totalorder %s40, %s43
      %p49 = scmp.eq.s32.totalorder %s9, 0
      %p50 = por %p48, %p49
      %p51 = scmp.ne.s32.totalorder %s40, %s43
      %p52 = scmp.eq.s32.totalorder %s14, 3
      %p53 = por %p51, %p52
      %p54 = scmp.ne.s32.totalorder %s43, %s44
      %p55 = scmp.eq.s32.totalorder %s14, 0
      %p56 = por %p54, %p55
      %p57 = scmp.ne.s32.totalorder %s43, %s44
      %p58 = scmp.eq.s32.totalorder %s15, 3
      %p59 = por %p57, %p58
      %p61 = scmp.ne.s32.totalorder %s44, %s60
      %p62 = scmp.eq.s32.totalorder %s15, 0
      %p63 = por %p61, %p62
      %s65 = sadd.s32 %s64, 1
      %p68 = scmp.eq.s32.totalorder %s9, 3
      %p69 = scmp.ne.s32.totalorder %s64, %s66
      %p70 = scmp.eq.s32.totalorder %s9, 0
      %p71 = por %p69, %p70
      %p72 = scmp.ne.s32.totalorder %s64, %s66
      %p73 = scmp.eq.s32.totalorder %s14, 3
      %p74 = por %p72, %p73
      %p75 = scmp.ne.s32.totalorder %s66, %s67
      %p76 = scmp.eq.s32.totalorder %s14, 0
      %p77 = por %p75, %p76
      %p78 = scmp.ne.s32.totalorder %s66, %s67
      %p79 = scmp.eq.s32.totalorder %s15, 3
      %p80 = por %p78, %p79
      %p82 = scmp.ne.s32.totalorder %s67, %s81
      %p83 = scmp.eq.s32.totalorder %s15, 0
      %p84 = por %p82, %p83
      %s85 = ssub.s32 %s9, %s16
      %p86 = scmp.eq.s32.totalorder %s85, 0
      %s88 = sadd.s32 %s87, 1
      %s89 = scalar_select %p86, %s87, %s88
      %p92 = pneg %p86
      %p93 = scmp.eq.s32.totalorder %s9, 3
      %p94 = por %p92, %p93
      %p95 = scmp.ne.s32.totalorder %s87, %s90
      %p96 = scmp.eq.s32.totalorder %s9, 0
      %p97 = por %p95, %p96
      %p98 = scmp.ne.s32.totalorder %s87, %s90
      %p99 = scmp.eq.s32.totalorder %s14, 3
      %p100 = por %p98, %p99
      %p101 = scmp.ne.s32.totalorder %s90, %s91
      %p102 = scmp.eq.s32.totalorder %s14, 0
      %p103 = por %p101, %p102
      %p104 = scmp.ne.s32.totalorder %s90, %s91
      %p105 = scmp.eq.s32.totalorder %s15, 3
      %p106 = por %p104, %p105
      %p108 = scmp.ne.s32.totalorder %s91, %s107
      %p109 = scmp.eq.s32.totalorder %s15, 0
      %p110 = por %p108, %p109
      %p111 = scmp.le.s32.totalorder 1, %s9
      %p112 = scmp.lt.s32.totalorder %s9, 5
      %p113 = pnand %p111, %p112
      %p114 = pneg %p113
      // Predicated region
      $region9: #{jigsaw_block_forward.11} parent=5 // pred_check
        _
      $region10: #{jigsaw_block_forward.11} parent=5 // pred_check_branch
        %116 = sbr.rel (%p113) target = $region12
      $region11: #{jigsaw_block_forward.11} parent=5 // pred_region
        %s117 = ssub.s32 %s9, 1
        // Predicated region
        $region13: #{jigsaw_block_forward.11} parent=11 // pred_check
          %p118 = pneg %p30
        $region14: #{jigsaw_block_forward.11} parent=11 // pred_check_branch
          %120 = sbr.rel (%p118) target = $region16
        $region15: #{jigsaw_block_forward.11} parent=11 // pred_region
          _
        $region16: #{jigsaw_block_forward.11} parent=11 // pred_fallthru
          _
        // Predicated region
        $region17: #{jigsaw_block_forward.11} parent=11 // pred_check
          %p121 = pneg %p77
        $region18: #{jigsaw_block_forward.11} parent=11 // pred_check_branch
          %123 = sbr.rel (%p121) target = $region20
        $region19: #{jigsaw_block_forward.11} parent=11 // pred_region
          _
        $region20: #{jigsaw_block_forward.11} parent=11 // pred_fallthru
          _
      $region12: #{jigsaw_block_forward.11} parent=5 // pred_fallthru
        _
      %p124 = scmp.lt.s32.totalorder %s9, 4
      // Predicated region
      $region21: #{jigsaw_block_forward.11} parent=5 // pred_check
        %p125 = pneg %p124
      $region22: #{jigsaw_block_forward.11} parent=5 // pred_check_branch
        %127 = sbr.rel (%p125) target = $region24
      $region23: #{jigsaw_block_forward.11} parent=5 // pred_region
        // Predicated region
        $region25: #{jigsaw_block_forward.11} parent=23 // pred_check
          %p128 = pneg %p50
        $region26: #{jigsaw_block_forward.11} parent=23 // pred_check_branch
          %130 = sbr.rel (%p128) target = $region28
        $region27: #{jigsaw_block_forward.11} parent=23 // pred_region
          %s131 = sand.u32 %s40, 1
          %s132 = sand.u32 %s40, 1
          %s133 = smul.addr %s132, 3456
          %s134 = scalar_lea.vmem [#allocation2], %s133
          %s135 = smul.u32 16, %s9
          %s136 = smul.addr %s135, 8
          %s137 = scalar_lea.vmem %s1, %s136
          // Predicated region
          $region29: #{jigsaw_block_forward.11} parent=27 // pred_check
            _
          $region30: #{jigsaw_block_forward.11} parent=27 // pred_check_branch
            %139 = sbr.rel (0) target = $region32
          $region31: #{jigsaw_block_forward.11} parent=27 // pred_region
            // Predicated region
            $region33: #{jigsaw_block_forward.11} parent=31 // pred_check
              _
            $region34: #{jigsaw_block_forward.11} parent=31 // pred_check_branch
              %141 = sbr.rel (0) target = $region36
            $region35: #{jigsaw_block_forward.11} parent=31 // pred_region
              loop: start=0, step=1, limit=1
              $region37: #{jigsaw_block_forward.11} parent=35 // loop_pre_header
                _
              $region38: #{jigsaw_block_forward.11} parent=35 // loop_header
                %s143 = sphi 0, %s147
                %p144 = scmp.ge.s32.totalorder %s143, 1
                %s148 = sphi %s137, %s137
                %s149 = sphi %s134, %s134
              $region39: #{jigsaw_block_forward.11} parent=35 // loop_header_branch
                %146 = sbr.rel (%p144) target = $region43
              $region40: #{jigsaw_block_forward.11} parent=35 // loop_body
                %v150 = vld [vmem:[%s148] sm:$0xff]
                %151 = vst [vmem:[%s149] sm:$0xff] %v150
                %v152 = vld [vmem:[%s148 + $0x8] sm:$0xff]
                %153 = vst [vmem:[%s149 + $0x8] sm:$0xff] %v152
                %v154 = vld [vmem:[%s148 + $0x10] sm:$0xff]
                %155 = vst [vmem:[%s149 + $0x10] sm:$0xff] %v154
                %v156 = vld [vmem:[%s148 + $0x18] sm:$0xff]
                %157 = vst [vmem:[%s149 + $0x18] sm:$0xff] %v156
                %v158 = vld [vmem:[%s148 + $0x20] sm:$0xff]
                %159 = vst [vmem:[%s149 + $0x20] sm:$0xff] %v158
                %v160 = vld [vmem:[%s148 + $0x28] sm:$0xff]
                %161 = vst [vmem:[%s149 + $0x28] sm:$0xff] %v160
                %v162 = vld [vmem:[%s148 + $0x30] sm:$0xff]
                %163 = vst [vmem:[%s149 + $0x30] sm:$0xff] %v162
                %v164 = vld [vmem:[%s148 + $0x38] sm:$0xff]
                %165 = vst [vmem:[%s149 + $0x38] sm:$0xff] %v164
                %v166 = vld [vmem:[%s148 + $0x40] sm:$0xff]
                %167 = vst [vmem:[%s149 + $0x40] sm:$0xff] %v166
                %v168 = vld [vmem:[%s148 + $0x48] sm:$0xff]
                %169 = vst [vmem:[%s149 + $0x48] sm:$0xff] %v168
                %v170 = vld [vmem:[%s148 + $0x50] sm:$0xff]
                %171 = vst [vmem:[%s149 + $0x50] sm:$0xff] %v170
                %v172 = vld [vmem:[%s148 + $0x58] sm:$0xff]
                %173 = vst [vmem:[%s149 + $0x58] sm:$0xff] %v172
                %v174 = vld [vmem:[%s148 + $0x60] sm:$0xff]
                %175 = vst [vmem:[%s149 + $0x60] sm:$0xff] %v174
                %v176 = vld [vmem:[%s148 + $0x68] sm:$0xff]
                %177 = vst [vmem:[%s149 + $0x68] sm:$0xff] %v176
                %v178 = vld [vmem:[%s148 + $0x70] sm:$0xff]
                %179 = vst [vmem:[%s149 + $0x70] sm:$0xff] %v178
                %v180 = vld [vmem:[%s148 + $0x78] sm:$0xff]
                %181 = vst [vmem:[%s149 + $0x78] sm:$0xff] %v180
                %v182 = vld [vmem:[%s148 + $0x200] sm:$0xff]
                %183 = vst [vmem:[%s149 + $0x80] sm:$0xff] %v182
                %v184 = vld [vmem:[%s148 + $0x208] sm:$0xff]
                %185 = vst [vmem:[%s149 + $0x88] sm:$0xff] %v184
                %v186 = vld [vmem:[%s148 + $0x210] sm:$0xff]
                %187 = vst [vmem:[%s149 + $0x90] sm:$0xff] %v186
                %v188 = vld [vmem:[%s148 + $0x218] sm:$0xff]
                %189 = vst [vmem:[%s149 + $0x98] sm:$0xff] %v188
                %v190 = vld [vmem:[%s148 + $0x220] sm:$0xff]
                %191 = vst [vmem:[%s149 + $0xa0] sm:$0xff] %v190
                %v192 = vld [vmem:[%s148 + $0x228] sm:$0xff]
                %193 = vst [vmem:[%s149 + $0xa8] sm:$0xff] %v192
                %v194 = vld [vmem:[%s148 + $0x230] sm:$0xff]
                %195 = vst [vmem:[%s149 + $0xb0] sm:$0xff] %v194
                %v196 = vld [vmem:[%s148 + $0x238] sm:$0xff]
                %197 = vst [vmem:[%s149 + $0xb8] sm:$0xff] %v196
                %v198 = vld [vmem:[%s148 + $0x240] sm:$0xff]
                %199 = vst [vmem:[%s149 + $0xc0] sm:$0xff] %v198
                %v200 = vld [vmem:[%s148 + $0x248] sm:$0xff]
                %201 = vst [vmem:[%s149 + $0xc8] sm:$0xff] %v200
                %v202 = vld [vmem:[%s148 + $0x250] sm:$0xff]
                %203 = vst [vmem:[%s149 + $0xd0] sm:$0xff] %v202
                %v204 = vld [vmem:[%s148 + $0x258] sm:$0xff]
                %205 = vst [vmem:[%s149 + $0xd8] sm:$0xff] %v204
                %v206 = vld [vmem:[%s148 + $0x260] sm:$0xff]
                %207 = vst [vmem:[%s149 + $0xe0] sm:$0xff] %v206
                %v208 = vld [vmem:[%s148 + $0x268] sm:$0xff]
                %209 = vst [vmem:[%s149 + $0xe8] sm:$0xff] %v208
                %v210 = vld [vmem:[%s148 + $0x270] sm:$0xff]
                %211 = vst [vmem:[%s149 + $0xf0] sm:$0xff] %v210
                %v212 = vld [vmem:[%s148 + $0x278] sm:$0xff]
                %213 = vst [vmem:[%s149 + $0xf8] sm:$0xff] %v212
                %v214 = vld [vmem:[%s148 + $0x400] sm:$0xff]
                %215 = vst [vmem:[%s149 + $0x100] sm:$0xff] %v214
                %v216 = vld [vmem:[%s148 + $0x408] sm:$0xff]
                %217 = vst [vmem:[%s149 + $0x108] sm:$0xff] %v216
                %v218 = vld [vmem:[%s148 + $0x410] sm:$0xff]
                %219 = vst [vmem:[%s149 + $0x110] sm:$0xff] %v218
                %v220 = vld [vmem:[%s148 + $0x418] sm:$0xff]
                %221 = vst [vmem:[%s149 + $0x118] sm:$0xff] %v220
                %v222 = vld [vmem:[%s148 + $0x420] sm:$0xff]
                %223 = vst [vmem:[%s149 + $0x120] sm:$0xff] %v222
                %v224 = vld [vmem:[%s148 + $0x428] sm:$0xff]
                %225 = vst [vmem:[%s149 + $0x128] sm:$0xff] %v224
                %v226 = vld [vmem:[%s148 + $0x430] sm:$0xff]
                %227 = vst [vmem:[%s149 + $0x130] sm:$0xff] %v226
                %v228 = vld [vmem:[%s148 + $0x438] sm:$0xff]
                %229 = vst [vmem:[%s149 + $0x138] sm:$0xff] %v228
                %v230 = vld [vmem:[%s148 + $0x440] sm:$0xff]
                %231 = vst [vmem:[%s149 + $0x140] sm:$0xff] %v230
                %v232 = vld [vmem:[%s148 + $0x448] sm:$0xff]
                %233 = vst [vmem:[%s149 + $0x148] sm:$0xff] %v232
                %v234 = vld [vmem:[%s148 + $0x450] sm:$0xff]
                %235 = vst [vmem:[%s149 + $0x150] sm:$0xff] %v234
                %v236 = vld [vmem:[%s148 + $0x458] sm:$0xff]
                %237 = vst [vmem:[%s149 + $0x158] sm:$0xff] %v236
                %v238 = vld [vmem:[%s148 + $0x460] sm:$0xff]
                %239 = vst [vmem:[%s149 + $0x160] sm:$0xff] %v238
                %v240 = vld [vmem:[%s148 + $0x468] sm:$0xff]
                %241 = vst [vmem:[%s149 + $0x168] sm:$0xff] %v240
                %v242 = vld [vmem:[%s148 + $0x470] sm:$0xff]
                %243 = vst [vmem:[%s149 + $0x170] sm:$0xff] %v242
                %v244 = vld [vmem:[%s148 + $0x478] sm:$0xff]
                %245 = vst [vmem:[%s149 + $0x178] sm:$0xff] %v244
                %v246 = vld [vmem:[%s148 + $0x600] sm:$0xff]
                %247 = vst [vmem:[%s149 + $0x180] sm:$0xff] %v246
                %v248 = vld [vmem:[%s148 + $0x608] sm:$0xff]
                %249 = vst [vmem:[%s149 + $0x188] sm:$0xff] %v248
                %v250 = vld [vmem:[%s148 + $0x610] sm:$0xff]
                %251 = vst [vmem:[%s149 + $0x190] sm:$0xff] %v250
                %v252 = vld [vmem:[%s148 + $0x618] sm:$0xff]
                %253 = vst [vmem:[%s149 + $0x198] sm:$0xff] %v252
                %v254 = vld [vmem:[%s148 + $0x620] sm:$0xff]
                %255 = vst [vmem:[%s149 + $0x1a0] sm:$0xff] %v254
                %v256 = vld [vmem:[%s148 + $0x628] sm:$0xff]
                %257 = vst [vmem:[%s149 + $0x1a8] sm:$0xff] %v256
                %v258 = vld [vmem:[%s148 + $0x630] sm:$0xff]
                %259 = vst [vmem:[%s149 + $0x1b0] sm:$0xff] %v258
                %v260 = vld [vmem:[%s148 + $0x638] sm:$0xff]
                %261 = vst [vmem:[%s149 + $0x1b8] sm:$0xff] %v260
                %v262 = vld [vmem:[%s148 + $0x640] sm:$0xff]
                %263 = vst [vmem:[%s149 + $0x1c0] sm:$0xff] %v262
                %v264 = vld [vmem:[%s148 + $0x648] sm:$0xff]
                %265 = vst [vmem:[%s149 + $0x1c8] sm:$0xff] %v264
                %v266 = vld [vmem:[%s148 + $0x650] sm:$0xff]
                %267 = vst [vmem:[%s149 + $0x1d0] sm:$0xff] %v266
                %v268 = vld [vmem:[%s148 + $0x658] sm:$0xff]
                %269 = vst [vmem:[%s149 + $0x1d8] sm:$0xff] %v268
                %v270 = vld [vmem:[%s148 + $0x660] sm:$0xff]
                %271 = vst [vmem:[%s149 + $0x1e0] sm:$0xff] %v270
                %v272 = vld [vmem:[%s148 + $0x668] sm:$0xff]
                %273 = vst [vmem:[%s149 + $0x1e8] sm:$0xff] %v272
                %v274 = vld [vmem:[%s148 + $0x670] sm:$0xff]
                %275 = vst [vmem:[%s149 + $0x1f0] sm:$0xff] %v274
                %v276 = vld [vmem:[%s148 + $0x678] sm:$0xff]
                %277 = vst [vmem:[%s149 + $0x1f8] sm:$0xff] %v276
                %v278 = vld [vmem:[%s148 + $0x800] sm:$0xff]
                %279 = vst [vmem:[%s149 + $0x200] sm:$0xff] %v278
                %v280 = vld [vmem:[%s148 + $0x808] sm:$0xff]
                %281 = vst [vmem:[%s149 + $0x208] sm:$0xff] %v280
                %v282 = vld [vmem:[%s148 + $0x810] sm:$0xff]
                %283 = vst [vmem:[%s149 + $0x210] sm:$0xff] %v282
                %v284 = vld [vmem:[%s148 + $0x818] sm:$0xff]
                %285 = vst [vmem:[%s149 + $0x218] sm:$0xff] %v284
                %v286 = vld [vmem:[%s148 + $0x820] sm:$0xff]
                %287 = vst [vmem:[%s149 + $0x220] sm:$0xff] %v286
                %v288 = vld [vmem:[%s148 + $0x828] sm:$0xff]
                %289 = vst [vmem:[%s149 + $0x228] sm:$0xff] %v288
                %v290 = vld [vmem:[%s148 + $0x830] sm:$0xff]
                %291 = vst [vmem:[%s149 + $0x230] sm:$0xff] %v290
                %v292 = vld [vmem:[%s148 + $0x838] sm:$0xff]
                %293 = vst [vmem:[%s149 + $0x238] sm:$0xff] %v292
                %v294 = vld [vmem:[%s148 + $0x840] sm:$0xff]
                %295 = vst [vmem:[%s149 + $0x240] sm:$0xff] %v294
                %v296 = vld [vmem:[%s148 + $0x848] sm:$0xff]
                %297 = vst [vmem:[%s149 + $0x248] sm:$0xff] %v296
                %v298 = vld [vmem:[%s148 + $0x850] sm:$0xff]
                %299 = vst [vmem:[%s149 + $0x250] sm:$0xff] %v298
                %v300 = vld [vmem:[%s148 + $0x858] sm:$0xff]
                %301 = vst [vmem:[%s149 + $0x258] sm:$0xff] %v300
                %v302 = vld [vmem:[%s148 + $0x860] sm:$0xff]
                %303 = vst [vmem:[%s149 + $0x260] sm:$0xff] %v302
                %v304 = vld [vmem:[%s148 + $0x868] sm:$0xff]
                %305 = vst [vmem:[%s149 + $0x268] sm:$0xff] %v304
                %v306 = vld [vmem:[%s148 + $0x870] sm:$0xff]
                %307 = vst [vmem:[%s149 + $0x270] sm:$0xff] %v306
                %v308 = vld [vmem:[%s148 + $0x878] sm:$0xff]
                %309 = vst [vmem:[%s149 + $0x278] sm:$0xff] %v308
                %v310 = vld [vmem:[%s148 + $0xa00] sm:$0xff]
                %311 = vst [vmem:[%s149 + $0x280] sm:$0xff] %v310
                %v312 = vld [vmem:[%s148 + $0xa08] sm:$0xff]
                %313 = vst [vmem:[%s149 + $0x288] sm:$0xff] %v312
                %v314 = vld [vmem:[%s148 + $0xa10] sm:$0xff]
                %315 = vst [vmem:[%s149 + $0x290] sm:$0xff] %v314
                %v316 = vld [vmem:[%s148 + $0xa18] sm:$0xff]
                %317 = vst [vmem:[%s149 + $0x298] sm:$0xff] %v316
                %v318 = vld [vmem:[%s148 + $0xa20] sm:$0xff]
                %319 = vst [vmem:[%s149 + $0x2a0] sm:$0xff] %v318
                %v320 = vld [vmem:[%s148 + $0xa28] sm:$0xff]
                %321 = vst [vmem:[%s149 + $0x2a8] sm:$0xff] %v320
                %v322 = vld [vmem:[%s148 + $0xa30] sm:$0xff]
                %323 = vst [vmem:[%s149 + $0x2b0] sm:$0xff] %v322
                %v324 = vld [vmem:[%s148 + $0xa38] sm:$0xff]
                %325 = vst [vmem:[%s149 + $0x2b8] sm:$0xff] %v324
                %v326 = vld [vmem:[%s148 + $0xa40] sm:$0xff]
                %327 = vst [vmem:[%s149 + $0x2c0] sm:$0xff] %v326
                %v328 = vld [vmem:[%s148 + $0xa48] sm:$0xff]
                %329 = vst [vmem:[%s149 + $0x2c8] sm:$0xff] %v328
                %v330 = vld [vmem:[%s148 + $0xa50] sm:$0xff]
                %331 = vst [vmem:[%s149 + $0x2d0] sm:$0xff] %v330
                %v332 = vld [vmem:[%s148 + $0xa58] sm:$0xff]
                %333 = vst [vmem:[%s149 + $0x2d8] sm:$0xff] %v332
                %v334 = vld [vmem:[%s148 + $0xa60] sm:$0xff]
                %335 = vst [vmem:[%s149 + $0x2e0] sm:$0xff] %v334
                %v336 = vld [vmem:[%s148 + $0xa68] sm:$0xff]
                %337 = vst [vmem:[%s149 + $0x2e8] sm:$0xff] %v336
                %v338 = vld [vmem:[%s148 + $0xa70] sm:$0xff]
                %339 = vst [vmem:[%s149 + $0x2f0] sm:$0xff] %v338
                %v340 = vld [vmem:[%s148 + $0xa78] sm:$0xff]
                %341 = vst [vmem:[%s149 + $0x2f8] sm:$0xff] %v340
                %v342 = vld [vmem:[%s148 + $0xc00] sm:$0xff]
                %343 = vst [vmem:[%s149 + $0x300] sm:$0xff] %v342
                %v344 = vld [vmem:[%s148 + $0xc08] sm:$0xff]
                %345 = vst [vmem:[%s149 + $0x308] sm:$0xff] %v344
                %v346 = vld [vmem:[%s148 + $0xc10] sm:$0xff]
                %347 = vst [vmem:[%s149 + $0x310] sm:$0xff] %v346
                %v348 = vld [vmem:[%s148 + $0xc18] sm:$0xff]
                %349 = vst [vmem:[%s149 + $0x318] sm:$0xff] %v348
                %v350 = vld [vmem:[%s148 + $0xc20] sm:$0xff]
                %351 = vst [vmem:[%s149 + $0x320] sm:$0xff] %v350
                %v352 = vld [vmem:[%s148 + $0xc28] sm:$0xff]
                %353 = vst [vmem:[%s149 + $0x328] sm:$0xff] %v352
                %v354 = vld [vmem:[%s148 + $0xc30] sm:$0xff]
                %355 = vst [vmem:[%s149 + $0x330] sm:$0xff] %v354
                %v356 = vld [vmem:[%s148 + $0xc38] sm:$0xff]
                %357 = vst [vmem:[%s149 + $0x338] sm:$0xff] %v356
                %v358 = vld [vmem:[%s148 + $0xc40] sm:$0xff]
                %359 = vst [vmem:[%s149 + $0x340] sm:$0xff] %v358
                %v360 = vld [vmem:[%s148 + $0xc48] sm:$0xff]
                %361 = vst [vmem:[%s149 + $0x348] sm:$0xff] %v360
                %v362 = vld [vmem:[%s148 + $0xc50] sm:$0xff]
                %363 = vst [vmem:[%s149 + $0x350] sm:$0xff] %v362
                %v364 = vld [vmem:[%s148 + $0xc58] sm:$0xff]
                %365 = vst [vmem:[%s149 + $0x358] sm:$0xff] %v364
                %v366 = vld [vmem:[%s148 + $0xc60] sm:$0xff]
                %367 = vst [vmem:[%s149 + $0x360] sm:$0xff] %v366
                %v368 = vld [vmem:[%s148 + $0xc68] sm:$0xff]
                %369 = vst [vmem:[%s149 + $0x368] sm:$0xff] %v368
                %v370 = vld [vmem:[%s148 + $0xc70] sm:$0xff]
                %371 = vst [vmem:[%s149 + $0x370] sm:$0xff] %v370
                %v372 = vld [vmem:[%s148 + $0xc78] sm:$0xff]
                %373 = vst [vmem:[%s149 + $0x378] sm:$0xff] %v372
                %v374 = vld [vmem:[%s148 + $0xe00] sm:$0xff]
                %375 = vst [vmem:[%s149 + $0x380] sm:$0xff] %v374
                %v376 = vld [vmem:[%s148 + $0xe08] sm:$0xff]
                %377 = vst [vmem:[%s149 + $0x388] sm:$0xff] %v376
                %v378 = vld [vmem:[%s148 + $0xe10] sm:$0xff]
                %379 = vst [vmem:[%s149 + $0x390] sm:$0xff] %v378
                %v380 = vld [vmem:[%s148 + $0xe18] sm:$0xff]
                %381 = vst [vmem:[%s149 + $0x398] sm:$0xff] %v380
                %v382 = vld [vmem:[%s148 + $0xe20] sm:$0xff]
                %383 = vst [vmem:[%s149 + $0x3a0] sm:$0xff] %v382
                %v384 = vld [vmem:[%s148 + $0xe28] sm:$0xff]
                %385 = vst [vmem:[%s149 + $0x3a8] sm:$0xff] %v384
                %v386 = vld [vmem:[%s148 + $0xe30] sm:$0xff]
                %387 = vst [vmem:[%s149 + $0x3b0] sm:$0xff] %v386
                %v388 = vld [vmem:[%s148 + $0xe38] sm:$0xff]
                %389 = vst [vmem:[%s149 + $0x3b8] sm:$0xff] %v388
                %v390 = vld [vmem:[%s148 + $0xe40] sm:$0xff]
                %391 = vst [vmem:[%s149 + $0x3c0] sm:$0xff] %v390
                %v392 = vld [vmem:[%s148 + $0xe48] sm:$0xff]
                %393 = vst [vmem:[%s149 + $0x3c8] sm:$0xff] %v392
                %v394 = vld [vmem:[%s148 + $0xe50] sm:$0xff]
                %395 = vst [vmem:[%s149 + $0x3d0] sm:$0xff] %v394
                %v396 = vld [vmem:[%s148 + $0xe58] sm:$0xff]
                %397 = vst [vmem:[%s149 + $0x3d8] sm:$0xff] %v396
                %v398 = vld [vmem:[%s148 + $0xe60] sm:$0xff]
                %399 = vst [vmem:[%s149 + $0x3e0] sm:$0xff] %v398
                %v400 = vld [vmem:[%s148 + $0xe68] sm:$0xff]
                %401 = vst [vmem:[%s149 + $0x3e8] sm:$0xff] %v400
                %v402 = vld [vmem:[%s148 + $0xe70] sm:$0xff]
                %403 = vst [vmem:[%s149 + $0x3f0] sm:$0xff] %v402
                %v404 = vld [vmem:[%s148 + $0xe78] sm:$0xff]
                %405 = vst [vmem:[%s149 + $0x3f8] sm:$0xff] %v404
                %v406 = vld [vmem:[%s148 + $0x1000] sm:$0xff]
                %407 = vst [vmem:[%s149 + $0x400] sm:$0xff] %v406
                %v408 = vld [vmem:[%s148 + $0x1008] sm:$0xff]
                %409 = vst [vmem:[%s149 + $0x408] sm:$0xff] %v408
                %v410 = vld [vmem:[%s148 + $0x1010] sm:$0xff]
                %411 = vst [vmem:[%s149 + $0x410] sm:$0xff] %v410
                %v412 = vld [vmem:[%s148 + $0x1018] sm:$0xff]
                %413 = vst [vmem:[%s149 + $0x418] sm:$0xff] %v412
                %v414 = vld [vmem:[%s148 + $0x1020] sm:$0xff]
                %415 = vst [vmem:[%s149 + $0x420] sm:$0xff] %v414
                %v416 = vld [vmem:[%s148 + $0x1028] sm:$0xff]
                %417 = vst [vmem:[%s149 + $0x428] sm:$0xff] %v416
                %v418 = vld [vmem:[%s148 + $0x1030] sm:$0xff]
                %419 = vst [vmem:[%s149 + $0x430] sm:$0xff] %v418
                %v420 = vld [vmem:[%s148 + $0x1038] sm:$0xff]
                %421 = vst [vmem:[%s149 + $0x438] sm:$0xff] %v420
                %v422 = vld [vmem:[%s148 + $0x1040] sm:$0xff]
                %423 = vst [vmem:[%s149 + $0x440] sm:$0xff] %v422
                %v424 = vld [vmem:[%s148 + $0x1048] sm:$0xff]
                %425 = vst [vmem:[%s149 + $0x448] sm:$0xff] %v424
                %v426 = vld [vmem:[%s148 + $0x1050] sm:$0xff]
                %427 = vst [vmem:[%s149 + $0x450] sm:$0xff] %v426
                %v428 = vld [vmem:[%s148 + $0x1058] sm:$0xff]
                %429 = vst [vmem:[%s149 + $0x458] sm:$0xff] %v428
                %v430 = vld [vmem:[%s148 + $0x1060] sm:$0xff]
                %431 = vst [vmem:[%s149 + $0x460] sm:$0xff] %v430
                %v432 = vld [vmem:[%s148 + $0x1068] sm:$0xff]
                %433 = vst [vmem:[%s149 + $0x468] sm:$0xff] %v432
                %v434 = vld [vmem:[%s148 + $0x1070] sm:$0xff]
                %435 = vst [vmem:[%s149 + $0x470] sm:$0xff] %v434
                %v436 = vld [vmem:[%s148 + $0x1078] sm:$0xff]
                %437 = vst [vmem:[%s149 + $0x478] sm:$0xff] %v436
                %v438 = vld [vmem:[%s148 + $0x1200] sm:$0xff]
                %439 = vst [vmem:[%s149 + $0x480] sm:$0xff] %v438
                %v440 = vld [vmem:[%s148 + $0x1208] sm:$0xff]
                %441 = vst [vmem:[%s149 + $0x488] sm:$0xff] %v440
                %v442 = vld [vmem:[%s148 + $0x1210] sm:$0xff]
                %443 = vst [vmem:[%s149 + $0x490] sm:$0xff] %v442
                %v444 = vld [vmem:[%s148 + $0x1218] sm:$0xff]
                %445 = vst [vmem:[%s149 + $0x498] sm:$0xff] %v444
                %v446 = vld [vmem:[%s148 + $0x1220] sm:$0xff]
                %447 = vst [vmem:[%s149 + $0x4a0] sm:$0xff] %v446
                %v448 = vld [vmem:[%s148 + $0x1228] sm:$0xff]
                %449 = vst [vmem:[%s149 + $0x4a8] sm:$0xff] %v448
                %v450 = vld [vmem:[%s148 + $0x1230] sm:$0xff]
                %451 = vst [vmem:[%s149 + $0x4b0] sm:$0xff] %v450
                %v452 = vld [vmem:[%s148 + $0x1238] sm:$0xff]
                %453 = vst [vmem:[%s149 + $0x4b8] sm:$0xff] %v452
                %v454 = vld [vmem:[%s148 + $0x1240] sm:$0xff]
                %455 = vst [vmem:[%s149 + $0x4c0] sm:$0xff] %v454
                %v456 = vld [vmem:[%s148 + $0x1248] sm:$0xff]
                %457 = vst [vmem:[%s149 + $0x4c8] sm:$0xff] %v456
                %v458 = vld [vmem:[%s148 + $0x1250] sm:$0xff]
                %459 = vst [vmem:[%s149 + $0x4d0] sm:$0xff] %v458
                %v460 = vld [vmem:[%s148 + $0x1258] sm:$0xff]
                %461 = vst [vmem:[%s149 + $0x4d8] sm:$0xff] %v460
                %v462 = vld [vmem:[%s148 + $0x1260] sm:$0xff]
                %463 = vst [vmem:[%s149 + $0x4e0] sm:$0xff] %v462
                %v464 = vld [vmem:[%s148 + $0x1268] sm:$0xff]
                %465 = vst [vmem:[%s149 + $0x4e8] sm:$0xff] %v464
                %v466 = vld [vmem:[%s148 + $0x1270] sm:$0xff]
                %467 = vst [vmem:[%s149 + $0x4f0] sm:$0xff] %v466
                %v468 = vld [vmem:[%s148 + $0x1278] sm:$0xff]
                %469 = vst [vmem:[%s149 + $0x4f8] sm:$0xff] %v468
                %v470 = vld [vmem:[%s148 + $0x1400] sm:$0xff]
                %471 = vst [vmem:[%s149 + $0x500] sm:$0xff] %v470
                %v472 = vld [vmem:[%s148 + $0x1408] sm:$0xff]
                %473 = vst [vmem:[%s149 + $0x508] sm:$0xff] %v472
                %v474 = vld [vmem:[%s148 + $0x1410] sm:$0xff]
                %475 = vst [vmem:[%s149 + $0x510] sm:$0xff] %v474
                %v476 = vld [vmem:[%s148 + $0x1418] sm:$0xff]
                %477 = vst [vmem:[%s149 + $0x518] sm:$0xff] %v476
                %v478 = vld [vmem:[%s148 + $0x1420] sm:$0xff]
                %479 = vst [vmem:[%s149 + $0x520] sm:$0xff] %v478
                %v480 = vld [vmem:[%s148 + $0x1428] sm:$0xff]
                %481 = vst [vmem:[%s149 + $0x528] sm:$0xff] %v480
                %v482 = vld [vmem:[%s148 + $0x1430] sm:$0xff]
                %483 = vst [vmem:[%s149 + $0x530] sm:$0xff] %v482
                %v484 = vld [vmem:[%s148 + $0x1438] sm:$0xff]
                %485 = vst [vmem:[%s149 + $0x538] sm:$0xff] %v484
                %v486 = vld [vmem:[%s148 + $0x1440] sm:$0xff]
                %487 = vst [vmem:[%s149 + $0x540] sm:$0xff] %v486
                %v488 = vld [vmem:[%s148 + $0x1448] sm:$0xff]
                %489 = vst [vmem:[%s149 + $0x548] sm:$0xff] %v488
                %v490 = vld [vmem:[%s148 + $0x1450] sm:$0xff]
                %491 = vst [vmem:[%s149 + $0x550] sm:$0xff] %v490
                %v492 = vld [vmem:[%s148 + $0x1458] sm:$0xff]
                %493 = vst [vmem:[%s149 + $0x558] sm:$0xff] %v492
                %v494 = vld [vmem:[%s148 + $0x1460] sm:$0xff]
                %495 = vst [vmem:[%s149 + $0x560] sm:$0xff] %v494
                %v496 = vld [vmem:[%s148 + $0x1468] sm:$0xff]
                %497 = vst [vmem:[%s149 + $0x568] sm:$0xff] %v496
                %v498 = vld [vmem:[%s148 + $0x1470] sm:$0xff]
                %499 = vst [vmem:[%s149 + $0x570] sm:$0xff] %v498
                %v500 = vld [vmem:[%s148 + $0x1478] sm:$0xff]
                %501 = vst [vmem:[%s149 + $0x578] sm:$0xff] %v500
                %v502 = vld [vmem:[%s148 + $0x1600] sm:$0xff]
                %503 = vst [vmem:[%s149 + $0x580] sm:$0xff] %v502
                %v504 = vld [vmem:[%s148 + $0x1608] sm:$0xff]
                %505 = vst [vmem:[%s149 + $0x588] sm:$0xff] %v504
                %v506 = vld [vmem:[%s148 + $0x1610] sm:$0xff]
                %507 = vst [vmem:[%s149 + $0x590] sm:$0xff] %v506
                %v508 = vld [vmem:[%s148 + $0x1618] sm:$0xff]
                %509 = vst [vmem:[%s149 + $0x598] sm:$0xff] %v508
                %v510 = vld [vmem:[%s148 + $0x1620] sm:$0xff]
                %511 = vst [vmem:[%s149 + $0x5a0] sm:$0xff] %v510
                %v512 = vld [vmem:[%s148 + $0x1628] sm:$0xff]
                %513 = vst [vmem:[%s149 + $0x5a8] sm:$0xff] %v512
                %v514 = vld [vmem:[%s148 + $0x1630] sm:$0xff]
                %515 = vst [vmem:[%s149 + $0x5b0] sm:$0xff] %v514
                %v516 = vld [vmem:[%s148 + $0x1638] sm:$0xff]
                %517 = vst [vmem:[%s149 + $0x5b8] sm:$0xff] %v516
                %v518 = vld [vmem:[%s148 + $0x1640] sm:$0xff]
                %519 = vst [vmem:[%s149 + $0x5c0] sm:$0xff] %v518
                %v520 = vld [vmem:[%s148 + $0x1648] sm:$0xff]
                %521 = vst [vmem:[%s149 + $0x5c8] sm:$0xff] %v520
                %v522 = vld [vmem:[%s148 + $0x1650] sm:$0xff]
                %523 = vst [vmem:[%s149 + $0x5d0] sm:$0xff] %v522
                %v524 = vld [vmem:[%s148 + $0x1658] sm:$0xff]
                %525 = vst [vmem:[%s149 + $0x5d8] sm:$0xff] %v524
                %v526 = vld [vmem:[%s148 + $0x1660] sm:$0xff]
                %527 = vst [vmem:[%s149 + $0x5e0] sm:$0xff] %v526
                %v528 = vld [vmem:[%s148 + $0x1668] sm:$0xff]
                %529 = vst [vmem:[%s149 + $0x5e8] sm:$0xff] %v528
                %v530 = vld [vmem:[%s148 + $0x1670] sm:$0xff]
                %531 = vst [vmem:[%s149 + $0x5f0] sm:$0xff] %v530
                %v532 = vld [vmem:[%s148 + $0x1678] sm:$0xff]
                %533 = vst [vmem:[%s149 + $0x5f8] sm:$0xff] %v532
                %v534 = vld [vmem:[%s148 + $0x1800] sm:$0xff]
                %535 = vst [vmem:[%s149 + $0x600] sm:$0xff] %v534
                %v536 = vld [vmem:[%s148 + $0x1808] sm:$0xff]
                %537 = vst [vmem:[%s149 + $0x608] sm:$0xff] %v536
                %v538 = vld [vmem:[%s148 + $0x1810] sm:$0xff]
                %539 = vst [vmem:[%s149 + $0x610] sm:$0xff] %v538
                %v540 = vld [vmem:[%s148 + $0x1818] sm:$0xff]
                %541 = vst [vmem:[%s149 + $0x618] sm:$0xff] %v540
                %v542 = vld [vmem:[%s148 + $0x1820] sm:$0xff]
                %543 = vst [vmem:[%s149 + $0x620] sm:$0xff] %v542
                %v544 = vld [vmem:[%s148 + $0x1828] sm:$0xff]
                %545 = vst [vmem:[%s149 + $0x628] sm:$0xff] %v544
                %v546 = vld [vmem:[%s148 + $0x1830] sm:$0xff]
                %547 = vst [vmem:[%s149 + $0x630] sm:$0xff] %v546
                %v548 = vld [vmem:[%s148 + $0x1838] sm:$0xff]
                %549 = vst [vmem:[%s149 + $0x638] sm:$0xff] %v548
                %v550 = vld [vmem:[%s148 + $0x1840] sm:$0xff]
                %551 = vst [vmem:[%s149 + $0x640] sm:$0xff] %v550
                %v552 = vld [vmem:[%s148 + $0x1848] sm:$0xff]
                %553 = vst [vmem:[%s149 + $0x648] sm:$0xff] %v552
                %v554 = vld [vmem:[%s148 + $0x1850] sm:$0xff]
                %555 = vst [vmem:[%s149 + $0x650] sm:$0xff] %v554
                %v556 = vld [vmem:[%s148 + $0x1858] sm:$0xff]
                %557 = vst [vmem:[%s149 + $0x658] sm:$0xff] %v556
                %v558 = vld [vmem:[%s148 + $0x1860] sm:$0xff]
                %559 = vst [vmem:[%s149 + $0x660] sm:$0xff] %v558
                %v560 = vld [vmem:[%s148 + $0x1868] sm:$0xff]
                %561 = vst [vmem:[%s149 + $0x668] sm:$0xff] %v560
                %v562 = vld [vmem:[%s148 + $0x1870] sm:$0xff]
                %563 = vst [vmem:[%s149 + $0x670] sm:$0xff] %v562
                %v564 = vld [vmem:[%s148 + $0x1878] sm:$0xff]
                %565 = vst [vmem:[%s149 + $0x678] sm:$0xff] %v564
                %v566 = vld [vmem:[%s148 + $0x1a00] sm:$0xff]
                %567 = vst [vmem:[%s149 + $0x680] sm:$0xff] %v566
                %v568 = vld [vmem:[%s148 + $0x1a08] sm:$0xff]
                %569 = vst [vmem:[%s149 + $0x688] sm:$0xff] %v568
                %v570 = vld [vmem:[%s148 + $0x1a10] sm:$0xff]
                %571 = vst [vmem:[%s149 + $0x690] sm:$0xff] %v570
                %v572 = vld [vmem:[%s148 + $0x1a18] sm:$0xff]
                %573 = vst [vmem:[%s149 + $0x698] sm:$0xff] %v572
                %v574 = vld [vmem:[%s148 + $0x1a20] sm:$0xff]
                %575 = vst [vmem:[%s149 + $0x6a0] sm:$0xff] %v574
                %v576 = vld [vmem:[%s148 + $0x1a28] sm:$0xff]
                %577 = vst [vmem:[%s149 + $0x6a8] sm:$0xff] %v576
                %v578 = vld [vmem:[%s148 + $0x1a30] sm:$0xff]
                %579 = vst [vmem:[%s149 + $0x6b0] sm:$0xff] %v578
                %v580 = vld [vmem:[%s148 + $0x1a38] sm:$0xff]
                %581 = vst [vmem:[%s149 + $0x6b8] sm:$0xff] %v580
                %v582 = vld [vmem:[%s148 + $0x1a40] sm:$0xff]
                %583 = vst [vmem:[%s149 + $0x6c0] sm:$0xff] %v582
                %v584 = vld [vmem:[%s148 + $0x1a48] sm:$0xff]
                %585 = vst [vmem:[%s149 + $0x6c8] sm:$0xff] %v584
                %v586 = vld [vmem:[%s148 + $0x1a50] sm:$0xff]
                %587 = vst [vmem:[%s149 + $0x6d0] sm:$0xff] %v586
                %v588 = vld [vmem:[%s148 + $0x1a58] sm:$0xff]
                %589 = vst [vmem:[%s149 + $0x6d8] sm:$0xff] %v588
                %v590 = vld [vmem:[%s148 + $0x1a60] sm:$0xff]
                %591 = vst [vmem:[%s149 + $0x6e0] sm:$0xff] %v590
                %v592 = vld [vmem:[%s148 + $0x1a68] sm:$0xff]
                %593 = vst [vmem:[%s149 + $0x6e8] sm:$0xff] %v592
                %v594 = vld [vmem:[%s148 + $0x1a70] sm:$0xff]
                %595 = vst [vmem:[%s149 + $0x6f0] sm:$0xff] %v594
                %v596 = vld [vmem:[%s148 + $0x1a78] sm:$0xff]
                %597 = vst [vmem:[%s149 + $0x6f8] sm:$0xff] %v596
                %v598 = vld [vmem:[%s148 + $0x1c00] sm:$0xff]
                %599 = vst [vmem:[%s149 + $0x700] sm:$0xff] %v598
                %v600 = vld [vmem:[%s148 + $0x1c08] sm:$0xff]
                %601 = vst [vmem:[%s149 + $0x708] sm:$0xff] %v600
                %v602 = vld [vmem:[%s148 + $0x1c10] sm:$0xff]
                %603 = vst [vmem:[%s149 + $0x710] sm:$0xff] %v602
                %v604 = vld [vmem:[%s148 + $0x1c18] sm:$0xff]
                %605 = vst [vmem:[%s149 + $0x718] sm:$0xff] %v604
                %v606 = vld [vmem:[%s148 + $0x1c20] sm:$0xff]
                %607 = vst [vmem:[%s149 + $0x720] sm:$0xff] %v606
                %v608 = vld [vmem:[%s148 + $0x1c28] sm:$0xff]
                %609 = vst [vmem:[%s149 + $0x728] sm:$0xff] %v608
                %v610 = vld [vmem:[%s148 + $0x1c30] sm:$0xff]
                %611 = vst [vmem:[%s149 + $0x730] sm:$0xff] %v610
                %v612 = vld [vmem:[%s148 + $0x1c38] sm:$0xff]
                %613 = vst [vmem:[%s149 + $0x738] sm:$0xff] %v612
                %v614 = vld [vmem:[%s148 + $0x1c40] sm:$0xff]
                %615 = vst [vmem:[%s149 + $0x740] sm:$0xff] %v614
                %v616 = vld [vmem:[%s148 + $0x1c48] sm:$0xff]
                %617 = vst [vmem:[%s149 + $0x748] sm:$0xff] %v616
                %v618 = vld [vmem:[%s148 + $0x1c50] sm:$0xff]
                %619 = vst [vmem:[%s149 + $0x750] sm:$0xff] %v618
                %v620 = vld [vmem:[%s148 + $0x1c58] sm:$0xff]
                %621 = vst [vmem:[%s149 + $0x758] sm:$0xff] %v620
                %v622 = vld [vmem:[%s148 + $0x1c60] sm:$0xff]
                %623 = vst [vmem:[%s149 + $0x760] sm:$0xff] %v622
                %v624 = vld [vmem:[%s148 + $0x1c68] sm:$0xff]
                %625 = vst [vmem:[%s149 + $0x768] sm:$0xff] %v624
                %v626 = vld [vmem:[%s148 + $0x1c70] sm:$0xff]
                %627 = vst [vmem:[%s149 + $0x770] sm:$0xff] %v626
                %v628 = vld [vmem:[%s148 + $0x1c78] sm:$0xff]
                %629 = vst [vmem:[%s149 + $0x778] sm:$0xff] %v628
                %v630 = vld [vmem:[%s148 + $0x1e00] sm:$0xff]
                %631 = vst [vmem:[%s149 + $0x780] sm:$0xff] %v630
                %v632 = vld [vmem:[%s148 + $0x1e08] sm:$0xff]
                %633 = vst [vmem:[%s149 + $0x788] sm:$0xff] %v632
                %v634 = vld [vmem:[%s148 + $0x1e10] sm:$0xff]
                %635 = vst [vmem:[%s149 + $0x790] sm:$0xff] %v634
                %v636 = vld [vmem:[%s148 + $0x1e18] sm:$0xff]
                %637 = vst [vmem:[%s149 + $0x798] sm:$0xff] %v636
                %v638 = vld [vmem:[%s148 + $0x1e20] sm:$0xff]
                %639 = vst [vmem:[%s149 + $0x7a0] sm:$0xff] %v638
                %v640 = vld [vmem:[%s148 + $0x1e28] sm:$0xff]
                %641 = vst [vmem:[%s149 + $0x7a8] sm:$0xff] %v640
                %v642 = vld [vmem:[%s148 + $0x1e30] sm:$0xff]
                %643 = vst [vmem:[%s149 + $0x7b0] sm:$0xff] %v642
                %v644 = vld [vmem:[%s148 + $0x1e38] sm:$0xff]
                %645 = vst [vmem:[%s149 + $0x7b8] sm:$0xff] %v644
                %v646 = vld [vmem:[%s148 + $0x1e40] sm:$0xff]
                %647 = vst [vmem:[%s149 + $0x7c0] sm:$0xff] %v646
                %v648 = vld [vmem:[%s148 + $0x1e48] sm:$0xff]
                %649 = vst [vmem:[%s149 + $0x7c8] sm:$0xff] %v648
                %v650 = vld [vmem:[%s148 + $0x1e50] sm:$0xff]
                %651 = vst [vmem:[%s149 + $0x7d0] sm:$0xff] %v650
                %v652 = vld [vmem:[%s148 + $0x1e58] sm:$0xff]
                %653 = vst [vmem:[%s149 + $0x7d8] sm:$0xff] %v652
                %v654 = vld [vmem:[%s148 + $0x1e60] sm:$0xff]
                %655 = vst [vmem:[%s149 + $0x7e0] sm:$0xff] %v654
                %v656 = vld [vmem:[%s148 + $0x1e68] sm:$0xff]
                %657 = vst [vmem:[%s149 + $0x7e8] sm:$0xff] %v656
                %v658 = vld [vmem:[%s148 + $0x1e70] sm:$0xff]
                %659 = vst [vmem:[%s149 + $0x7f0] sm:$0xff] %v658
                %v660 = vld [vmem:[%s148 + $0x1e78] sm:$0xff]
                %661 = vst [vmem:[%s149 + $0x7f8] sm:$0xff] %v660
                %v662 = vld [vmem:[%s148 + $0x2000] sm:$0xff]
                %663 = vst [vmem:[%s149 + $0x800] sm:$0xff] %v662
                %v664 = vld [vmem:[%s148 + $0x2008] sm:$0xff]
                %665 = vst [vmem:[%s149 + $0x808] sm:$0xff] %v664
                %v666 = vld [vmem:[%s148 + $0x2010] sm:$0xff]
                %667 = vst [vmem:[%s149 + $0x810] sm:$0xff] %v666
                %v668 = vld [vmem:[%s148 + $0x2018] sm:$0xff]
                %669 = vst [vmem:[%s149 + $0x818] sm:$0xff] %v668
                %v670 = vld [vmem:[%s148 + $0x2020] sm:$0xff]
                %671 = vst [vmem:[%s149 + $0x820] sm:$0xff] %v670
                %v672 = vld [vmem:[%s148 + $0x2028] sm:$0xff]
                %673 = vst [vmem:[%s149 + $0x828] sm:$0xff] %v672
                %v674 = vld [vmem:[%s148 + $0x2030] sm:$0xff]
                %675 = vst [vmem:[%s149 + $0x830] sm:$0xff] %v674
                %v676 = vld [vmem:[%s148 + $0x2038] sm:$0xff]
                %677 = vst [vmem:[%s149 + $0x838] sm:$0xff] %v676
                %v678 = vld [vmem:[%s148 + $0x2040] sm:$0xff]
                %679 = vst [vmem:[%s149 + $0x840] sm:$0xff] %v678
                %v680 = vld [vmem:[%s148 + $0x2048] sm:$0xff]
                %681 = vst [vmem:[%s149 + $0x848] sm:$0xff] %v680
                %v682 = vld [vmem:[%s148 + $0x2050] sm:$0xff]
                %683 = vst [vmem:[%s149 + $0x850] sm:$0xff] %v682
                %v684 = vld [vmem:[%s148 + $0x2058] sm:$0xff]
                %685 = vst [vmem:[%s149 + $0x858] sm:$0xff] %v684
                %v686 = vld [vmem:[%s148 + $0x2060] sm:$0xff]
                %687 = vst [vmem:[%s149 + $0x860] sm:$0xff] %v686
                %v688 = vld [vmem:[%s148 + $0x2068] sm:$0xff]
                %689 = vst [vmem:[%s149 + $0x868] sm:$0xff] %v688
                %v690 = vld [vmem:[%s148 + $0x2070] sm:$0xff]
                %691 = vst [vmem:[%s149 + $0x870] sm:$0xff] %v690
                %v692 = vld [vmem:[%s148 + $0x2078] sm:$0xff]
                %693 = vst [vmem:[%s149 + $0x878] sm:$0xff] %v692
                %v694 = vld [vmem:[%s148 + $0x2200] sm:$0xff]
                %695 = vst [vmem:[%s149 + $0x880] sm:$0xff] %v694
                %v696 = vld [vmem:[%s148 + $0x2208] sm:$0xff]
                %697 = vst [vmem:[%s149 + $0x888] sm:$0xff] %v696
                %v698 = vld [vmem:[%s148 + $0x2210] sm:$0xff]
                %699 = vst [vmem:[%s149 + $0x890] sm:$0xff] %v698
                %v700 = vld [vmem:[%s148 + $0x2218] sm:$0xff]
                %701 = vst [vmem:[%s149 + $0x898] sm:$0xff] %v700
                %v702 = vld [vmem:[%s148 + $0x2220] sm:$0xff]
                %703 = vst [vmem:[%s149 + $0x8a0] sm:$0xff] %v702
                %v704 = vld [vmem:[%s148 + $0x2228] sm:$0xff]
                %705 = vst [vmem:[%s149 + $0x8a8] sm:$0xff] %v704
                %v706 = vld [vmem:[%s148 + $0x2230] sm:$0xff]
                %707 = vst [vmem:[%s149 + $0x8b0] sm:$0xff] %v706
                %v708 = vld [vmem:[%s148 + $0x2238] sm:$0xff]
                %709 = vst [vmem:[%s149 + $0x8b8] sm:$0xff] %v708
                %v710 = vld [vmem:[%s148 + $0x2240] sm:$0xff]
                %711 = vst [vmem:[%s149 + $0x8c0] sm:$0xff] %v710
                %v712 = vld [vmem:[%s148 + $0x2248] sm:$0xff]
                %713 = vst [vmem:[%s149 + $0x8c8] sm:$0xff] %v712
                %v714 = vld [vmem:[%s148 + $0x2250] sm:$0xff]
                %715 = vst [vmem:[%s149 + $0x8d0] sm:$0xff] %v714
                %v716 = vld [vmem:[%s148 + $0x2258] sm:$0xff]
                %717 = vst [vmem:[%s149 + $0x8d8] sm:$0xff] %v716
                %v718 = vld [vmem:[%s148 + $0x2260] sm:$0xff]
                %719 = vst [vmem:[%s149 + $0x8e0] sm:$0xff] %v718
                %v720 = vld [vmem:[%s148 + $0x2268] sm:$0xff]
                %721 = vst [vmem:[%s149 + $0x8e8] sm:$0xff] %v720
                %v722 = vld [vmem:[%s148 + $0x2270] sm:$0xff]
                %723 = vst [vmem:[%s149 + $0x8f0] sm:$0xff] %v722
                %v724 = vld [vmem:[%s148 + $0x2278] sm:$0xff]
                %725 = vst [vmem:[%s149 + $0x8f8] sm:$0xff] %v724
                %v726 = vld [vmem:[%s148 + $0x2400] sm:$0xff]
                %727 = vst [vmem:[%s149 + $0x900] sm:$0xff] %v726
                %v728 = vld [vmem:[%s148 + $0x2408] sm:$0xff]
                %729 = vst [vmem:[%s149 + $0x908] sm:$0xff] %v728
                %v730 = vld [vmem:[%s148 + $0x2410] sm:$0xff]
                %731 = vst [vmem:[%s149 + $0x910] sm:$0xff] %v730
                %v732 = vld [vmem:[%s148 + $0x2418] sm:$0xff]
                %733 = vst [vmem:[%s149 + $0x918] sm:$0xff] %v732
                %v734 = vld [vmem:[%s148 + $0x2420] sm:$0xff]
                %735 = vst [vmem:[%s149 + $0x920] sm:$0xff] %v734
                %v736 = vld [vmem:[%s148 + $0x2428] sm:$0xff]
                %737 = vst [vmem:[%s149 + $0x928] sm:$0xff] %v736
                %v738 = vld [vmem:[%s148 + $0x2430] sm:$0xff]
                %739 = vst [vmem:[%s149 + $0x930] sm:$0xff] %v738
                %v740 = vld [vmem:[%s148 + $0x2438] sm:$0xff]
                %741 = vst [vmem:[%s149 + $0x938] sm:$0xff] %v740
                %v742 = vld [vmem:[%s148 + $0x2440] sm:$0xff]
                %743 = vst [vmem:[%s149 + $0x940] sm:$0xff] %v742
                %v744 = vld [vmem:[%s148 + $0x2448] sm:$0xff]
                %745 = vst [vmem:[%s149 + $0x948] sm:$0xff] %v744
                %v746 = vld [vmem:[%s148 + $0x2450] sm:$0xff]
                %747 = vst [vmem:[%s149 + $0x950] sm:$0xff] %v746
                %v748 = vld [vmem:[%s148 + $0x2458] sm:$0xff]
                %749 = vst [vmem:[%s149 + $0x958] sm:$0xff] %v748
                %v750 = vld [vmem:[%s148 + $0x2460] sm:$0xff]
                %751 = vst [vmem:[%s149 + $0x960] sm:$0xff] %v750
                %v752 = vld [vmem:[%s148 + $0x2468] sm:$0xff]
                %753 = vst [vmem:[%s149 + $0x968] sm:$0xff] %v752
                %v754 = vld [vmem:[%s148 + $0x2470] sm:$0xff]
                %755 = vst [vmem:[%s149 + $0x970] sm:$0xff] %v754
                %v756 = vld [vmem:[%s148 + $0x2478] sm:$0xff]
                %757 = vst [vmem:[%s149 + $0x978] sm:$0xff] %v756
                %v758 = vld [vmem:[%s148 + $0x2600] sm:$0xff]
                %759 = vst [vmem:[%s149 + $0x980] sm:$0xff] %v758
                %v760 = vld [vmem:[%s148 + $0x2608] sm:$0xff]
                %761 = vst [vmem:[%s149 + $0x988] sm:$0xff] %v760
                %v762 = vld [vmem:[%s148 + $0x2610] sm:$0xff]
                %763 = vst [vmem:[%s149 + $0x990] sm:$0xff] %v762
                %v764 = vld [vmem:[%s148 + $0x2618] sm:$0xff]
                %765 = vst [vmem:[%s149 + $0x998] sm:$0xff] %v764
                %v766 = vld [vmem:[%s148 + $0x2620] sm:$0xff]
                %767 = vst [vmem:[%s149 + $0x9a0] sm:$0xff] %v766
                %v768 = vld [vmem:[%s148 + $0x2628] sm:$0xff]
                %769 = vst [vmem:[%s149 + $0x9a8] sm:$0xff] %v768
                %v770 = vld [vmem:[%s148 + $0x2630] sm:$0xff]
                %771 = vst [vmem:[%s149 + $0x9b0] sm:$0xff] %v770
                %v772 = vld [vmem:[%s148 + $0x2638] sm:$0xff]
                %773 = vst [vmem:[%s149 + $0x9b8] sm:$0xff] %v772
                %v774 = vld [vmem:[%s148 + $0x2640] sm:$0xff]
                %775 = vst [vmem:[%s149 + $0x9c0] sm:$0xff] %v774
                %v776 = vld [vmem:[%s148 + $0x2648] sm:$0xff]
                %777 = vst [vmem:[%s149 + $0x9c8] sm:$0xff] %v776
                %v778 = vld [vmem:[%s148 + $0x2650] sm:$0xff]
                %779 = vst [vmem:[%s149 + $0x9d0] sm:$0xff] %v778
                %v780 = vld [vmem:[%s148 + $0x2658] sm:$0xff]
                %781 = vst [vmem:[%s149 + $0x9d8] sm:$0xff] %v780
                %v782 = vld [vmem:[%s148 + $0x2660] sm:$0xff]
                %783 = vst [vmem:[%s149 + $0x9e0] sm:$0xff] %v782
                %v784 = vld [vmem:[%s148 + $0x2668] sm:$0xff]
                %785 = vst [vmem:[%s149 + $0x9e8] sm:$0xff] %v784
                %v786 = vld [vmem:[%s148 + $0x2670] sm:$0xff]
                %787 = vst [vmem:[%s149 + $0x9f0] sm:$0xff] %v786
                %v788 = vld [vmem:[%s148 + $0x2678] sm:$0xff]
                %789 = vst [vmem:[%s149 + $0x9f8] sm:$0xff] %v788
                %v790 = vld [vmem:[%s148 + $0x2800] sm:$0xff]
                %791 = vst [vmem:[%s149 + $0xa00] sm:$0xff] %v790
                %v792 = vld [vmem:[%s148 + $0x2808] sm:$0xff]
                %793 = vst [vmem:[%s149 + $0xa08] sm:$0xff] %v792
                %v794 = vld [vmem:[%s148 + $0x2810] sm:$0xff]
                %795 = vst [vmem:[%s149 + $0xa10] sm:$0xff] %v794
                %v796 = vld [vmem:[%s148 + $0x2818] sm:$0xff]
                %797 = vst [vmem:[%s149 + $0xa18] sm:$0xff] %v796
                %v798 = vld [vmem:[%s148 + $0x2820] sm:$0xff]
                %799 = vst [vmem:[%s149 + $0xa20] sm:$0xff] %v798
                %v800 = vld [vmem:[%s148 + $0x2828] sm:$0xff]
                %801 = vst [vmem:[%s149 + $0xa28] sm:$0xff] %v800
                %v802 = vld [vmem:[%s148 + $0x2830] sm:$0xff]
                %803 = vst [vmem:[%s149 + $0xa30] sm:$0xff] %v802
                %v804 = vld [vmem:[%s148 + $0x2838] sm:$0xff]
                %805 = vst [vmem:[%s149 + $0xa38] sm:$0xff] %v804
                %v806 = vld [vmem:[%s148 + $0x2840] sm:$0xff]
                %807 = vst [vmem:[%s149 + $0xa40] sm:$0xff] %v806
                %v808 = vld [vmem:[%s148 + $0x2848] sm:$0xff]
                %809 = vst [vmem:[%s149 + $0xa48] sm:$0xff] %v808
                %v810 = vld [vmem:[%s148 + $0x2850] sm:$0xff]
                %811 = vst [vmem:[%s149 + $0xa50] sm:$0xff] %v810
                %v812 = vld [vmem:[%s148 + $0x2858] sm:$0xff]
                %813 = vst [vmem:[%s149 + $0xa58] sm:$0xff] %v812
                %v814 = vld [vmem:[%s148 + $0x2860] sm:$0xff]
                %815 = vst [vmem:[%s149 + $0xa60] sm:$0xff] %v814
                %v816 = vld [vmem:[%s148 + $0x2868] sm:$0xff]
                %817 = vst [vmem:[%s149 + $0xa68] sm:$0xff] %v816
                %v818 = vld [vmem:[%s148 + $0x2870] sm:$0xff]
                %819 = vst [vmem:[%s149 + $0xa70] sm:$0xff] %v818
                %v820 = vld [vmem:[%s148 + $0x2878] sm:$0xff]
                %821 = vst [vmem:[%s149 + $0xa78] sm:$0xff] %v820
                %v822 = vld [vmem:[%s148 + $0x2a00] sm:$0xff]
                %823 = vst [vmem:[%s149 + $0xa80] sm:$0xff] %v822
                %v824 = vld [vmem:[%s148 + $0x2a08] sm:$0xff]
                %825 = vst [vmem:[%s149 + $0xa88] sm:$0xff] %v824
                %v826 = vld [vmem:[%s148 + $0x2a10] sm:$0xff]
                %827 = vst [vmem:[%s149 + $0xa90] sm:$0xff] %v826
                %v828 = vld [vmem:[%s148 + $0x2a18] sm:$0xff]
                %829 = vst [vmem:[%s149 + $0xa98] sm:$0xff] %v828
                %v830 = vld [vmem:[%s148 + $0x2a20] sm:$0xff]
                %831 = vst [vmem:[%s149 + $0xaa0] sm:$0xff] %v830
                %v832 = vld [vmem:[%s148 + $0x2a28] sm:$0xff]
                %833 = vst [vmem:[%s149 + $0xaa8] sm:$0xff] %v832
                %v834 = vld [vmem:[%s148 + $0x2a30] sm:$0xff]
                %835 = vst [vmem:[%s149 + $0xab0] sm:$0xff] %v834
                %v836 = vld [vmem:[%s148 + $0x2a38] sm:$0xff]
                %837 = vst [vmem:[%s149 + $0xab8] sm:$0xff] %v836
                %v838 = vld [vmem:[%s148 + $0x2a40] sm:$0xff]
                %839 = vst [vmem:[%s149 + $0xac0] sm:$0xff] %v838
                %v840 = vld [vmem:[%s148 + $0x2a48] sm:$0xff]
                %841 = vst [vmem:[%s149 + $0xac8] sm:$0xff] %v840
                %v842 = vld [vmem:[%s148 + $0x2a50] sm:$0xff]
                %843 = vst [vmem:[%s149 + $0xad0] sm:$0xff] %v842
                %v844 = vld [vmem:[%s148 + $0x2a58] sm:$0xff]
                %845 = vst [vmem:[%s149 + $0xad8] sm:$0xff] %v844
                %v846 = vld [vmem:[%s148 + $0x2a60] sm:$0xff]
                %847 = vst [vmem:[%s149 + $0xae0] sm:$0xff] %v846
                %v848 = vld [vmem:[%s148 + $0x2a68] sm:$0xff]
                %849 = vst [vmem:[%s149 + $0xae8] sm:$0xff] %v848
                %v850 = vld [vmem:[%s148 + $0x2a70] sm:$0xff]
                %851 = vst [vmem:[%s149 + $0xaf0] sm:$0xff] %v850
                %v852 = vld [vmem:[%s148 + $0x2a78] sm:$0xff]
                %853 = vst [vmem:[%s149 + $0xaf8] sm:$0xff] %v852
                %v854 = vld [vmem:[%s148 + $0x2c00] sm:$0xff]
                %855 = vst [vmem:[%s149 + $0xb00] sm:$0xff] %v854
                %v856 = vld [vmem:[%s148 + $0x2c08] sm:$0xff]
                %857 = vst [vmem:[%s149 + $0xb08] sm:$0xff] %v856
                %v858 = vld [vmem:[%s148 + $0x2c10] sm:$0xff]
                %859 = vst [vmem:[%s149 + $0xb10] sm:$0xff] %v858
                %v860 = vld [vmem:[%s148 + $0x2c18] sm:$0xff]
                %861 = vst [vmem:[%s149 + $0xb18] sm:$0xff] %v860
                %v862 = vld [vmem:[%s148 + $0x2c20] sm:$0xff]
                %863 = vst [vmem:[%s149 + $0xb20] sm:$0xff] %v862
                %v864 = vld [vmem:[%s148 + $0x2c28] sm:$0xff]
                %865 = vst [vmem:[%s149 + $0xb28] sm:$0xff] %v864
                %v866 = vld [vmem:[%s148 + $0x2c30] sm:$0xff]
                %867 = vst [vmem:[%s149 + $0xb30] sm:$0xff] %v866
                %v868 = vld [vmem:[%s148 + $0x2c38] sm:$0xff]
                %869 = vst [vmem:[%s149 + $0xb38] sm:$0xff] %v868
                %v870 = vld [vmem:[%s148 + $0x2c40] sm:$0xff]
                %871 = vst [vmem:[%s149 + $0xb40] sm:$0xff] %v870
                %v872 = vld [vmem:[%s148 + $0x2c48] sm:$0xff]
                %873 = vst [vmem:[%s149 + $0xb48] sm:$0xff] %v872
                %v874 = vld [vmem:[%s148 + $0x2c50] sm:$0xff]
                %875 = vst [vmem:[%s149 + $0xb50] sm:$0xff] %v874
                %v876 = vld [vmem:[%s148 + $0x2c58] sm:$0xff]
                %877 = vst [vmem:[%s149 + $0xb58] sm:$0xff] %v876
                %v878 = vld [vmem:[%s148 + $0x2c60] sm:$0xff]
                %879 = vst [vmem:[%s149 + $0xb60] sm:$0xff] %v878
                %v880 = vld [vmem:[%s148 + $0x2c68] sm:$0xff]
                %881 = vst [vmem:[%s149 + $0xb68] sm:$0xff] %v880
                %v882 = vld [vmem:[%s148 + $0x2c70] sm:$0xff]
                %883 = vst [vmem:[%s149 + $0xb70] sm:$0xff] %v882
                %v884 = vld [vmem:[%s148 + $0x2c78] sm:$0xff]
                %885 = vst [vmem:[%s149 + $0xb78] sm:$0xff] %v884
                %v886 = vld [vmem:[%s148 + $0x2e00] sm:$0xff]
                %887 = vst [vmem:[%s149 + $0xb80] sm:$0xff] %v886
                %v888 = vld [vmem:[%s148 + $0x2e08] sm:$0xff]
                %889 = vst [vmem:[%s149 + $0xb88] sm:$0xff] %v888
                %v890 = vld [vmem:[%s148 + $0x2e10] sm:$0xff]
                %891 = vst [vmem:[%s149 + $0xb90] sm:$0xff] %v890
                %v892 = vld [vmem:[%s148 + $0x2e18] sm:$0xff]
                %893 = vst [vmem:[%s149 + $0xb98] sm:$0xff] %v892
                %v894 = vld [vmem:[%s148 + $0x2e20] sm:$0xff]
                %895 = vst [vmem:[%s149 + $0xba0] sm:$0xff] %v894
                %v896 = vld [vmem:[%s148 + $0x2e28] sm:$0xff]
                %897 = vst [vmem:[%s149 + $0xba8] sm:$0xff] %v896
                %v898 = vld [vmem:[%s148 + $0x2e30] sm:$0xff]
                %899 = vst [vmem:[%s149 + $0xbb0] sm:$0xff] %v898
                %v900 = vld [vmem:[%s148 + $0x2e38] sm:$0xff]
                %901 = vst [vmem:[%s149 + $0xbb8] sm:$0xff] %v900
                %v902 = vld [vmem:[%s148 + $0x2e40] sm:$0xff]
                %903 = vst [vmem:[%s149 + $0xbc0] sm:$0xff] %v902
                %v904 = vld [vmem:[%s148 + $0x2e48] sm:$0xff]
                %905 = vst [vmem:[%s149 + $0xbc8] sm:$0xff] %v904
                %v906 = vld [vmem:[%s148 + $0x2e50] sm:$0xff]
                %907 = vst [vmem:[%s149 + $0xbd0] sm:$0xff] %v906
                %v908 = vld [vmem:[%s148 + $0x2e58] sm:$0xff]
                %909 = vst [vmem:[%s149 + $0xbd8] sm:$0xff] %v908
                %v910 = vld [vmem:[%s148 + $0x2e60] sm:$0xff]
                %911 = vst [vmem:[%s149 + $0xbe0] sm:$0xff] %v910
                %v912 = vld [vmem:[%s148 + $0x2e68] sm:$0xff]
                %913 = vst [vmem:[%s149 + $0xbe8] sm:$0xff] %v912
                %v914 = vld [vmem:[%s148 + $0x2e70] sm:$0xff]
                %915 = vst [vmem:[%s149 + $0xbf0] sm:$0xff] %v914
                %v916 = vld [vmem:[%s148 + $0x2e78] sm:$0xff]
                %917 = vst [vmem:[%s149 + $0xbf8] sm:$0xff] %v916
                %v918 = vld [vmem:[%s148 + $0x3000] sm:$0xff]
                %919 = vst [vmem:[%s149 + $0xc00] sm:$0xff] %v918
                %v920 = vld [vmem:[%s148 + $0x3008] sm:$0xff]
                %921 = vst [vmem:[%s149 + $0xc08] sm:$0xff] %v920
                %v922 = vld [vmem:[%s148 + $0x3010] sm:$0xff]
                %923 = vst [vmem:[%s149 + $0xc10] sm:$0xff] %v922
                %v924 = vld [vmem:[%s148 + $0x3018] sm:$0xff]
                %925 = vst [vmem:[%s149 + $0xc18] sm:$0xff] %v924
                %v926 = vld [vmem:[%s148 + $0x3020] sm:$0xff]
                %927 = vst [vmem:[%s149 + $0xc20] sm:$0xff] %v926
                %v928 = vld [vmem:[%s148 + $0x3028] sm:$0xff]
                %929 = vst [vmem:[%s149 + $0xc28] sm:$0xff] %v928
                %v930 = vld [vmem:[%s148 + $0x3030] sm:$0xff]
                %931 = vst [vmem:[%s149 + $0xc30] sm:$0xff] %v930
                %v932 = vld [vmem:[%s148 + $0x3038] sm:$0xff]
                %933 = vst [vmem:[%s149 + $0xc38] sm:$0xff] %v932
                %v934 = vld [vmem:[%s148 + $0x3040] sm:$0xff]
                %935 = vst [vmem:[%s149 + $0xc40] sm:$0xff] %v934
                %v936 = vld [vmem:[%s148 + $0x3048] sm:$0xff]
                %937 = vst [vmem:[%s149 + $0xc48] sm:$0xff] %v936
                %v938 = vld [vmem:[%s148 + $0x3050] sm:$0xff]
                %939 = vst [vmem:[%s149 + $0xc50] sm:$0xff] %v938
                %v940 = vld [vmem:[%s148 + $0x3058] sm:$0xff]
                %941 = vst [vmem:[%s149 + $0xc58] sm:$0xff] %v940
                %v942 = vld [vmem:[%s148 + $0x3060] sm:$0xff]
                %943 = vst [vmem:[%s149 + $0xc60] sm:$0xff] %v942
                %v944 = vld [vmem:[%s148 + $0x3068] sm:$0xff]
                %945 = vst [vmem:[%s149 + $0xc68] sm:$0xff] %v944
                %v946 = vld [vmem:[%s148 + $0x3070] sm:$0xff]
                %947 = vst [vmem:[%s149 + $0xc70] sm:$0xff] %v946
                %v948 = vld [vmem:[%s148 + $0x3078] sm:$0xff]
                %949 = vst [vmem:[%s149 + $0xc78] sm:$0xff] %v948
                %v950 = vld [vmem:[%s148 + $0x3200] sm:$0xff]
                %951 = vst [vmem:[%s149 + $0xc80] sm:$0xff] %v950
                %v952 = vld [vmem:[%s148 + $0x3208] sm:$0xff]
                %953 = vst [vmem:[%s149 + $0xc88] sm:$0xff] %v952
                %v954 = vld [vmem:[%s148 + $0x3210] sm:$0xff]
                %955 = vst [vmem:[%s149 + $0xc90] sm:$0xff] %v954
                %v956 = vld [vmem:[%s148 + $0x3218] sm:$0xff]
                %957 = vst [vmem:[%s149 + $0xc98] sm:$0xff] %v956
                %v958 = vld [vmem:[%s148 + $0x3220] sm:$0xff]
                %959 = vst [vmem:[%s149 + $0xca0] sm:$0xff] %v958
                %v960 = vld [vmem:[%s148 + $0x3228] sm:$0xff]
                %961 = vst [vmem:[%s149 + $0xca8] sm:$0xff] %v960
                %v962 = vld [vmem:[%s148 + $0x3230] sm:$0xff]
                %963 = vst [vmem:[%s149 + $0xcb0] sm:$0xff] %v962
                %v964 = vld [vmem:[%s148 + $0x3238] sm:$0xff]
                %965 = vst [vmem:[%s149 + $0xcb8] sm:$0xff] %v964
                %v966 = vld [vmem:[%s148 + $0x3240] sm:$0xff]
                %967 = vst [vmem:[%s149 + $0xcc0] sm:$0xff] %v966
                %v968 = vld [vmem:[%s148 + $0x3248] sm:$0xff]
                %969 = vst [vmem:[%s149 + $0xcc8] sm:$0xff] %v968
                %v970 = vld [vmem:[%s148 + $0x3250] sm:$0xff]
                %971 = vst [vmem:[%s149 + $0xcd0] sm:$0xff] %v970
                %v972 = vld [vmem:[%s148 + $0x3258] sm:$0xff]
                %973 = vst [vmem:[%s149 + $0xcd8] sm:$0xff] %v972
                %v974 = vld [vmem:[%s148 + $0x3260] sm:$0xff]
                %975 = vst [vmem:[%s149 + $0xce0] sm:$0xff] %v974
                %v976 = vld [vmem:[%s148 + $0x3268] sm:$0xff]
                %977 = vst [vmem:[%s149 + $0xce8] sm:$0xff] %v976
                %v978 = vld [vmem:[%s148 + $0x3270] sm:$0xff]
                %979 = vst [vmem:[%s149 + $0xcf0] sm:$0xff] %v978
                %v980 = vld [vmem:[%s148 + $0x3278] sm:$0xff]
                %981 = vst [vmem:[%s149 + $0xcf8] sm:$0xff] %v980
                %v982 = vld [vmem:[%s148 + $0x3400] sm:$0xff]
                %983 = vst [vmem:[%s149 + $0xd00] sm:$0xff] %v982
                %v984 = vld [vmem:[%s148 + $0x3408] sm:$0xff]
                %985 = vst [vmem:[%s149 + $0xd08] sm:$0xff] %v984
                %v986 = vld [vmem:[%s148 + $0x3410] sm:$0xff]
                %987 = vst [vmem:[%s149 + $0xd10] sm:$0xff] %v986
                %v988 = vld [vmem:[%s148 + $0x3418] sm:$0xff]
                %989 = vst [vmem:[%s149 + $0xd18] sm:$0xff] %v988
                %v990 = vld [vmem:[%s148 + $0x3420] sm:$0xff]
                %991 = vst [vmem:[%s149 + $0xd20] sm:$0xff] %v990
                %v992 = vld [vmem:[%s148 + $0x3428] sm:$0xff]
                %993 = vst [vmem:[%s149 + $0xd28] sm:$0xff] %v992
                %v994 = vld [vmem:[%s148 + $0x3430] sm:$0xff]
                %995 = vst [vmem:[%s149 + $0xd30] sm:$0xff] %v994
                %v996 = vld [vmem:[%s148 + $0x3438] sm:$0xff]
                %997 = vst [vmem:[%s149 + $0xd38] sm:$0xff] %v996
                %v998 = vld [vmem:[%s148 + $0x3440] sm:$0xff]
                %999 = vst [vmem:[%s149 + $0xd40] sm:$0xff] %v998
                %v1000 = vld [vmem:[%s148 + $0x3448] sm:$0xff]
                %1001 = vst [vmem:[%s149 + $0xd48] sm:$0xff] %v1000
                %v1002 = vld [vmem:[%s148 + $0x3450] sm:$0xff]
                %1003 = vst [vmem:[%s149 + $0xd50] sm:$0xff] %v1002
                %v1004 = vld [vmem:[%s148 + $0x3458] sm:$0xff]
                %1005 = vst [vmem:[%s149 + $0xd58] sm:$0xff] %v1004
                %v1006 = vld [vmem:[%s148 + $0x3460] sm:$0xff]
                %1007 = vst [vmem:[%s149 + $0xd60] sm:$0xff] %v1006
                %v1008 = vld [vmem:[%s148 + $0x3468] sm:$0xff]
                %1009 = vst [vmem:[%s149 + $0xd68] sm:$0xff] %v1008
                %v1010 = vld [vmem:[%s148 + $0x3470] sm:$0xff]
                %1011 = vst [vmem:[%s149 + $0xd70] sm:$0xff] %v1010
                %v1012 = vld [vmem:[%s148 + $0x3478] sm:$0xff]
                %1013 = vst [vmem:[%s149 + $0xd78] sm:$0xff] %v1012
              $region41: #{jigsaw_block_forward.11} parent=35 // loop_footer
                %s147 = sadd.s32 1, %s143
              $region42: #{jigsaw_block_forward.11} parent=35 // loop_footer_branch
                %142 = sbr.rel target = $region38
              $region43: #{jigsaw_block_forward.11} parent=35 // loop_exit
                _
            $region36: #{jigsaw_block_forward.11} parent=31 // pred_fallthru
              _
            // Predicated region
            $region44: #{jigsaw_block_forward.11} parent=31 // pred_check
              _
            $region45: #{jigsaw_block_forward.11} parent=31 // pred_check_branch
              %1015 = sbr.rel target = $region47
            $region46: #{jigsaw_block_forward.11} parent=31 // pred_region
              _
            $region47: #{jigsaw_block_forward.11} parent=31 // pred_fallthru
              _
          $region32: #{jigsaw_block_forward.11} parent=27 // pred_fallthru
            _
          %1016 = vnop
        $region28: #{jigsaw_block_forward.11} parent=23 // pred_fallthru
          _
      $region24: #{jigsaw_block_forward.11} parent=5 // pred_fallthru
        _
      %p1017 = scmp.le.s32.totalorder 1, %s9
      %p1018 = scmp.lt.s32.totalorder %s9, 5
      %p1019 = pnand %p1017, %p1018
      %p1020 = pneg %p1019
      // Predicated region
      $region48: #{jigsaw_block_forward.11} parent=5 // pred_check
        _
      $region49: #{jigsaw_block_forward.11} parent=5 // pred_check_branch
        %1022 = sbr.rel (%p1019) target = $region51
      $region50: #{jigsaw_block_forward.11} parent=5 // pred_region
        %s1023 = ssub.s32 %s9, 1
        %s1024 = sand.u32 %s43, 1
        %s1025 = sand.u32 %s43, 1
        %s1026 = smul.addr %s1025, 3456
        %s1027 = scalar_lea.vmem [#allocation2], %s1026
        // Predicated region
        $region52: #{jigsaw_block_forward.11} parent=50 // pred_check
          %p1028 = pneg %p56
        $region53: #{jigsaw_block_forward.11} parent=50 // pred_check_branch
          %1030 = sbr.rel (%p1028) target = $region55
        $region54: #{jigsaw_block_forward.11} parent=50 // pred_region
          _
        $region55: #{jigsaw_block_forward.11} parent=50 // pred_fallthru
          _
        %p1031 = pneg %p30
        %p1032 = pneg %p27
        %s1033 = sand.u32 %s43, 1
        %s1034 = sand.u32 %s43, 1
        %s1035 = smul.addr %s1034, 3456
        %s1036 = scalar_lea.vmem [#allocation2], %s1035
        %p1037 = pneg %p56
        %p1038 = pneg %p53
        %p1039 = pneg %p77
        %p1040 = pneg %p74
        %p1041 = pneg %p103
        %p1042 = pneg %p100
        %s1043 = smul.u32 16, %s14
        %p1044 = scmp.lt.s32.totalorder %s1043, 63
        %s1045 = scalar_select %p1044, %s1043, 63
        %s1046 = smul.addr %s1045, 8
        %s1047 = scalar_lea.vmem %s3, %s1046
        %s1048 = smul.u32 16, %s14
        %s1049 = smul.u32 16, %s14
        %p1050 = scmp.lt.s32.totalorder %s1049, 63
        %s1051 = scalar_select %p1050, %s1049, 63
        %s1052 = smul.addr %s1051, 8
        %s1053 = scalar_lea.vmem %s3, %s1052
        %s1054 = smul.u32 16, %s14
        %v1055 = vld [vmem:[%s0] sm:$0xff]
        %v1056 = vld [vmem:[%s0 + $0x8] sm:$0xff]
        %v1057 = vld [vmem:[%s1027] sm:$0xff]
        %v1058 = vld [vmem:[%s1027 + $0x8] sm:$0xff]
        %v1059 = vld [vmem:[%s1027 + $0x10] sm:$0xff]
        %v1060 = vld [vmem:[%s1027 + $0x18] sm:$0xff]
        %v1061 = vld [vmem:[%s1027 + $0x20] sm:$0xff]
        %v1062 = vld [vmem:[%s1027 + $0x28] sm:$0xff]
        %v1063 = vld [vmem:[%s1027 + $0x30] sm:$0xff]
        %v1064 = vld [vmem:[%s1027 + $0x38] sm:$0xff]
        %v1065 = vld [vmem:[%s1027 + $0x40] sm:$0xff]
        %v1066 = vld [vmem:[%s1027 + $0x48] sm:$0xff]
        %v1067 = vld [vmem:[%s1027 + $0x50] sm:$0xff]
        %v1068 = vld [vmem:[%s1027 + $0x58] sm:$0xff]
        %v1069 = vld [vmem:[%s1027 + $0x60] sm:$0xff]
        %v1070 = vld [vmem:[%s1027 + $0x68] sm:$0xff]
        %v1071 = vld [vmem:[%s1027 + $0x70] sm:$0xff]
        %v1072 = vld [vmem:[%s1027 + $0x78] sm:$0xff]
        %v1073 = vld [vmem:[%s1027 + $0x80] sm:$0xff]
        %v1074 = vld [vmem:[%s1027 + $0x88] sm:$0xff]
        %v1075 = vld [vmem:[%s1027 + $0x90] sm:$0xff]
        %v1076 = vld [vmem:[%s1027 + $0x98] sm:$0xff]
        %v1077 = vld [vmem:[%s1027 + $0xa0] sm:$0xff]
        %v1078 = vld [vmem:[%s1027 + $0xa8] sm:$0xff]
        %v1079 = vld [vmem:[%s1027 + $0xb0] sm:$0xff]
        %v1080 = vld [vmem:[%s1027 + $0xb8] sm:$0xff]
        %v1081 = vld [vmem:[%s1027 + $0xc0] sm:$0xff]
        %v1082 = vld [vmem:[%s1027 + $0xc8] sm:$0xff]
        %v1083 = vld [vmem:[%s1027 + $0xd0] sm:$0xff]
        %v1084 = vld [vmem:[%s1027 + $0xd8] sm:$0xff]
        %v1085 = vld [vmem:[%s1027 + $0xe0] sm:$0xff]
        %v1086 = vld [vmem:[%s1027 + $0xe8] sm:$0xff]
        %v1087 = vld [vmem:[%s1027 + $0xf0] sm:$0xff]
        %v1088 = vld [vmem:[%s1027 + $0xf8] sm:$0xff]
        %v1089 = vld [vmem:[%s1027 + $0x100] sm:$0xff]
        %v1090 = vld [vmem:[%s1027 + $0x108] sm:$0xff]
        %v1091 = vld [vmem:[%s1027 + $0x110] sm:$0xff]
        %v1092 = vld [vmem:[%s1027 + $0x118] sm:$0xff]
        %v1093 = vld [vmem:[%s1027 + $0x120] sm:$0xff]
        %v1094 = vld [vmem:[%s1027 + $0x128] sm:$0xff]
        %v1095 = vld [vmem:[%s1027 + $0x130] sm:$0xff]
        %v1096 = vld [vmem:[%s1027 + $0x138] sm:$0xff]
        %v1097 = vld [vmem:[%s1027 + $0x140] sm:$0xff]
        %v1098 = vld [vmem:[%s1027 + $0x148] sm:$0xff]
        %v1099 = vld [vmem:[%s1027 + $0x150] sm:$0xff]
        %v1100 = vld [vmem:[%s1027 + $0x158] sm:$0xff]
        %v1101 = vld [vmem:[%s1027 + $0x160] sm:$0xff]
        %v1102 = vld [vmem:[%s1027 + $0x168] sm:$0xff]
        %v1103 = vld [vmem:[%s1027 + $0x170] sm:$0xff]
        %v1104 = vld [vmem:[%s1027 + $0x178] sm:$0xff]
        %v1105 = vld [vmem:[%s1027 + $0x180] sm:$0xff]
        %v1106 = vld [vmem:[%s1027 + $0x188] sm:$0xff]
        %v1107 = vld [vmem:[%s1027 + $0x190] sm:$0xff]
        %v1108 = vld [vmem:[%s1027 + $0x198] sm:$0xff]
        %v1109 = vld [vmem:[%s1027 + $0x1a0] sm:$0xff]
        %v1110 = vld [vmem:[%s1027 + $0x1a8] sm:$0xff]
        %v1111 = vld [vmem:[%s1027 + $0x1b0] sm:$0xff]
        %v1112 = vld [vmem:[%s1027 + $0x1b8] sm:$0xff]
        %v1113 = vld [vmem:[%s1027 + $0x1c0] sm:$0xff]
        %v1114 = vld [vmem:[%s1027 + $0x1c8] sm:$0xff]
        %v1115 = vld [vmem:[%s1027 + $0x1d0] sm:$0xff]
        %v1116 = vld [vmem:[%s1027 + $0x1d8] sm:$0xff]
        %v1117 = vld [vmem:[%s1027 + $0x1e0] sm:$0xff]
        %v1118 = vld [vmem:[%s1027 + $0x1e8] sm:$0xff]
        %v1119 = vld [vmem:[%s1027 + $0x1f0] sm:$0xff]
        %v1120 = vld [vmem:[%s1027 + $0x1f8] sm:$0xff]
        %v1121 = vld [vmem:[%s1027 + $0x200] sm:$0xff]
        %v1122 = vld [vmem:[%s1027 + $0x208] sm:$0xff]
        %v1123 = vld [vmem:[%s1027 + $0x210] sm:$0xff]
        %v1124 = vld [vmem:[%s1027 + $0x218] sm:$0xff]
        %v1125 = vld [vmem:[%s1027 + $0x220] sm:$0xff]
        %v1126 = vld [vmem:[%s1027 + $0x228] sm:$0xff]
        %v1127 = vld [vmem:[%s1027 + $0x230] sm:$0xff]
        %v1128 = vld [vmem:[%s1027 + $0x238] sm:$0xff]
        %v1129 = vld [vmem:[%s1027 + $0x240] sm:$0xff]
        %v1130 = vld [vmem:[%s1027 + $0x248] sm:$0xff]
        %v1131 = vld [vmem:[%s1027 + $0x250] sm:$0xff]
        %v1132 = vld [vmem:[%s1027 + $0x258] sm:$0xff]
        %v1133 = vld [vmem:[%s1027 + $0x260] sm:$0xff]
        %v1134 = vld [vmem:[%s1027 + $0x268] sm:$0xff]
        %v1135 = vld [vmem:[%s1027 + $0x270] sm:$0xff]
        %v1136 = vld [vmem:[%s1027 + $0x278] sm:$0xff]
        %v1137 = vld [vmem:[%s1027 + $0x280] sm:$0xff]
        %v1138 = vld [vmem:[%s1027 + $0x288] sm:$0xff]
        %v1139 = vld [vmem:[%s1027 + $0x290] sm:$0xff]
        %v1140 = vld [vmem:[%s1027 + $0x298] sm:$0xff]
        %v1141 = vld [vmem:[%s1027 + $0x2a0] sm:$0xff]
        %v1142 = vld [vmem:[%s1027 + $0x2a8] sm:$0xff]
        %v1143 = vld [vmem:[%s1027 + $0x2b0] sm:$0xff]
        %v1144 = vld [vmem:[%s1027 + $0x2b8] sm:$0xff]
        %v1145 = vld [vmem:[%s1027 + $0x2c0] sm:$0xff]
        %v1146 = vld [vmem:[%s1027 + $0x2c8] sm:$0xff]
        %v1147 = vld [vmem:[%s1027 + $0x2d0] sm:$0xff]
        %v1148 = vld [vmem:[%s1027 + $0x2d8] sm:$0xff]
        %v1149 = vld [vmem:[%s1027 + $0x2e0] sm:$0xff]
        %v1150 = vld [vmem:[%s1027 + $0x2e8] sm:$0xff]
        %v1151 = vld [vmem:[%s1027 + $0x2f0] sm:$0xff]
        %v1152 = vld [vmem:[%s1027 + $0x2f8] sm:$0xff]
        %v1153 = vld [vmem:[%s1027 + $0x300] sm:$0xff]
        %v1154 = vld [vmem:[%s1027 + $0x308] sm:$0xff]
        %v1155 = vld [vmem:[%s1027 + $0x310] sm:$0xff]
        %v1156 = vld [vmem:[%s1027 + $0x318] sm:$0xff]
        %v1157 = vld [vmem:[%s1027 + $0x320] sm:$0xff]
        %v1158 = vld [vmem:[%s1027 + $0x328] sm:$0xff]
        %v1159 = vld [vmem:[%s1027 + $0x330] sm:$0xff]
        %v1160 = vld [vmem:[%s1027 + $0x338] sm:$0xff]
        %v1161 = vld [vmem:[%s1027 + $0x340] sm:$0xff]
        %v1162 = vld [vmem:[%s1027 + $0x348] sm:$0xff]
        %v1163 = vld [vmem:[%s1027 + $0x350] sm:$0xff]
        %v1164 = vld [vmem:[%s1027 + $0x358] sm:$0xff]
        %v1165 = vld [vmem:[%s1027 + $0x360] sm:$0xff]
        %v1166 = vld [vmem:[%s1027 + $0x368] sm:$0xff]
        %v1167 = vld [vmem:[%s1027 + $0x370] sm:$0xff]
        %v1168 = vld [vmem:[%s1027 + $0x378] sm:$0xff]
        %v1169 = vld [vmem:[%s1027 + $0x380] sm:$0xff]
        %v1170 = vld [vmem:[%s1027 + $0x388] sm:$0xff]
        %v1171 = vld [vmem:[%s1027 + $0x390] sm:$0xff]
        %v1172 = vld [vmem:[%s1027 + $0x398] sm:$0xff]
        %v1173 = vld [vmem:[%s1027 + $0x3a0] sm:$0xff]
        %v1174 = vld [vmem:[%s1027 + $0x3a8] sm:$0xff]
        %v1175 = vld [vmem:[%s1027 + $0x3b0] sm:$0xff]
        %v1176 = vld [vmem:[%s1027 + $0x3b8] sm:$0xff]
        %v1177 = vld [vmem:[%s1027 + $0x3c0] sm:$0xff]
        %v1178 = vld [vmem:[%s1027 + $0x3c8] sm:$0xff]
        %v1179 = vld [vmem:[%s1027 + $0x3d0] sm:$0xff]
        %v1180 = vld [vmem:[%s1027 + $0x3d8] sm:$0xff]
        %v1181 = vld [vmem:[%s1027 + $0x3e0] sm:$0xff]
        %v1182 = vld [vmem:[%s1027 + $0x3e8] sm:$0xff]
        %v1183 = vld [vmem:[%s1027 + $0x3f0] sm:$0xff]
        %v1184 = vld [vmem:[%s1027 + $0x3f8] sm:$0xff]
        %v1185 = vld [vmem:[%s1027 + $0x400] sm:$0xff]
        %v1186 = vld [vmem:[%s1027 + $0x408] sm:$0xff]
        %v1187 = vld [vmem:[%s1027 + $0x410] sm:$0xff]
        %v1188 = vld [vmem:[%s1027 + $0x418] sm:$0xff]
        %v1189 = vld [vmem:[%s1027 + $0x420] sm:$0xff]
        %v1190 = vld [vmem:[%s1027 + $0x428] sm:$0xff]
        %v1191 = vld [vmem:[%s1027 + $0x430] sm:$0xff]
        %v1192 = vld [vmem:[%s1027 + $0x438] sm:$0xff]
        %v1193 = vld [vmem:[%s1027 + $0x440] sm:$0xff]
        %v1194 = vld [vmem:[%s1027 + $0x448] sm:$0xff]
        %v1195 = vld [vmem:[%s1027 + $0x450] sm:$0xff]
        %v1196 = vld [vmem:[%s1027 + $0x458] sm:$0xff]
        %v1197 = vld [vmem:[%s1027 + $0x460] sm:$0xff]
        %v1198 = vld [vmem:[%s1027 + $0x468] sm:$0xff]
        %v1199 = vld [vmem:[%s1027 + $0x470] sm:$0xff]
        %v1200 = vld [vmem:[%s1027 + $0x478] sm:$0xff]
        %v1201 = vld [vmem:[%s1027 + $0x480] sm:$0xff]
        %v1202 = vld [vmem:[%s1027 + $0x488] sm:$0xff]
        %v1203 = vld [vmem:[%s1027 + $0x490] sm:$0xff]
        %v1204 = vld [vmem:[%s1027 + $0x498] sm:$0xff]
        %v1205 = vld [vmem:[%s1027 + $0x4a0] sm:$0xff]
        %v1206 = vld [vmem:[%s1027 + $0x4a8] sm:$0xff]
        %v1207 = vld [vmem:[%s1027 + $0x4b0] sm:$0xff]
        %v1208 = vld [vmem:[%s1027 + $0x4b8] sm:$0xff]
        %v1209 = vld [vmem:[%s1027 + $0x4c0] sm:$0xff]
        %v1210 = vld [vmem:[%s1027 + $0x4c8] sm:$0xff]
        %v1211 = vld [vmem:[%s1027 + $0x4d0] sm:$0xff]
        %v1212 = vld [vmem:[%s1027 + $0x4d8] sm:$0xff]
        %v1213 = vld [vmem:[%s1027 + $0x4e0] sm:$0xff]
        %v1214 = vld [vmem:[%s1027 + $0x4e8] sm:$0xff]
        %v1215 = vld [vmem:[%s1027 + $0x4f0] sm:$0xff]
        %v1216 = vld [vmem:[%s1027 + $0x4f8] sm:$0xff]
        %v1217 = vld [vmem:[%s1027 + $0x500] sm:$0xff]
        %v1218 = vld [vmem:[%s1027 + $0x508] sm:$0xff]
        %v1219 = vld [vmem:[%s1027 + $0x510] sm:$0xff]
        %v1220 = vld [vmem:[%s1027 + $0x518] sm:$0xff]
        %v1221 = vld [vmem:[%s1027 + $0x520] sm:$0xff]
        %v1222 = vld [vmem:[%s1027 + $0x528] sm:$0xff]
        %v1223 = vld [vmem:[%s1027 + $0x530] sm:$0xff]
        %v1224 = vld [vmem:[%s1027 + $0x538] sm:$0xff]
        %v1225 = vld [vmem:[%s1027 + $0x540] sm:$0xff]
        %v1226 = vld [vmem:[%s1027 + $0x548] sm:$0xff]
        %v1227 = vld [vmem:[%s1027 + $0x550] sm:$0xff]
        %v1228 = vld [vmem:[%s1027 + $0x558] sm:$0xff]
        %v1229 = vld [vmem:[%s1027 + $0x560] sm:$0xff]
        %v1230 = vld [vmem:[%s1027 + $0x568] sm:$0xff]
        %v1231 = vld [vmem:[%s1027 + $0x570] sm:$0xff]
        %v1232 = vld [vmem:[%s1027 + $0x578] sm:$0xff]
        %v1233 = vld [vmem:[%s1027 + $0x580] sm:$0xff]
        %v1234 = vld [vmem:[%s1027 + $0x588] sm:$0xff]
        %v1235 = vld [vmem:[%s1027 + $0x590] sm:$0xff]
        %v1236 = vld [vmem:[%s1027 + $0x598] sm:$0xff]
        %v1237 = vld [vmem:[%s1027 + $0x5a0] sm:$0xff]
        %v1238 = vld [vmem:[%s1027 + $0x5a8] sm:$0xff]
        %v1239 = vld [vmem:[%s1027 + $0x5b0] sm:$0xff]
        %v1240 = vld [vmem:[%s1027 + $0x5b8] sm:$0xff]
        %v1241 = vld [vmem:[%s1027 + $0x5c0] sm:$0xff]
        %v1242 = vld [vmem:[%s1027 + $0x5c8] sm:$0xff]
        %v1243 = vld [vmem:[%s1027 + $0x5d0] sm:$0xff]
        %v1244 = vld [vmem:[%s1027 + $0x5d8] sm:$0xff]
        %v1245 = vld [vmem:[%s1027 + $0x5e0] sm:$0xff]
        %v1246 = vld [vmem:[%s1027 + $0x5e8] sm:$0xff]
        %v1247 = vld [vmem:[%s1027 + $0x5f0] sm:$0xff]
        %v1248 = vld [vmem:[%s1027 + $0x5f8] sm:$0xff]
        %v1249 = vld [vmem:[%s1027 + $0x600] sm:$0xff]
        %v1250 = vld [vmem:[%s1027 + $0x608] sm:$0xff]
        %v1251 = vld [vmem:[%s1027 + $0x610] sm:$0xff]
        %v1252 = vld [vmem:[%s1027 + $0x618] sm:$0xff]
        %v1253 = vld [vmem:[%s1027 + $0x620] sm:$0xff]
        %v1254 = vld [vmem:[%s1027 + $0x628] sm:$0xff]
        %v1255 = vld [vmem:[%s1027 + $0x630] sm:$0xff]
        %v1256 = vld [vmem:[%s1027 + $0x638] sm:$0xff]
        %v1257 = vld [vmem:[%s1027 + $0x640] sm:$0xff]
        %v1258 = vld [vmem:[%s1027 + $0x648] sm:$0xff]
        %v1259 = vld [vmem:[%s1027 + $0x650] sm:$0xff]
        %v1260 = vld [vmem:[%s1027 + $0x658] sm:$0xff]
        %v1261 = vld [vmem:[%s1027 + $0x660] sm:$0xff]
        %v1262 = vld [vmem:[%s1027 + $0x668] sm:$0xff]
        %v1263 = vld [vmem:[%s1027 + $0x670] sm:$0xff]
        %v1264 = vld [vmem:[%s1027 + $0x678] sm:$0xff]
        %v1265 = vld [vmem:[%s1027 + $0x680] sm:$0xff]
        %v1266 = vld [vmem:[%s1027 + $0x688] sm:$0xff]
        %v1267 = vld [vmem:[%s1027 + $0x690] sm:$0xff]
        %v1268 = vld [vmem:[%s1027 + $0x698] sm:$0xff]
        %v1269 = vld [vmem:[%s1027 + $0x6a0] sm:$0xff]
        %v1270 = vld [vmem:[%s1027 + $0x6a8] sm:$0xff]
        %v1271 = vld [vmem:[%s1027 + $0x6b0] sm:$0xff]
        %v1272 = vld [vmem:[%s1027 + $0x6b8] sm:$0xff]
        %v1273 = vld [vmem:[%s1027 + $0x6c0] sm:$0xff]
        %v1274 = vld [vmem:[%s1027 + $0x6c8] sm:$0xff]
        %v1275 = vld [vmem:[%s1027 + $0x6d0] sm:$0xff]
        %v1276 = vld [vmem:[%s1027 + $0x6d8] sm:$0xff]
        %v1277 = vld [vmem:[%s1027 + $0x6e0] sm:$0xff]
        %v1278 = vld [vmem:[%s1027 + $0x6e8] sm:$0xff]
        %v1279 = vld [vmem:[%s1027 + $0x6f0] sm:$0xff]
        %v1280 = vld [vmem:[%s1027 + $0x6f8] sm:$0xff]
        %v1281 = vld [vmem:[%s1027 + $0x700] sm:$0xff]
        %v1282 = vld [vmem:[%s1027 + $0x708] sm:$0xff]
        %v1283 = vld [vmem:[%s1027 + $0x710] sm:$0xff]
        %v1284 = vld [vmem:[%s1027 + $0x718] sm:$0xff]
        %v1285 = vld [vmem:[%s1027 + $0x720] sm:$0xff]
        %v1286 = vld [vmem:[%s1027 + $0x728] sm:$0xff]
        %v1287 = vld [vmem:[%s1027 + $0x730] sm:$0xff]
        %v1288 = vld [vmem:[%s1027 + $0x738] sm:$0xff]
        %v1289 = vld [vmem:[%s1027 + $0x740] sm:$0xff]
        %v1290 = vld [vmem:[%s1027 + $0x748] sm:$0xff]
        %v1291 = vld [vmem:[%s1027 + $0x750] sm:$0xff]
        %v1292 = vld [vmem:[%s1027 + $0x758] sm:$0xff]
        %v1293 = vld [vmem:[%s1027 + $0x760] sm:$0xff]
        %v1294 = vld [vmem:[%s1027 + $0x768] sm:$0xff]
        %v1295 = vld [vmem:[%s1027 + $0x770] sm:$0xff]
        %v1296 = vld [vmem:[%s1027 + $0x778] sm:$0xff]
        %v1297 = vld [vmem:[%s1027 + $0x780] sm:$0xff]
        %v1298 = vld [vmem:[%s1027 + $0x788] sm:$0xff]
        %v1299 = vld [vmem:[%s1027 + $0x790] sm:$0xff]
        %v1300 = vld [vmem:[%s1027 + $0x798] sm:$0xff]
        %v1301 = vld [vmem:[%s1027 + $0x7a0] sm:$0xff]
        %v1302 = vld [vmem:[%s1027 + $0x7a8] sm:$0xff]
        %v1303 = vld [vmem:[%s1027 + $0x7b0] sm:$0xff]
        %v1304 = vld [vmem:[%s1027 + $0x7b8] sm:$0xff]
        %v1305 = vld [vmem:[%s1027 + $0x7c0] sm:$0xff]
        %v1306 = vld [vmem:[%s1027 + $0x7c8] sm:$0xff]
        %v1307 = vld [vmem:[%s1027 + $0x7d0] sm:$0xff]
        %v1308 = vld [vmem:[%s1027 + $0x7d8] sm:$0xff]
        %v1309 = vld [vmem:[%s1027 + $0x7e0] sm:$0xff]
        %v1310 = vld [vmem:[%s1027 + $0x7e8] sm:$0xff]
        %v1311 = vld [vmem:[%s1027 + $0x7f0] sm:$0xff]
        %v1312 = vld [vmem:[%s1027 + $0x7f8] sm:$0xff]
        %v1313 = vld [vmem:[%s1027 + $0x800] sm:$0xff]
        %v1314 = vld [vmem:[%s1027 + $0x808] sm:$0xff]
        %v1315 = vld [vmem:[%s1027 + $0x810] sm:$0xff]
        %v1316 = vld [vmem:[%s1027 + $0x818] sm:$0xff]
        %v1317 = vld [vmem:[%s1027 + $0x820] sm:$0xff]
        %v1318 = vld [vmem:[%s1027 + $0x828] sm:$0xff]
        %v1319 = vld [vmem:[%s1027 + $0x830] sm:$0xff]
        %v1320 = vld [vmem:[%s1027 + $0x838] sm:$0xff]
        %v1321 = vld [vmem:[%s1027 + $0x840] sm:$0xff]
        %v1322 = vld [vmem:[%s1027 + $0x848] sm:$0xff]
        %v1323 = vld [vmem:[%s1027 + $0x850] sm:$0xff]
        %v1324 = vld [vmem:[%s1027 + $0x858] sm:$0xff]
        %v1325 = vld [vmem:[%s1027 + $0x860] sm:$0xff]
        %v1326 = vld [vmem:[%s1027 + $0x868] sm:$0xff]
        %v1327 = vld [vmem:[%s1027 + $0x870] sm:$0xff]
        %v1328 = vld [vmem:[%s1027 + $0x878] sm:$0xff]
        %v1329 = vld [vmem:[%s1027 + $0x880] sm:$0xff]
        %v1330 = vld [vmem:[%s1027 + $0x888] sm:$0xff]
        %v1331 = vld [vmem:[%s1027 + $0x890] sm:$0xff]
        %v1332 = vld [vmem:[%s1027 + $0x898] sm:$0xff]
        %v1333 = vld [vmem:[%s1027 + $0x8a0] sm:$0xff]
        %v1334 = vld [vmem:[%s1027 + $0x8a8] sm:$0xff]
        %v1335 = vld [vmem:[%s1027 + $0x8b0] sm:$0xff]
        %v1336 = vld [vmem:[%s1027 + $0x8b8] sm:$0xff]
        %v1337 = vld [vmem:[%s1027 + $0x8c0] sm:$0xff]
        %v1338 = vld [vmem:[%s1027 + $0x8c8] sm:$0xff]
        %v1339 = vld [vmem:[%s1027 + $0x8d0] sm:$0xff]
        %v1340 = vld [vmem:[%s1027 + $0x8d8] sm:$0xff]
        %v1341 = vld [vmem:[%s1027 + $0x8e0] sm:$0xff]
        %v1342 = vld [vmem:[%s1027 + $0x8e8] sm:$0xff]
        %v1343 = vld [vmem:[%s1027 + $0x8f0] sm:$0xff]
        %v1344 = vld [vmem:[%s1027 + $0x8f8] sm:$0xff]
        %v1345 = vld [vmem:[%s1027 + $0x900] sm:$0xff]
        %v1346 = vld [vmem:[%s1027 + $0x908] sm:$0xff]
        %v1347 = vld [vmem:[%s1027 + $0x910] sm:$0xff]
        %v1348 = vld [vmem:[%s1027 + $0x918] sm:$0xff]
        %v1349 = vld [vmem:[%s1027 + $0x920] sm:$0xff]
        %v1350 = vld [vmem:[%s1027 + $0x928] sm:$0xff]
        %v1351 = vld [vmem:[%s1027 + $0x930] sm:$0xff]
        %v1352 = vld [vmem:[%s1027 + $0x938] sm:$0xff]
        %v1353 = vld [vmem:[%s1027 + $0x940] sm:$0xff]
        %v1354 = vld [vmem:[%s1027 + $0x948] sm:$0xff]
        %v1355 = vld [vmem:[%s1027 + $0x950] sm:$0xff]
        %v1356 = vld [vmem:[%s1027 + $0x958] sm:$0xff]
        %v1357 = vld [vmem:[%s1027 + $0x960] sm:$0xff]
        %v1358 = vld [vmem:[%s1027 + $0x968] sm:$0xff]
        %v1359 = vld [vmem:[%s1027 + $0x970] sm:$0xff]
        %v1360 = vld [vmem:[%s1027 + $0x978] sm:$0xff]
        %v1361 = vld [vmem:[%s1027 + $0x980] sm:$0xff]
        %v1362 = vld [vmem:[%s1027 + $0x988] sm:$0xff]
        %v1363 = vld [vmem:[%s1027 + $0x990] sm:$0xff]
        %v1364 = vld [vmem:[%s1027 + $0x998] sm:$0xff]
        %v1365 = vld [vmem:[%s1027 + $0x9a0] sm:$0xff]
        %v1366 = vld [vmem:[%s1027 + $0x9a8] sm:$0xff]
        %v1367 = vld [vmem:[%s1027 + $0x9b0] sm:$0xff]
        %v1368 = vld [vmem:[%s1027 + $0x9b8] sm:$0xff]
        %v1369 = vld [vmem:[%s1027 + $0x9c0] sm:$0xff]
        %v1370 = vld [vmem:[%s1027 + $0x9c8] sm:$0xff]
        %v1371 = vld [vmem:[%s1027 + $0x9d0] sm:$0xff]
        %v1372 = vld [vmem:[%s1027 + $0x9d8] sm:$0xff]
        %v1373 = vld [vmem:[%s1027 + $0x9e0] sm:$0xff]
        %v1374 = vld [vmem:[%s1027 + $0x9e8] sm:$0xff]
        %v1375 = vld [vmem:[%s1027 + $0x9f0] sm:$0xff]
        %v1376 = vld [vmem:[%s1027 + $0x9f8] sm:$0xff]
        %v1377 = vld [vmem:[%s1027 + $0xa00] sm:$0xff]
        %v1378 = vld [vmem:[%s1027 + $0xa08] sm:$0xff]
        %v1379 = vld [vmem:[%s1027 + $0xa10] sm:$0xff]
        %v1380 = vld [vmem:[%s1027 + $0xa18] sm:$0xff]
        %v1381 = vld [vmem:[%s1027 + $0xa20] sm:$0xff]
        %v1382 = vld [vmem:[%s1027 + $0xa28] sm:$0xff]
        %v1383 = vld [vmem:[%s1027 + $0xa30] sm:$0xff]
        %v1384 = vld [vmem:[%s1027 + $0xa38] sm:$0xff]
        %v1385 = vld [vmem:[%s1027 + $0xa40] sm:$0xff]
        %v1386 = vld [vmem:[%s1027 + $0xa48] sm:$0xff]
        %v1387 = vld [vmem:[%s1027 + $0xa50] sm:$0xff]
        %v1388 = vld [vmem:[%s1027 + $0xa58] sm:$0xff]
        %v1389 = vld [vmem:[%s1027 + $0xa60] sm:$0xff]
        %v1390 = vld [vmem:[%s1027 + $0xa68] sm:$0xff]
        %v1391 = vld [vmem:[%s1027 + $0xa70] sm:$0xff]
        %v1392 = vld [vmem:[%s1027 + $0xa78] sm:$0xff]
        %v1393 = vld [vmem:[%s1027 + $0xa80] sm:$0xff]
        %v1394 = vld [vmem:[%s1027 + $0xa88] sm:$0xff]
        %v1395 = vld [vmem:[%s1027 + $0xa90] sm:$0xff]
        %v1396 = vld [vmem:[%s1027 + $0xa98] sm:$0xff]
        %v1397 = vld [vmem:[%s1027 + $0xaa0] sm:$0xff]
        %v1398 = vld [vmem:[%s1027 + $0xaa8] sm:$0xff]
        %v1399 = vld [vmem:[%s1027 + $0xab0] sm:$0xff]
        %v1400 = vld [vmem:[%s1027 + $0xab8] sm:$0xff]
        %v1401 = vld [vmem:[%s1027 + $0xac0] sm:$0xff]
        %v1402 = vld [vmem:[%s1027 + $0xac8] sm:$0xff]
        %v1403 = vld [vmem:[%s1027 + $0xad0] sm:$0xff]
        %v1404 = vld [vmem:[%s1027 + $0xad8] sm:$0xff]
        %v1405 = vld [vmem:[%s1027 + $0xae0] sm:$0xff]
        %v1406 = vld [vmem:[%s1027 + $0xae8] sm:$0xff]
        %v1407 = vld [vmem:[%s1027 + $0xaf0] sm:$0xff]
        %v1408 = vld [vmem:[%s1027 + $0xaf8] sm:$0xff]
        %v1409 = vld [vmem:[%s1027 + $0xb00] sm:$0xff]
        %v1410 = vld [vmem:[%s1027 + $0xb08] sm:$0xff]
        %v1411 = vld [vmem:[%s1027 + $0xb10] sm:$0xff]
        %v1412 = vld [vmem:[%s1027 + $0xb18] sm:$0xff]
        %v1413 = vld [vmem:[%s1027 + $0xb20] sm:$0xff]
        %v1414 = vld [vmem:[%s1027 + $0xb28] sm:$0xff]
        %v1415 = vld [vmem:[%s1027 + $0xb30] sm:$0xff]
        %v1416 = vld [vmem:[%s1027 + $0xb38] sm:$0xff]
        %v1417 = vld [vmem:[%s1027 + $0xb40] sm:$0xff]
        %v1418 = vld [vmem:[%s1027 + $0xb48] sm:$0xff]
        %v1419 = vld [vmem:[%s1027 + $0xb50] sm:$0xff]
        %v1420 = vld [vmem:[%s1027 + $0xb58] sm:$0xff]
        %v1421 = vld [vmem:[%s1027 + $0xb60] sm:$0xff]
        %v1422 = vld [vmem:[%s1027 + $0xb68] sm:$0xff]
        %v1423 = vld [vmem:[%s1027 + $0xb70] sm:$0xff]
        %v1424 = vld [vmem:[%s1027 + $0xb78] sm:$0xff]
        %v1425 = vld [vmem:[%s1027 + $0xb80] sm:$0xff]
        %v1426 = vld [vmem:[%s1027 + $0xb88] sm:$0xff]
        %v1427 = vld [vmem:[%s1027 + $0xb90] sm:$0xff]
        %v1428 = vld [vmem:[%s1027 + $0xb98] sm:$0xff]
        %v1429 = vld [vmem:[%s1027 + $0xba0] sm:$0xff]
        %v1430 = vld [vmem:[%s1027 + $0xba8] sm:$0xff]
        %v1431 = vld [vmem:[%s1027 + $0xbb0] sm:$0xff]
        %v1432 = vld [vmem:[%s1027 + $0xbb8] sm:$0xff]
        %v1433 = vld [vmem:[%s1027 + $0xbc0] sm:$0xff]
        %v1434 = vld [vmem:[%s1027 + $0xbc8] sm:$0xff]
        %v1435 = vld [vmem:[%s1027 + $0xbd0] sm:$0xff]
        %v1436 = vld [vmem:[%s1027 + $0xbd8] sm:$0xff]
        %v1437 = vld [vmem:[%s1027 + $0xbe0] sm:$0xff]
        %v1438 = vld [vmem:[%s1027 + $0xbe8] sm:$0xff]
        %v1439 = vld [vmem:[%s1027 + $0xbf0] sm:$0xff]
        %v1440 = vld [vmem:[%s1027 + $0xbf8] sm:$0xff]
        %v1441 = vld [vmem:[%s1027 + $0xc00] sm:$0xff]
        %v1442 = vld [vmem:[%s1027 + $0xc08] sm:$0xff]
        %v1443 = vld [vmem:[%s1027 + $0xc10] sm:$0xff]
        %v1444 = vld [vmem:[%s1027 + $0xc18] sm:$0xff]
        %v1445 = vld [vmem:[%s1027 + $0xc20] sm:$0xff]
        %v1446 = vld [vmem:[%s1027 + $0xc28] sm:$0xff]
        %v1447 = vld [vmem:[%s1027 + $0xc30] sm:$0xff]
        %v1448 = vld [vmem:[%s1027 + $0xc38] sm:$0xff]
        %v1449 = vld [vmem:[%s1027 + $0xc40] sm:$0xff]
        %v1450 = vld [vmem:[%s1027 + $0xc48] sm:$0xff]
        %v1451 = vld [vmem:[%s1027 + $0xc50] sm:$0xff]
        %v1452 = vld [vmem:[%s1027 + $0xc58] sm:$0xff]
        %v1453 = vld [vmem:[%s1027 + $0xc60] sm:$0xff]
        %v1454 = vld [vmem:[%s1027 + $0xc68] sm:$0xff]
        %v1455 = vld [vmem:[%s1027 + $0xc70] sm:$0xff]
        %v1456 = vld [vmem:[%s1027 + $0xc78] sm:$0xff]
        %v1457 = vld [vmem:[%s1027 + $0xc80] sm:$0xff]
        %v1458 = vld [vmem:[%s1027 + $0xc88] sm:$0xff]
        %v1459 = vld [vmem:[%s1027 + $0xc90] sm:$0xff]
        %v1460 = vld [vmem:[%s1027 + $0xc98] sm:$0xff]
        %v1461 = vld [vmem:[%s1027 + $0xca0] sm:$0xff]
        %v1462 = vld [vmem:[%s1027 + $0xca8] sm:$0xff]
        %v1463 = vld [vmem:[%s1027 + $0xcb0] sm:$0xff]
        %v1464 = vld [vmem:[%s1027 + $0xcb8] sm:$0xff]
        %v1465 = vld [vmem:[%s1027 + $0xcc0] sm:$0xff]
        %v1466 = vld [vmem:[%s1027 + $0xcc8] sm:$0xff]
        %v1467 = vld [vmem:[%s1027 + $0xcd0] sm:$0xff]
        %v1468 = vld [vmem:[%s1027 + $0xcd8] sm:$0xff]
        %v1469 = vld [vmem:[%s1027 + $0xce0] sm:$0xff]
        %v1470 = vld [vmem:[%s1027 + $0xce8] sm:$0xff]
        %v1471 = vld [vmem:[%s1027 + $0xcf0] sm:$0xff]
        %v1472 = vld [vmem:[%s1027 + $0xcf8] sm:$0xff]
        %v1473 = vld [vmem:[%s1027 + $0xd00] sm:$0xff]
        %v1474 = vld [vmem:[%s1027 + $0xd08] sm:$0xff]
        %v1475 = vld [vmem:[%s1027 + $0xd10] sm:$0xff]
        %v1476 = vld [vmem:[%s1027 + $0xd18] sm:$0xff]
        %v1477 = vld [vmem:[%s1027 + $0xd20] sm:$0xff]
        %v1478 = vld [vmem:[%s1027 + $0xd28] sm:$0xff]
        %v1479 = vld [vmem:[%s1027 + $0xd30] sm:$0xff]
        %v1480 = vld [vmem:[%s1027 + $0xd38] sm:$0xff]
        %v1481 = vld [vmem:[%s1027 + $0xd40] sm:$0xff]
        %v1482 = vld [vmem:[%s1027 + $0xd48] sm:$0xff]
        %v1483 = vld [vmem:[%s1027 + $0xd50] sm:$0xff]
        %v1484 = vld [vmem:[%s1027 + $0xd58] sm:$0xff]
        %v1485 = vld [vmem:[%s1027 + $0xd60] sm:$0xff]
        %v1486 = vld [vmem:[%s1027 + $0xd68] sm:$0xff]
        %v1487 = vld [vmem:[%s1027 + $0xd70] sm:$0xff]
        %v1488 = vld [vmem:[%s1027 + $0xd78] sm:$0xff]
        %v1489 = vld [vmem:[%s2] sm:$0xff]
        %1491 = vset.pattern.permute.xlu0 0
        %1492 = vperm.xlu0 %1491, %v1489
        %v1493 = vpop.permute.xlu0 %1492
        %vm1495 = vcmask 719872
        %v1497 = vsel %vm1495, %v1056, 0
        %1499 = vmatpush.msra.mxu0 %v1297
        %1500 = vmatpush.msra.mxu0 %v1281
        %1501 = vmatpush.msra.mxu0 %v1265
        %1502 = vmatpush.msra.mxu0 %v1249
        %1503 = vmatpush.msra.mxu0 %v1233
        %1504 = vmatpush.msra.mxu0 %v1217
        %1505 = vmatpush.msra.mxu0 %v1201
        %1506 = vmatpush.msra.mxu0 %v1185
        %1507 = vmatpush.msra.mxu0 %v1169
        %1508 = vmatpush.msra.mxu0 %v1153
        %1509 = vmatpush.msra.mxu0 %v1137
        %1510 = vmatpush.msra.mxu0 %v1121
        %1511 = vmatpush.msra.mxu0 %v1105
        %1512 = vmatpush.msra.mxu0 %v1089
        %1513 = vmatpush.msra.mxu0 %v1073
        %1514 = vmatpush.msra.mxu0 %v1057
        %1515 = vmatmul.f32.gmra.mxu0 %v1055
        %v1516 = vpop.f32.mrf.mxu0
        %v1517 = vadd.f32 %v1493, %v1516
        %1518 = vdwg.mxu0
        %1519 = vmatpush.msra.mxu0 0.0
        %1520 = vmatpush.msra.mxu0 0.0
        %1521 = vmatpush.msra.mxu0 0.0
        %1522 = vmatpush.msra.mxu0 0.0
        %1523 = vmatpush.msra.mxu0 0.0
        %1524 = vmatpush.msra.mxu0 %v1473
        %1525 = vmatpush.msra.mxu0 %v1457
        %1526 = vmatpush.msra.mxu0 %v1441
        %1527 = vmatpush.msra.mxu0 %v1425
        %1528 = vmatpush.msra.mxu0 %v1409
        %1529 = vmatpush.msra.mxu0 %v1393
        %1530 = vmatpush.msra.mxu0 %v1377
        %1531 = vmatpush.msra.mxu0 %v1361
        %1532 = vmatpush.msra.mxu0 %v1345
        %1533 = vmatpush.msra.mxu0 %v1329
        %1534 = vmatpush.msra.mxu0 %v1313
        %1535 = vmatmul.f32.gmra.mxu0 %v1497
        %v1536 = vpop.f32.mrf.mxu0
        %v1537 = vadd.f32 %v1517, %v1536
        %1538 = vdwg.mxu0
        %1539 = vmatpush.msra.mxu0 %v1298
        %1540 = vmatpush.msra.mxu0 %v1282
        %1541 = vmatpush.msra.mxu0 %v1266
        %1542 = vmatpush.msra.mxu0 %v1250
        %1543 = vmatpush.msra.mxu0 %v1234
        %1544 = vmatpush.msra.mxu0 %v1218
        %1545 = vmatpush.msra.mxu0 %v1202
        %1546 = vmatpush.msra.mxu0 %v1186
        %1547 = vmatpush.msra.mxu0 %v1170
        %1548 = vmatpush.msra.mxu0 %v1154
        %1549 = vmatpush.msra.mxu0 %v1138
        %1550 = vmatpush.msra.mxu0 %v1122
        %1551 = vmatpush.msra.mxu0 %v1106
        %1552 = vmatpush.msra.mxu0 %v1090
        %1553 = vmatpush.msra.mxu0 %v1074
        %1554 = vmatpush.msra.mxu0 %v1058
        %1555 = vmatmul.f32.gmra.mxu0 %v1055
        %v1556 = vpop.f32.mrf.mxu0
        %v1557 = vadd.f32 %v1493, %v1556
        %1558 = vdwg.mxu0
        %1559 = vmatpush.msra.mxu0 0.0
        %1560 = vmatpush.msra.mxu0 0.0
        %1561 = vmatpush.msra.mxu0 0.0
        %1562 = vmatpush.msra.mxu0 0.0
        %1563 = vmatpush.msra.mxu0 0.0
        %1564 = vmatpush.msra.mxu0 %v1474
        %1565 = vmatpush.msra.mxu0 %v1458
        %1566 = vmatpush.msra.mxu0 %v1442
        %1567 = vmatpush.msra.mxu0 %v1426
        %1568 = vmatpush.msra.mxu0 %v1410
        %1569 = vmatpush.msra.mxu0 %v1394
        %1570 = vmatpush.msra.mxu0 %v1378
        %1571 = vmatpush.msra.mxu0 %v1362
        %1572 = vmatpush.msra.mxu0 %v1346
        %1573 = vmatpush.msra.mxu0 %v1330
        %1574 = vmatpush.msra.mxu0 %v1314
        %1575 = vmatmul.f32.gmra.mxu0 %v1497
        %v1576 = vpop.f32.mrf.mxu0
        %v1577 = vadd.f32 %v1557, %v1576
        %1578 = vdwg.mxu0
        %1579 = vmatpush.msra.mxu0 %v1299
        %1580 = vmatpush.msra.mxu0 %v1283
        %1581 = vmatpush.msra.mxu0 %v1267
        %1582 = vmatpush.msra.mxu0 %v1251
        %1583 = vmatpush.msra.mxu0 %v1235
        %1584 = vmatpush.msra.mxu0 %v1219
        %1585 = vmatpush.msra.mxu0 %v1203
        %1586 = vmatpush.msra.mxu0 %v1187
        %1587 = vmatpush.msra.mxu0 %v1171
        %1588 = vmatpush.msra.mxu0 %v1155
        %1589 = vmatpush.msra.mxu0 %v1139
        %1590 = vmatpush.msra.mxu0 %v1123
        %1591 = vmatpush.msra.mxu0 %v1107
        %1592 = vmatpush.msra.mxu0 %v1091
        %1593 = vmatpush.msra.mxu0 %v1075
        %1594 = vmatpush.msra.mxu0 %v1059
        %1595 = vmatmul.f32.gmra.mxu0 %v1055
        %v1596 = vpop.f32.mrf.mxu0
        %v1597 = vadd.f32 %v1493, %v1596
        %1598 = vdwg.mxu0
        %1599 = vmatpush.msra.mxu0 0.0
        %1600 = vmatpush.msra.mxu0 0.0
        %1601 = vmatpush.msra.mxu0 0.0
        %1602 = vmatpush.msra.mxu0 0.0
        %1603 = vmatpush.msra.mxu0 0.0
        %1604 = vmatpush.msra.mxu0 %v1475
        %1605 = vmatpush.msra.mxu0 %v1459
        %1606 = vmatpush.msra.mxu0 %v1443
        %1607 = vmatpush.msra.mxu0 %v1427
        %1608 = vmatpush.msra.mxu0 %v1411
        %1609 = vmatpush.msra.mxu0 %v1395
        %1610 = vmatpush.msra.mxu0 %v1379
        %1611 = vmatpush.msra.mxu0 %v1363
        %1612 = vmatpush.msra.mxu0 %v1347
        %1613 = vmatpush.msra.mxu0 %v1331
        %1614 = vmatpush.msra.mxu0 %v1315
        %1615 = vmatmul.f32.gmra.mxu0 %v1497
        %v1616 = vpop.f32.mrf.mxu0
        %v1617 = vadd.f32 %v1597, %v1616
        %1618 = vdwg.mxu0
        %1619 = vmatpush.msra.mxu0 %v1300
        %1620 = vmatpush.msra.mxu0 %v1284
        %1621 = vmatpush.msra.mxu0 %v1268
        %1622 = vmatpush.msra.mxu0 %v1252
        %1623 = vmatpush.msra.mxu0 %v1236
        %1624 = vmatpush.msra.mxu0 %v1220
        %1625 = vmatpush.msra.mxu0 %v1204
        %1626 = vmatpush.msra.mxu0 %v1188
        %1627 = vmatpush.msra.mxu0 %v1172
        %1628 = vmatpush.msra.mxu0 %v1156
        %1629 = vmatpush.msra.mxu0 %v1140
        %1630 = vmatpush.msra.mxu0 %v1124
        %1631 = vmatpush.msra.mxu0 %v1108
        %1632 = vmatpush.msra.mxu0 %v1092
        %1633 = vmatpush.msra.mxu0 %v1076
        %1634 = vmatpush.msra.mxu0 %v1060
        %1635 = vmatmul.f32.gmra.mxu0 %v1055
        %v1636 = vpop.f32.mrf.mxu0
        %v1637 = vadd.f32 %v1493, %v1636
        %1638 = vdwg.mxu0
        %1639 = vmatpush.msra.mxu0 0.0
        %1640 = vmatpush.msra.mxu0 0.0
        %1641 = vmatpush.msra.mxu0 0.0
        %1642 = vmatpush.msra.mxu0 0.0
        %1643 = vmatpush.msra.mxu0 0.0
        %1644 = vmatpush.msra.mxu0 %v1476
        %1645 = vmatpush.msra.mxu0 %v1460
        %1646 = vmatpush.msra.mxu0 %v1444
        %1647 = vmatpush.msra.mxu0 %v1428
        %1648 = vmatpush.msra.mxu0 %v1412
        %1649 = vmatpush.msra.mxu0 %v1396
        %1650 = vmatpush.msra.mxu0 %v1380
        %1651 = vmatpush.msra.mxu0 %v1364
        %1652 = vmatpush.msra.mxu0 %v1348
        %1653 = vmatpush.msra.mxu0 %v1332
        %1654 = vmatpush.msra.mxu0 %v1316
        %1655 = vmatmul.f32.gmra.mxu0 %v1497
        %v1656 = vpop.f32.mrf.mxu0
        %v1657 = vadd.f32 %v1637, %v1656
        %1658 = vdwg.mxu0
        %1659 = vmatpush.msra.mxu0 %v1301
        %1660 = vmatpush.msra.mxu0 %v1285
        %1661 = vmatpush.msra.mxu0 %v1269
        %1662 = vmatpush.msra.mxu0 %v1253
        %1663 = vmatpush.msra.mxu0 %v1237
        %1664 = vmatpush.msra.mxu0 %v1221
        %1665 = vmatpush.msra.mxu0 %v1205
        %1666 = vmatpush.msra.mxu0 %v1189
        %1667 = vmatpush.msra.mxu0 %v1173
        %1668 = vmatpush.msra.mxu0 %v1157
        %1669 = vmatpush.msra.mxu0 %v1141
        %1670 = vmatpush.msra.mxu0 %v1125
        %1671 = vmatpush.msra.mxu0 %v1109
        %1672 = vmatpush.msra.mxu0 %v1093
        %1673 = vmatpush.msra.mxu0 %v1077
        %1674 = vmatpush.msra.mxu0 %v1061
        %1675 = vmatmul.f32.gmra.mxu0 %v1055
        %v1676 = vpop.f32.mrf.mxu0
        %v1677 = vadd.f32 %v1493, %v1676
        %1678 = vdwg.mxu0
        %1679 = vmatpush.msra.mxu0 0.0
        %1680 = vmatpush.msra.mxu0 0.0
        %1681 = vmatpush.msra.mxu0 0.0
        %1682 = vmatpush.msra.mxu0 0.0
        %1683 = vmatpush.msra.mxu0 0.0
        %1684 = vmatpush.msra.mxu0 %v1477
        %1685 = vmatpush.msra.mxu0 %v1461
        %1686 = vmatpush.msra.mxu0 %v1445
        %1687 = vmatpush.msra.mxu0 %v1429
        %1688 = vmatpush.msra.mxu0 %v1413
        %1689 = vmatpush.msra.mxu0 %v1397
        %1690 = vmatpush.msra.mxu0 %v1381
        %1691 = vmatpush.msra.mxu0 %v1365
        %1692 = vmatpush.msra.mxu0 %v1349
        %1693 = vmatpush.msra.mxu0 %v1333
        %1694 = vmatpush.msra.mxu0 %v1317
        %1695 = vmatmul.f32.gmra.mxu0 %v1497
        %v1696 = vpop.f32.mrf.mxu0
        %v1697 = vadd.f32 %v1677, %v1696
        %1698 = vdwg.mxu0
        %1699 = vmatpush.msra.mxu0 %v1302
        %1700 = vmatpush.msra.mxu0 %v1286
        %1701 = vmatpush.msra.mxu0 %v1270
        %1702 = vmatpush.msra.mxu0 %v1254
        %1703 = vmatpush.msra.mxu0 %v1238
        %1704 = vmatpush.msra.mxu0 %v1222
        %1705 = vmatpush.msra.mxu0 %v1206
        %1706 = vmatpush.msra.mxu0 %v1190
        %1707 = vmatpush.msra.mxu0 %v1174
        %1708 = vmatpush.msra.mxu0 %v1158
        %1709 = vmatpush.msra.mxu0 %v1142
        %1710 = vmatpush.msra.mxu0 %v1126
        %1711 = vmatpush.msra.mxu0 %v1110
        %1712 = vmatpush.msra.mxu0 %v1094
        %1713 = vmatpush.msra.mxu0 %v1078
        %1714 = vmatpush.msra.mxu0 %v1062
        %1715 = vmatmul.f32.gmra.mxu0 %v1055
        %v1716 = vpop.f32.mrf.mxu0
        %v1717 = vadd.f32 %v1493, %v1716
        %1718 = vdwg.mxu0
        %1719 = vmatpush.msra.mxu0 0.0
        %1720 = vmatpush.msra.mxu0 0.0
        %1721 = vmatpush.msra.mxu0 0.0
        %1722 = vmatpush.msra.mxu0 0.0
        %1723 = vmatpush.msra.mxu0 0.0
        %1724 = vmatpush.msra.mxu0 %v1478
        %1725 = vmatpush.msra.mxu0 %v1462
        %1726 = vmatpush.msra.mxu0 %v1446
        %1727 = vmatpush.msra.mxu0 %v1430
        %1728 = vmatpush.msra.mxu0 %v1414
        %1729 = vmatpush.msra.mxu0 %v1398
        %1730 = vmatpush.msra.mxu0 %v1382
        %1731 = vmatpush.msra.mxu0 %v1366
        %1732 = vmatpush.msra.mxu0 %v1350
        %1733 = vmatpush.msra.mxu0 %v1334
        %1734 = vmatpush.msra.mxu0 %v1318
        %1735 = vmatmul.f32.gmra.mxu0 %v1497
        %v1736 = vpop.f32.mrf.mxu0
        %v1737 = vadd.f32 %v1717, %v1736
        %1738 = vdwg.mxu0
        %1739 = vmatpush.msra.mxu0 %v1303
        %1740 = vmatpush.msra.mxu0 %v1287
        %1741 = vmatpush.msra.mxu0 %v1271
        %1742 = vmatpush.msra.mxu0 %v1255
        %1743 = vmatpush.msra.mxu0 %v1239
        %1744 = vmatpush.msra.mxu0 %v1223
        %1745 = vmatpush.msra.mxu0 %v1207
        %1746 = vmatpush.msra.mxu0 %v1191
        %1747 = vmatpush.msra.mxu0 %v1175
        %1748 = vmatpush.msra.mxu0 %v1159
        %1749 = vmatpush.msra.mxu0 %v1143
        %1750 = vmatpush.msra.mxu0 %v1127
        %1751 = vmatpush.msra.mxu0 %v1111
        %1752 = vmatpush.msra.mxu0 %v1095
        %1753 = vmatpush.msra.mxu0 %v1079
        %1754 = vmatpush.msra.mxu0 %v1063
        %1755 = vmatmul.f32.gmra.mxu0 %v1055
        %v1756 = vpop.f32.mrf.mxu0
        %v1757 = vadd.f32 %v1493, %v1756
        %1758 = vdwg.mxu0
        %1759 = vmatpush.msra.mxu0 0.0
        %1760 = vmatpush.msra.mxu0 0.0
        %1761 = vmatpush.msra.mxu0 0.0
        %1762 = vmatpush.msra.mxu0 0.0
        %1763 = vmatpush.msra.mxu0 0.0
        %1764 = vmatpush.msra.mxu0 %v1479
        %1765 = vmatpush.msra.mxu0 %v1463
        %1766 = vmatpush.msra.mxu0 %v1447
        %1767 = vmatpush.msra.mxu0 %v1431
        %1768 = vmatpush.msra.mxu0 %v1415
        %1769 = vmatpush.msra.mxu0 %v1399
        %1770 = vmatpush.msra.mxu0 %v1383
        %1771 = vmatpush.msra.mxu0 %v1367
        %1772 = vmatpush.msra.mxu0 %v1351
        %1773 = vmatpush.msra.mxu0 %v1335
        %1774 = vmatpush.msra.mxu0 %v1319
        %1775 = vmatmul.f32.gmra.mxu0 %v1497
        %v1776 = vpop.f32.mrf.mxu0
        %v1777 = vadd.f32 %v1757, %v1776
        %1778 = vdwg.mxu0
        %1779 = vmatpush.msra.mxu0 %v1304
        %1780 = vmatpush.msra.mxu0 %v1288
        %1781 = vmatpush.msra.mxu0 %v1272
        %1782 = vmatpush.msra.mxu0 %v1256
        %1783 = vmatpush.msra.mxu0 %v1240
        %1784 = vmatpush.msra.mxu0 %v1224
        %1785 = vmatpush.msra.mxu0 %v1208
        %1786 = vmatpush.msra.mxu0 %v1192
        %1787 = vmatpush.msra.mxu0 %v1176
        %1788 = vmatpush.msra.mxu0 %v1160
        %1789 = vmatpush.msra.mxu0 %v1144
        %1790 = vmatpush.msra.mxu0 %v1128
        %1791 = vmatpush.msra.mxu0 %v1112
        %1792 = vmatpush.msra.mxu0 %v1096
        %1793 = vmatpush.msra.mxu0 %v1080
        %1794 = vmatpush.msra.mxu0 %v1064
        %1795 = vmatmul.f32.gmra.mxu0 %v1055
        %v1796 = vpop.f32.mrf.mxu0
        %v1797 = vadd.f32 %v1493, %v1796
        %1798 = vdwg.mxu0
        %1799 = vmatpush.msra.mxu0 0.0
        %1800 = vmatpush.msra.mxu0 0.0
        %1801 = vmatpush.msra.mxu0 0.0
        %1802 = vmatpush.msra.mxu0 0.0
        %1803 = vmatpush.msra.mxu0 0.0
        %1804 = vmatpush.msra.mxu0 %v1480
        %1805 = vmatpush.msra.mxu0 %v1464
        %1806 = vmatpush.msra.mxu0 %v1448
        %1807 = vmatpush.msra.mxu0 %v1432
        %1808 = vmatpush.msra.mxu0 %v1416
        %1809 = vmatpush.msra.mxu0 %v1400
        %1810 = vmatpush.msra.mxu0 %v1384
        %1811 = vmatpush.msra.mxu0 %v1368
        %1812 = vmatpush.msra.mxu0 %v1352
        %1813 = vmatpush.msra.mxu0 %v1336
        %1814 = vmatpush.msra.mxu0 %v1320
        %1815 = vmatmul.f32.gmra.mxu0 %v1497
        %v1816 = vpop.f32.mrf.mxu0
        %v1817 = vadd.f32 %v1797, %v1816
        %1818 = vdwg.mxu0
        %1819 = vmatpush.msra.mxu0 %v1305
        %1820 = vmatpush.msra.mxu0 %v1289
        %1821 = vmatpush.msra.mxu0 %v1273
        %1822 = vmatpush.msra.mxu0 %v1257
        %1823 = vmatpush.msra.mxu0 %v1241
        %1824 = vmatpush.msra.mxu0 %v1225
        %1825 = vmatpush.msra.mxu0 %v1209
        %1826 = vmatpush.msra.mxu0 %v1193
        %1827 = vmatpush.msra.mxu0 %v1177
        %1828 = vmatpush.msra.mxu0 %v1161
        %1829 = vmatpush.msra.mxu0 %v1145
        %1830 = vmatpush.msra.mxu0 %v1129
        %1831 = vmatpush.msra.mxu0 %v1113
        %1832 = vmatpush.msra.mxu0 %v1097
        %1833 = vmatpush.msra.mxu0 %v1081
        %1834 = vmatpush.msra.mxu0 %v1065
        %1835 = vmatmul.f32.gmra.mxu0 %v1055
        %v1836 = vpop.f32.mrf.mxu0
        %v1837 = vadd.f32 %v1493, %v1836
        %1838 = vdwg.mxu0
        %1839 = vmatpush.msra.mxu0 0.0
        %1840 = vmatpush.msra.mxu0 0.0
        %1841 = vmatpush.msra.mxu0 0.0
        %1842 = vmatpush.msra.mxu0 0.0
        %1843 = vmatpush.msra.mxu0 0.0
        %1844 = vmatpush.msra.mxu0 %v1481
        %1845 = vmatpush.msra.mxu0 %v1465
        %1846 = vmatpush.msra.mxu0 %v1449
        %1847 = vmatpush.msra.mxu0 %v1433
        %1848 = vmatpush.msra.mxu0 %v1417
        %1849 = vmatpush.msra.mxu0 %v1401
        %1850 = vmatpush.msra.mxu0 %v1385
        %1851 = vmatpush.msra.mxu0 %v1369
        %1852 = vmatpush.msra.mxu0 %v1353
        %1853 = vmatpush.msra.mxu0 %v1337
        %1854 = vmatpush.msra.mxu0 %v1321
        %1855 = vmatmul.f32.gmra.mxu0 %v1497
        %v1856 = vpop.f32.mrf.mxu0
        %v1857 = vadd.f32 %v1837, %v1856
        %1858 = vdwg.mxu0
        %1859 = vmatpush.msra.mxu0 %v1306
        %1860 = vmatpush.msra.mxu0 %v1290
        %1861 = vmatpush.msra.mxu0 %v1274
        %1862 = vmatpush.msra.mxu0 %v1258
        %1863 = vmatpush.msra.mxu0 %v1242
        %1864 = vmatpush.msra.mxu0 %v1226
        %1865 = vmatpush.msra.mxu0 %v1210
        %1866 = vmatpush.msra.mxu0 %v1194
        %1867 = vmatpush.msra.mxu0 %v1178
        %1868 = vmatpush.msra.mxu0 %v1162
        %1869 = vmatpush.msra.mxu0 %v1146
        %1870 = vmatpush.msra.mxu0 %v1130
        %1871 = vmatpush.msra.mxu0 %v1114
        %1872 = vmatpush.msra.mxu0 %v1098
        %1873 = vmatpush.msra.mxu0 %v1082
        %1874 = vmatpush.msra.mxu0 %v1066
        %1875 = vmatmul.f32.gmra.mxu0 %v1055
        %v1876 = vpop.f32.mrf.mxu0
        %v1877 = vadd.f32 %v1493, %v1876
        %1878 = vdwg.mxu0
        %1879 = vmatpush.msra.mxu0 0.0
        %1880 = vmatpush.msra.mxu0 0.0
        %1881 = vmatpush.msra.mxu0 0.0
        %1882 = vmatpush.msra.mxu0 0.0
        %1883 = vmatpush.msra.mxu0 0.0
        %1884 = vmatpush.msra.mxu0 %v1482
        %1885 = vmatpush.msra.mxu0 %v1466
        %1886 = vmatpush.msra.mxu0 %v1450
        %1887 = vmatpush.msra.mxu0 %v1434
        %1888 = vmatpush.msra.mxu0 %v1418
        %1889 = vmatpush.msra.mxu0 %v1402
        %1890 = vmatpush.msra.mxu0 %v1386
        %1891 = vmatpush.msra.mxu0 %v1370
        %1892 = vmatpush.msra.mxu0 %v1354
        %1893 = vmatpush.msra.mxu0 %v1338
        %1894 = vmatpush.msra.mxu0 %v1322
        %1895 = vmatmul.f32.gmra.mxu0 %v1497
        %v1896 = vpop.f32.mrf.mxu0
        %v1897 = vadd.f32 %v1877, %v1896
        %1898 = vdwg.mxu0
        %1899 = vmatpush.msra.mxu0 %v1307
        %1900 = vmatpush.msra.mxu0 %v1291
        %1901 = vmatpush.msra.mxu0 %v1275
        %1902 = vmatpush.msra.mxu0 %v1259
        %1903 = vmatpush.msra.mxu0 %v1243
        %1904 = vmatpush.msra.mxu0 %v1227
        %1905 = vmatpush.msra.mxu0 %v1211
        %1906 = vmatpush.msra.mxu0 %v1195
        %1907 = vmatpush.msra.mxu0 %v1179
        %1908 = vmatpush.msra.mxu0 %v1163
        %1909 = vmatpush.msra.mxu0 %v1147
        %1910 = vmatpush.msra.mxu0 %v1131
        %1911 = vmatpush.msra.mxu0 %v1115
        %1912 = vmatpush.msra.mxu0 %v1099
        %1913 = vmatpush.msra.mxu0 %v1083
        %1914 = vmatpush.msra.mxu0 %v1067
        %1915 = vmatmul.f32.gmra.mxu0 %v1055
        %v1916 = vpop.f32.mrf.mxu0
        %v1917 = vadd.f32 %v1493, %v1916
        %1918 = vdwg.mxu0
        %1919 = vmatpush.msra.mxu0 0.0
        %1920 = vmatpush.msra.mxu0 0.0
        %1921 = vmatpush.msra.mxu0 0.0
        %1922 = vmatpush.msra.mxu0 0.0
        %1923 = vmatpush.msra.mxu0 0.0
        %1924 = vmatpush.msra.mxu0 %v1483
        %1925 = vmatpush.msra.mxu0 %v1467
        %1926 = vmatpush.msra.mxu0 %v1451
        %1927 = vmatpush.msra.mxu0 %v1435
        %1928 = vmatpush.msra.mxu0 %v1419
        %1929 = vmatpush.msra.mxu0 %v1403
        %1930 = vmatpush.msra.mxu0 %v1387
        %1931 = vmatpush.msra.mxu0 %v1371
        %1932 = vmatpush.msra.mxu0 %v1355
        %1933 = vmatpush.msra.mxu0 %v1339
        %1934 = vmatpush.msra.mxu0 %v1323
        %1935 = vmatmul.f32.gmra.mxu0 %v1497
        %v1936 = vpop.f32.mrf.mxu0
        %v1937 = vadd.f32 %v1917, %v1936
        %1938 = vdwg.mxu0
        %1939 = vmatpush.msra.mxu0 %v1308
        %1940 = vmatpush.msra.mxu0 %v1292
        %1941 = vmatpush.msra.mxu0 %v1276
        %1942 = vmatpush.msra.mxu0 %v1260
        %1943 = vmatpush.msra.mxu0 %v1244
        %1944 = vmatpush.msra.mxu0 %v1228
        %1945 = vmatpush.msra.mxu0 %v1212
        %1946 = vmatpush.msra.mxu0 %v1196
        %1947 = vmatpush.msra.mxu0 %v1180
        %1948 = vmatpush.msra.mxu0 %v1164
        %1949 = vmatpush.msra.mxu0 %v1148
        %1950 = vmatpush.msra.mxu0 %v1132
        %1951 = vmatpush.msra.mxu0 %v1116
        %1952 = vmatpush.msra.mxu0 %v1100
        %1953 = vmatpush.msra.mxu0 %v1084
        %1954 = vmatpush.msra.mxu0 %v1068
        %1955 = vmatmul.f32.gmra.mxu0 %v1055
        %v1956 = vpop.f32.mrf.mxu0
        %v1957 = vadd.f32 %v1493, %v1956
        %1958 = vdwg.mxu0
        %1959 = vmatpush.msra.mxu0 0.0
        %1960 = vmatpush.msra.mxu0 0.0
        %1961 = vmatpush.msra.mxu0 0.0
        %1962 = vmatpush.msra.mxu0 0.0
        %1963 = vmatpush.msra.mxu0 0.0
        %1964 = vmatpush.msra.mxu0 %v1484
        %1965 = vmatpush.msra.mxu0 %v1468
        %1966 = vmatpush.msra.mxu0 %v1452
        %1967 = vmatpush.msra.mxu0 %v1436
        %1968 = vmatpush.msra.mxu0 %v1420
        %1969 = vmatpush.msra.mxu0 %v1404
        %1970 = vmatpush.msra.mxu0 %v1388
        %1971 = vmatpush.msra.mxu0 %v1372
        %1972 = vmatpush.msra.mxu0 %v1356
        %1973 = vmatpush.msra.mxu0 %v1340
        %1974 = vmatpush.msra.mxu0 %v1324
        %1975 = vmatmul.f32.gmra.mxu0 %v1497
        %v1976 = vpop.f32.mrf.mxu0
        %v1977 = vadd.f32 %v1957, %v1976
        %1978 = vdwg.mxu0
        %1979 = vmatpush.msra.mxu0 %v1309
        %1980 = vmatpush.msra.mxu0 %v1293
        %1981 = vmatpush.msra.mxu0 %v1277
        %1982 = vmatpush.msra.mxu0 %v1261
        %1983 = vmatpush.msra.mxu0 %v1245
        %1984 = vmatpush.msra.mxu0 %v1229
        %1985 = vmatpush.msra.mxu0 %v1213
        %1986 = vmatpush.msra.mxu0 %v1197
        %1987 = vmatpush.msra.mxu0 %v1181
        %1988 = vmatpush.msra.mxu0 %v1165
        %1989 = vmatpush.msra.mxu0 %v1149
        %1990 = vmatpush.msra.mxu0 %v1133
        %1991 = vmatpush.msra.mxu0 %v1117
        %1992 = vmatpush.msra.mxu0 %v1101
        %1993 = vmatpush.msra.mxu0 %v1085
        %1994 = vmatpush.msra.mxu0 %v1069
        %1995 = vmatmul.f32.gmra.mxu0 %v1055
        %v1996 = vpop.f32.mrf.mxu0
        %v1997 = vadd.f32 %v1493, %v1996
        %1998 = vdwg.mxu0
        %1999 = vmatpush.msra.mxu0 0.0
        %2000 = vmatpush.msra.mxu0 0.0
        %2001 = vmatpush.msra.mxu0 0.0
        %2002 = vmatpush.msra.mxu0 0.0
        %2003 = vmatpush.msra.mxu0 0.0
        %2004 = vmatpush.msra.mxu0 %v1485
        %2005 = vmatpush.msra.mxu0 %v1469
        %2006 = vmatpush.msra.mxu0 %v1453
        %2007 = vmatpush.msra.mxu0 %v1437
        %2008 = vmatpush.msra.mxu0 %v1421
        %2009 = vmatpush.msra.mxu0 %v1405
        %2010 = vmatpush.msra.mxu0 %v1389
        %2011 = vmatpush.msra.mxu0 %v1373
        %2012 = vmatpush.msra.mxu0 %v1357
        %2013 = vmatpush.msra.mxu0 %v1341
        %2014 = vmatpush.msra.mxu0 %v1325
        %2015 = vmatmul.f32.gmra.mxu0 %v1497
        %v2016 = vpop.f32.mrf.mxu0
        %v2017 = vadd.f32 %v1997, %v2016
        %2018 = vdwg.mxu0
        %2019 = vmatpush.msra.mxu0 %v1310
        %2020 = vmatpush.msra.mxu0 %v1294
        %2021 = vmatpush.msra.mxu0 %v1278
        %2022 = vmatpush.msra.mxu0 %v1262
        %2023 = vmatpush.msra.mxu0 %v1246
        %2024 = vmatpush.msra.mxu0 %v1230
        %2025 = vmatpush.msra.mxu0 %v1214
        %2026 = vmatpush.msra.mxu0 %v1198
        %2027 = vmatpush.msra.mxu0 %v1182
        %2028 = vmatpush.msra.mxu0 %v1166
        %2029 = vmatpush.msra.mxu0 %v1150
        %2030 = vmatpush.msra.mxu0 %v1134
        %2031 = vmatpush.msra.mxu0 %v1118
        %2032 = vmatpush.msra.mxu0 %v1102
        %2033 = vmatpush.msra.mxu0 %v1086
        %2034 = vmatpush.msra.mxu0 %v1070
        %2035 = vmatmul.f32.gmra.mxu0 %v1055
        %v2036 = vpop.f32.mrf.mxu0
        %v2037 = vadd.f32 %v1493, %v2036
        %2038 = vdwg.mxu0
        %2039 = vmatpush.msra.mxu0 0.0
        %2040 = vmatpush.msra.mxu0 0.0
        %2041 = vmatpush.msra.mxu0 0.0
        %2042 = vmatpush.msra.mxu0 0.0
        %2043 = vmatpush.msra.mxu0 0.0
        %2044 = vmatpush.msra.mxu0 %v1486
        %2045 = vmatpush.msra.mxu0 %v1470
        %2046 = vmatpush.msra.mxu0 %v1454
        %2047 = vmatpush.msra.mxu0 %v1438
        %2048 = vmatpush.msra.mxu0 %v1422
        %2049 = vmatpush.msra.mxu0 %v1406
        %2050 = vmatpush.msra.mxu0 %v1390
        %2051 = vmatpush.msra.mxu0 %v1374
        %2052 = vmatpush.msra.mxu0 %v1358
        %2053 = vmatpush.msra.mxu0 %v1342
        %2054 = vmatpush.msra.mxu0 %v1326
        %2055 = vmatmul.f32.gmra.mxu0 %v1497
        %v2056 = vpop.f32.mrf.mxu0
        %v2057 = vadd.f32 %v2037, %v2056
        %2058 = vdwg.mxu0
        %2059 = vmatpush.msra.mxu0 %v1311
        %2060 = vmatpush.msra.mxu0 %v1295
        %2061 = vmatpush.msra.mxu0 %v1279
        %2062 = vmatpush.msra.mxu0 %v1263
        %2063 = vmatpush.msra.mxu0 %v1247
        %2064 = vmatpush.msra.mxu0 %v1231
        %2065 = vmatpush.msra.mxu0 %v1215
        %2066 = vmatpush.msra.mxu0 %v1199
        %2067 = vmatpush.msra.mxu0 %v1183
        %2068 = vmatpush.msra.mxu0 %v1167
        %2069 = vmatpush.msra.mxu0 %v1151
        %2070 = vmatpush.msra.mxu0 %v1135
        %2071 = vmatpush.msra.mxu0 %v1119
        %2072 = vmatpush.msra.mxu0 %v1103
        %2073 = vmatpush.msra.mxu0 %v1087
        %2074 = vmatpush.msra.mxu0 %v1071
        %2075 = vmatmul.f32.gmra.mxu0 %v1055
        %v2076 = vpop.f32.mrf.mxu0
        %v2077 = vadd.f32 %v1493, %v2076
        %2078 = vdwg.mxu0
        %2079 = vmatpush.msra.mxu0 0.0
        %2080 = vmatpush.msra.mxu0 0.0
        %2081 = vmatpush.msra.mxu0 0.0
        %2082 = vmatpush.msra.mxu0 0.0
        %2083 = vmatpush.msra.mxu0 0.0
        %2084 = vmatpush.msra.mxu0 %v1487
        %2085 = vmatpush.msra.mxu0 %v1471
        %2086 = vmatpush.msra.mxu0 %v1455
        %2087 = vmatpush.msra.mxu0 %v1439
        %2088 = vmatpush.msra.mxu0 %v1423
        %2089 = vmatpush.msra.mxu0 %v1407
        %2090 = vmatpush.msra.mxu0 %v1391
        %2091 = vmatpush.msra.mxu0 %v1375
        %2092 = vmatpush.msra.mxu0 %v1359
        %2093 = vmatpush.msra.mxu0 %v1343
        %2094 = vmatpush.msra.mxu0 %v1327
        %2095 = vmatmul.f32.gmra.mxu0 %v1497
        %v2096 = vpop.f32.mrf.mxu0
        %v2097 = vadd.f32 %v2077, %v2096
        %2098 = vdwg.mxu0
        %2099 = vmatpush.msra.mxu0 %v1312
        %2100 = vmatpush.msra.mxu0 %v1296
        %2101 = vmatpush.msra.mxu0 %v1280
        %2102 = vmatpush.msra.mxu0 %v1264
        %2103 = vmatpush.msra.mxu0 %v1248
        %2104 = vmatpush.msra.mxu0 %v1232
        %2105 = vmatpush.msra.mxu0 %v1216
        %2106 = vmatpush.msra.mxu0 %v1200
        %2107 = vmatpush.msra.mxu0 %v1184
        %2108 = vmatpush.msra.mxu0 %v1168
        %2109 = vmatpush.msra.mxu0 %v1152
        %2110 = vmatpush.msra.mxu0 %v1136
        %2111 = vmatpush.msra.mxu0 %v1120
        %2112 = vmatpush.msra.mxu0 %v1104
        %2113 = vmatpush.msra.mxu0 %v1088
        %2114 = vmatpush.msra.mxu0 %v1072
        %2115 = vmatmul.f32.gmra.mxu0 %v1055
        %v2116 = vpop.f32.mrf.mxu0
        %v2117 = vadd.f32 %v1493, %v2116
        %2118 = vdwg.mxu0
        %2119 = vmatpush.msra.mxu0 0.0
        %2120 = vmatpush.msra.mxu0 0.0
        %2121 = vmatpush.msra.mxu0 0.0
        %2122 = vmatpush.msra.mxu0 0.0
        %2123 = vmatpush.msra.mxu0 0.0
        %2124 = vmatpush.msra.mxu0 %v1488
        %2125 = vmatpush.msra.mxu0 %v1472
        %2126 = vmatpush.msra.mxu0 %v1456
        %2127 = vmatpush.msra.mxu0 %v1440
        %2128 = vmatpush.msra.mxu0 %v1424
        %2129 = vmatpush.msra.mxu0 %v1408
        %2130 = vmatpush.msra.mxu0 %v1392
        %2131 = vmatpush.msra.mxu0 %v1376
        %2132 = vmatpush.msra.mxu0 %v1360
        %2133 = vmatpush.msra.mxu0 %v1344
        %2134 = vmatpush.msra.mxu0 %v1328
        %2135 = vmatmul.f32.gmra.mxu0 %v1497
        %v2136 = vpop.f32.mrf.mxu0
        %v2137 = vadd.f32 %v2117, %v2136
        %2138 = vdwg.mxu0
        %2139 = vst [vmem:[%s1053] sm:$0xff] %v1537
        %2140 = vst [vmem:[%s1053 + $0x8] sm:$0xff] %v1577
        %2141 = vst [vmem:[%s1053 + $0x10] sm:$0xff] %v1617
        %2142 = vst [vmem:[%s1053 + $0x18] sm:$0xff] %v1657
        %2143 = vst [vmem:[%s1053 + $0x20] sm:$0xff] %v1697
        %2144 = vst [vmem:[%s1053 + $0x28] sm:$0xff] %v1737
        %2145 = vst [vmem:[%s1053 + $0x30] sm:$0xff] %v1777
        %2146 = vst [vmem:[%s1053 + $0x38] sm:$0xff] %v1817
        %2147 = vst [vmem:[%s1053 + $0x40] sm:$0xff] %v1857
        %2148 = vst [vmem:[%s1053 + $0x48] sm:$0xff] %v1897
        %2149 = vst [vmem:[%s1053 + $0x50] sm:$0xff] %v1937
        %2150 = vst [vmem:[%s1053 + $0x58] sm:$0xff] %v1977
        %2151 = vst [vmem:[%s1053 + $0x60] sm:$0xff] %v2017
        %2152 = vst [vmem:[%s1053 + $0x68] sm:$0xff] %v2057
        %2153 = vst [vmem:[%s1053 + $0x70] sm:$0xff] %v2097
        %2154 = vst [vmem:[%s1053 + $0x78] sm:$0xff] %v2137
        %s2155 = smul.u32 16, %s14
        %p2156 = scmp.lt.s32.totalorder %s2155, 63
        %s2157 = scalar_select %p2156, %s2155, 63
        %s2158 = smul.addr %s2157, 8
        %s2159 = scalar_lea.vmem %s3, %s2158
        // Predicated region
        $region56: #{jigsaw_block_forward.11} parent=50 // pred_check
          %p2160 = pneg %p100
        $region57: #{jigsaw_block_forward.11} parent=50 // pred_check_branch
          %2162 = sbr.rel (%p2160) target = $region59
        $region58: #{jigsaw_block_forward.11} parent=50 // pred_region
          %s2163 = smul.u32 16, %s14
        $region59: #{jigsaw_block_forward.11} parent=50 // pred_fallthru
          _
      $region51: #{jigsaw_block_forward.11} parent=5 // pred_fallthru
        _
      %p2164 = scmp.le.s32.totalorder 2, %s9
      // Predicated region
      $region60: #{jigsaw_block_forward.11} parent=5 // pred_check
        %p2165 = pneg %p2164
      $region61: #{jigsaw_block_forward.11} parent=5 // pred_check_branch
        %2167 = sbr.rel (%p2165) target = $region63
      $region62: #{jigsaw_block_forward.11} parent=5 // pred_region
        %s2168 = ssub.s32 %s9, 2
        // Predicated region
        $region64: #{jigsaw_block_forward.11} parent=62 // pred_check
          %p2169 = pneg %p106
        $region65: #{jigsaw_block_forward.11} parent=62 // pred_check_branch
          %2171 = sbr.rel (%p2169) target = $region67
        $region66: #{jigsaw_block_forward.11} parent=62 // pred_region
          %s2172 = smul.u32 16, %s15
          %p2173 = scmp.lt.s32.totalorder %s2172, 63
          %s2174 = scalar_select %p2173, %s2172, 63
          %s2175 = smul.addr %s2174, 8
          %s2176 = scalar_lea.vmem %s3, %s2175
        $region67: #{jigsaw_block_forward.11} parent=62 // pred_fallthru
          _
      $region63: #{jigsaw_block_forward.11} parent=5 // pred_fallthru
        _
    $region6: #{jigsaw_block_forward.11} parent=1 // loop_footer
      %s13 = sadd.s32 1, %s9
    $region7: #{jigsaw_block_forward.11} parent=1 // loop_footer_branch
      %8 = sbr.rel target = $region3
    $region8: #{jigsaw_block_forward.11} parent=1 // loop_exit
      _

</llo_original>
